<compile_context>
chip_gen: v6e
topology: v6e:2x2x1
jax: 0.10.0
libtpu: 0.0.40
codegen_flags: <defaults>
</compile_context>

<pallas_src>
import math

import jax
import jax.numpy as jnp
from jax.experimental import pallas as pl
from jax.experimental.pallas import tpu as pltpu

# ----- model hyper-parameters (small but consistent with the module's forward) -----
S = 8             # sequence length
B = 2             # batch size
INPUT_DIM = 7     # matches the module's input_dim
PAD_IN = 8        # input_dim padded to the sublane multiple
DIM_MODEL = 128   # d_model (scaled down from 512)
NUM_HEADS = 8     # matches the module's num_heads
HEAD_DIM = DIM_MODEL // NUM_HEADS
NUM_LAYERS = 3    # matches the module's num_layers
FF_DIM = 256      # dim_feedforward (scaled down from the PyTorch default 2048)
OUTPUT_DIM = 1    # matches the module's output_dim
LN_EPS = 1e-5     # nn.LayerNorm default
BS = B * S                  # 16 : (batch, seq) row axis
HBS = NUM_HEADS * B * S     # 128: packed (head, batch, key-position) lane axis
NEG = -1e9                  # cross-batch score mask


def _layernorm(t, gamma, beta):
    # t: (N, D) f32, gamma/beta: (1, D) f32
    mu = jnp.mean(t, axis=-1, keepdims=True)
    var = jnp.mean((t - mu) ** 2, axis=-1, keepdims=True)
    return (t - mu) * jax.lax.rsqrt(var + LN_EPS) * gamma + beta


# ---------------------------------------------------------------------------
# Fused kernel: encoder + NUM_LAYERS encoder layers + decoder, single invocation
# ---------------------------------------------------------------------------
def fused_transformer_kernel(
        x_ref, w_enc_ref, b_enc_ref, pe_ref,
        bd_mask_ref, bias_ref, gsum_ref,
        wqkv_ref, bqkv_ref, wo_ref, bo_ref, ln1g_ref, ln1b_ref,
        w1_ref, b1_ref, w2_ref, b2_ref, ln2g_ref, ln2b_ref,
        w_dec_ref, b_dec_ref,
        o_ref):
    # ---- input Linear(INPUT_DIM -> D) + positional encoding (pe pre-tiled to (B*S, D)) ----
    h = jnp.dot(x_ref[...], w_enc_ref[...],
                preferred_element_type=jnp.float32) + b_enc_ref[...]      # (B*S, D) f32
    h = h + pe_ref[...]

    bd_mask = bd_mask_ref[...]        # (H, B*S, D) bf16: head selector for d
    bias = bias_ref[...]              # (B*S, H*B*S) f32: 0 same batch / -1e9 cross batch
    gsum = gsum_ref[...]              # (H*B*S, H*B*S) f32: (head,batch) block-ones
    scale = 1.0 / math.sqrt(HEAD_DIM)  # 0.25 -> power of two, exact in bf16

    # ---- NUM_LAYERS x nn.TransformerEncoderLayer (post-norm, ReLU FFN, dropout==identity) --
    for l in range(NUM_LAYERS):
        x_bf = h.astype(jnp.bfloat16)

        # fused QKV projection: one (B*S, D) @ (D, 3D) MXU pass
        qkv = jnp.dot(x_bf, wqkv_ref[l],
                      preferred_element_type=jnp.float32) + bqkv_ref[l]   # (B*S, 3D) f32
        q_bf = (qkv[:, :DIM_MODEL] * scale).astype(jnp.bfloat16)          # fold 1/sqrt(dh)
        k_bf = qkv[:, DIM_MODEL:2 * DIM_MODEL].astype(jnp.bfloat16)
        v_bf = qkv[:, 2 * DIM_MODEL:].astype(jnp.bfloat16)

        # Batch+head block-diagonal K/V, built with a single bf16 masked multiply:
        # k_bd[(h, b, t), d] = K[(b, t), d] * (d // HEAD_DIM == h)
        k_bd = (k_bf[None] * bd_mask).reshape(HBS, DIM_MODEL)             # (128, 128) bf16
        v_bd = (v_bf[None] * bd_mask).reshape(HBS, DIM_MODEL)             # (128, 128) bf16

        # scores[(b,s), (h,b',t)] = q_h[(b,s)] . k_h[(b',t)]  (one lane-dense matmul);
        # cross-batch blocks are killed by the additive -1e9 bias.
        sc = jax.lax.dot_general(q_bf, k_bd, (((1,), (1,)), ((), ())),
                                 preferred_element_type=jnp.float32) + bias
        # per-row global max is a valid (per-row constant) softmax shift for every head block
        sc = sc - jnp.max(sc, axis=-1, keepdims=True)
        p = jnp.exp(sc)                                                   # (B*S, H*B*S) f32
        # per-(head,batch) denominators via one block-ones matmul; cross-batch blocks are 0
        denom = jnp.dot(p, gsum, preferred_element_type=jnp.float32)
        denom = jnp.where(denom > 0.0, denom, 1.0)
        probs = (p * pl.reciprocal(denom)).astype(jnp.bfloat16)
        # ctx[(b,s), d] = sum_t probs[(b,s),(head(d),b,t)] * v[(b,t), d]  -> already (B*S, D)
        ctx = jnp.dot(probs, v_bd, preferred_element_type=jnp.float32)

        # output projection: single K=128 matmul (== concat(heads) @ Wo)
        attn = jnp.dot(ctx.astype(jnp.bfloat16), wo_ref[l],
                       preferred_element_type=jnp.float32) + bo_ref[l]
        # residual + LayerNorm 1
        h1 = _layernorm(h + attn, ln1g_ref[l], ln1b_ref[l])
        # feed-forward (Linear -> ReLU -> Linear)
        ff = jnp.maximum(jnp.dot(h1.astype(jnp.bfloat16), w1_ref[l],
                                 preferred_element_type=jnp.float32) + b1_ref[l], 0.0)
        ff = jnp.dot(ff.astype(jnp.bfloat16), w2_ref[l],
                     preferred_element_type=jnp.float32) + b2_ref[l]
        # residual + LayerNorm 2
        h = _layernorm(h1 + ff, ln2g_ref[l], ln2b_ref[l])

    # ---- decoder on the last time step: VPU multiply + lane reduce (no MXU matmul) ----
    h_last = h.reshape(B, S, DIM_MODEL)[:, S - 1, :]                      # (B, D)
    o_ref[...] = (jnp.sum(h_last * w_dec_ref[...], axis=-1, keepdims=True)
                  + b_dec_ref[...])                                       # (B, 1)


# ---------------------------------------------------------------------------
# Wrapper
# ---------------------------------------------------------------------------
def _vmem_spec():
    return pl.BlockSpec(memory_space=pltpu.MemorySpace.VMEM)


def transformer_forward(src, params):
    """src: (S, B, INPUT_DIM) seq-first, like PyTorch. Returns (B, OUTPUT_DIM)."""
    bf = jnp.bfloat16

    # ---- layout plumbing outside the kernel ----
    x = jnp.transpose(src, (1, 0, 2)).astype(jnp.float32).reshape(BS, INPUT_DIM)
    x = jnp.pad(x, ((0, 0), (0, PAD_IN - INPUT_DIM)))                       # (B*S, 8)
    w_enc = jnp.pad(params["w_enc"], ((0, PAD_IN - INPUT_DIM), (0, 0)))     # (8, D)
    pe = jnp.tile(params["pe"], (B, 1))                                     # (B*S, D)

    # ---- attention packing constants, hoisted out of the kernel ----
    head_of_d = jnp.arange(DIM_MODEL) // HEAD_DIM                           # (D,)
    bd_mask = (jnp.arange(NUM_HEADS)[:, None, None] == head_of_d[None, None, :])
    bd_mask = jnp.broadcast_to(bd_mask, (NUM_HEADS, BS, DIM_MODEL)).astype(bf)
    row_b = jnp.arange(BS) // S                                             # batch of row
    col_b = (jnp.arange(HBS) // S) % B                                      # batch of col
    bias = jnp.where(row_b[:, None] == col_b[None, :], 0.0, NEG).astype(jnp.float32)
    blk = jnp.arange(HBS) // S                                              # (head,batch) block
    gsum = (blk[:, None] == blk[None, :]).astype(jnp.float32)

    args = (
        x, w_enc, params["b_enc"], pe,
        bd_mask, bias, gsum,
        params["wqkv"].astype(bf), params["bqkv"],
        params["wo"].astype(bf), params["bo"],
        params["ln1_g"], params["ln1_b"],
        params["w1"].astype(bf), params["b1"],
        params["w2"].astype(bf), params["b2"],
        params["ln2_g"], params["ln2_b"],
        params["w_dec"].T, params["b_dec"],
    )

    return pl.pallas_call(
        fused_transformer_kernel,
        out_shape=jax.ShapeDtypeStruct((B, OUTPUT_DIM), jnp.float32),
        in_specs=[_vmem_spec() for _ in args],
        out_specs=_vmem_spec(),
    )(*args)


# ---------------------------------------------------------------------------
# Deterministic parameter init (shapes follow the module's __init__; per-layer weights
# stacked along a leading layer axis, Q/K/V fused as (D, 3D))
# ---------------------------------------------------------------------------
def init_params(key):
    scale = 0.05
    keys = jax.random.split(key, 6)

    def nrm(k, shp):
        return jax.random.normal(k, shp, jnp.float32) * scale

    params = {}
    params["w_enc"] = nrm(keys[0], (INPUT_DIM, DIM_MODEL))
    params["b_enc"] = jnp.zeros((1, DIM_MODEL), jnp.float32)

    # PositionalEncoding buffer pe[:S]
    position = jnp.arange(S, dtype=jnp.float32)[:, None]
    div_term = jnp.exp(jnp.arange(0, DIM_MODEL, 2, dtype=jnp.float32)
                       * (-math.log(10000.0) / DIM_MODEL))
    pe = jnp.zeros((S, DIM_MODEL), jnp.float32)
    pe = pe.at[:, 0::2].set(jnp.sin(position * div_term))
    pe = pe.at[:, 1::2].set(jnp.cos(position * div_term))
    params["pe"] = pe

    params["wqkv"] = nrm(keys[1], (NUM_LAYERS, DIM_MODEL, 3 * DIM_MODEL))
    params["bqkv"] = jnp.zeros((NUM_LAYERS, 1, 3 * DIM_MODEL), jnp.float32)
    params["wo"] = nrm(keys[2], (NUM_LAYERS, DIM_MODEL, DIM_MODEL))
    params["bo"] = jnp.zeros((NUM_LAYERS, 1, DIM_MODEL), jnp.float32)
    params["ln1_g"] = jnp.ones((NUM_LAYERS, 1, DIM_MODEL), jnp.float32)
    params["ln1_b"] = jnp.zeros((NUM_LAYERS, 1, DIM_MODEL), jnp.float32)
    params["w1"] = nrm(keys[3], (NUM_LAYERS, DIM_MODEL, FF_DIM))
    params["b1"] = jnp.zeros((NUM_LAYERS, 1, FF_DIM), jnp.float32)
    params["w2"] = nrm(keys[4], (NUM_LAYERS, FF_DIM, DIM_MODEL))
    params["b2"] = jnp.zeros((NUM_LAYERS, 1, DIM_MODEL), jnp.float32)
    params["ln2_g"] = jnp.ones((NUM_LAYERS, 1, DIM_MODEL), jnp.float32)
    params["ln2_b"] = jnp.zeros((NUM_LAYERS, 1, DIM_MODEL), jnp.float32)

    params["w_dec"] = nrm(keys[5], (DIM_MODEL, OUTPUT_DIM))
    params["b_dec"] = jnp.zeros((1, OUTPUT_DIM), jnp.float32)
    return params


# ---------------------------------------------------------------------------
# Pure-JAX reference (same math, f32 highest precision) for validation
# ---------------------------------------------------------------------------
def reference_forward(src, params):
    HI = jax.lax.Precision.HIGHEST

    def ln(t, g, bvec):
        mu = jnp.mean(t, axis=-1, keepdims=True)
        var = jnp.mean((t - mu) ** 2, axis=-1, keepdims=True)
        return (t - mu) / jnp.sqrt(var + LN_EPS) * g + bvec

    x = jnp.transpose(src, (1, 0, 2)).astype(jnp.float32)          # (B, S, Din)
    h = jnp.einsum("bsi,id->bsd", x, params["w_enc"], precision=HI) + params["b_enc"][0]
    h = h + params["pe"][None]
    for li in range(NUM_LAYERS):
        qkv = jnp.einsum("bsd,de->bse", h, params["wqkv"][li], precision=HI) \
            + params["bqkv"][li, 0]
        q, k, v = jnp.split(qkv, 3, axis=-1)
        qh = q.reshape(B, S, NUM_HEADS, HEAD_DIM)
        kh = k.reshape(B, S, NUM_HEADS, HEAD_DIM)
        vh = v.reshape(B, S, NUM_HEADS, HEAD_DIM)
        sc = jnp.einsum("bqhd,bkhd->bhqk", qh, kh, precision=HI) / math.sqrt(HEAD_DIM)
        p = jax.nn.softmax(sc, axis=-1)
        ctx = jnp.einsum("bhqk,bkhd->bqhd", p, vh, precision=HI).reshape(B, S, DIM_MODEL)
        attn = jnp.einsum("bsd,de->bse", ctx, params["wo"][li], precision=HI) \
            + params["bo"][li, 0]
        h1 = ln(h + attn, params["ln1_g"][li, 0], params["ln1_b"][li, 0])
        ff = jax.nn.relu(jnp.einsum("bsd,df->bsf", h1, params["w1"][li], precision=HI)
                         + params["b1"][li, 0])
        ff = jnp.einsum("bsf,fd->bsd", ff, params["w2"][li], precision=HI) + params["b2"][li, 0]
        h = ln(h1 + ff, params["ln2_g"][li, 0], params["ln2_b"][li, 0])
    out = jnp.einsum("bd,do->bo", h[:, -1, :], params["w_dec"], precision=HI) \
        + params["b_dec"][0]
    return out


if __name__ == "__main__":
    key = jax.random.PRNGKey(0)
    pkey, xkey = jax.random.split(key)
    params = init_params(pkey)
    src = jax.random.normal(xkey, (S, B, INPUT_DIM), jnp.float32)   # seq-first, PyTorch-style

    out = jax.block_until_ready(transformer_forward(src, params))
    assert out.shape == (B, OUTPUT_DIM), out.shape

    ref = reference_forward(src, params)
    if not jnp.allclose(out, ref, rtol=2e-2, atol=2e-2):
        raise AssertionError(f"mismatch vs reference:\n{out}\nvs\n{ref}")
    print("KERNEL_OK")
</pallas_src>

<mosaic_0001>
module attributes {stable_mosaic.version = 11 : i64} {
  func.func @fused_transformer_kernel(%arg0: memref<16x8xf32, #tpu.memory_space<vmem>>, %arg1: memref<8x128xf32, #tpu.memory_space<vmem>>, %arg2: memref<1x128xf32, #tpu.memory_space<vmem>>, %arg3: memref<16x128xf32, #tpu.memory_space<vmem>>, %arg4: memref<8x16x128xbf16, #tpu.memory_space<vmem>>, %arg5: memref<16x128xf32, #tpu.memory_space<vmem>>, %arg6: memref<128x128xf32, #tpu.memory_space<vmem>>, %arg7: memref<3x128x384xbf16, #tpu.memory_space<vmem>>, %arg8: memref<3x1x384xf32, #tpu.memory_space<vmem>>, %arg9: memref<3x128x128xbf16, #tpu.memory_space<vmem>>, %arg10: memref<3x1x128xf32, #tpu.memory_space<vmem>>, %arg11: memref<3x1x128xf32, #tpu.memory_space<vmem>>, %arg12: memref<3x1x128xf32, #tpu.memory_space<vmem>>, %arg13: memref<3x128x256xbf16, #tpu.memory_space<vmem>>, %arg14: memref<3x1x256xf32, #tpu.memory_space<vmem>>, %arg15: memref<3x256x128xbf16, #tpu.memory_space<vmem>>, %arg16: memref<3x1x128xf32, #tpu.memory_space<vmem>>, %arg17: memref<3x1x128xf32, #tpu.memory_space<vmem>>, %arg18: memref<3x1x128xf32, #tpu.memory_space<vmem>>, %arg19: memref<1x128xf32, #tpu.memory_space<vmem>>, %arg20: memref<1x1xf32, #tpu.memory_space<vmem>>, %arg21: memref<2x1xf32, #tpu.memory_space<vmem>>) attributes {dimension_semantics = [], scalar_prefetch = 0 : i64, scratch_operands = 0 : i64, tpu.core_type = #tpu.core_type<tc>} {
    %c0 = arith.constant 0 : index
    %c0_0 = arith.constant 0 : index
    %0 = vector.load %arg0[%c0, %c0_0] : memref<16x8xf32, #tpu.memory_space<vmem>>, vector<16x8xf32>
    %c0_1 = arith.constant 0 : index
    %c0_2 = arith.constant 0 : index
    %1 = vector.load %arg1[%c0_1, %c0_2] : memref<8x128xf32, #tpu.memory_space<vmem>>, vector<8x128xf32>
    %cst = arith.constant dense<0.000000e+00> : vector<16x128xf32>
    %2 = tpu.matmul %0, %1, %cst {dimension_numbers = #tpu.dot_dimension_numbers<[1], [0], [0], [1], [0, 0, 1, 1], [], []>} : vector<16x8xf32>, vector<8x128xf32>, vector<16x128xf32> -> vector<16x128xf32>
    %c0_3 = arith.constant 0 : index
    %c0_4 = arith.constant 0 : index
    %3 = vector.load %arg2[%c0_3, %c0_4] : memref<1x128xf32, #tpu.memory_space<vmem>>, vector<1x128xf32>
    %4 = vector.broadcast %3 : vector<1x128xf32> to vector<16x128xf32>
    %5 = arith.addf %2, %4 : vector<16x128xf32>
    %c0_5 = arith.constant 0 : index
    %c0_6 = arith.constant 0 : index
    %6 = vector.load %arg3[%c0_5, %c0_6] : memref<16x128xf32, #tpu.memory_space<vmem>>, vector<16x128xf32>
    %7 = arith.addf %5, %6 : vector<16x128xf32>
    %c0_7 = arith.constant 0 : index
    %c0_8 = arith.constant 0 : index
    %c0_9 = arith.constant 0 : index
    %8 = vector.load %arg4[%c0_7, %c0_8, %c0_9] : memref<8x16x128xbf16, #tpu.memory_space<vmem>>, vector<8x16x128xbf16>
    %c0_10 = arith.constant 0 : index
    %c0_11 = arith.constant 0 : index
    %9 = vector.load %arg5[%c0_10, %c0_11] : memref<16x128xf32, #tpu.memory_space<vmem>>, vector<16x128xf32>
    %c0_12 = arith.constant 0 : index
    %c0_13 = arith.constant 0 : index
    %10 = vector.load %arg6[%c0_12, %c0_13] : memref<128x128xf32, #tpu.memory_space<vmem>>, vector<128x128xf32>
    %11 = arith.truncf %7 : vector<16x128xf32> to vector<16x128xbf16>
    %c0_14 = arith.constant 0 : index
    %c0_15 = arith.constant 0 : index
    %c0_16 = arith.constant 0 : index
    %12 = vector.load %arg7[%c0_14, %c0_15, %c0_16] : memref<3x128x384xbf16, #tpu.memory_space<vmem>>, vector<1x128x384xbf16>
    %13 = vector.shape_cast %12 : vector<1x128x384xbf16> to vector<128x384xbf16>
    %cst_17 = arith.constant dense<0.000000e+00> : vector<16x384xf32>
    %14 = tpu.matmul %11, %13, %cst_17 {dimension_numbers = #tpu.dot_dimension_numbers<[1], [0], [0], [1], [0, 0, 1, 1], [], []>} : vector<16x128xbf16>, vector<128x384xbf16>, vector<16x384xf32> -> vector<16x384xf32>
    %c0_18 = arith.constant 0 : index
    %c0_19 = arith.constant 0 : index
    %c0_20 = arith.constant 0 : index
    %15 = vector.load %arg8[%c0_18, %c0_19, %c0_20] : memref<3x1x384xf32, #tpu.memory_space<vmem>>, vector<1x1x384xf32>
    %16 = vector.shape_cast %15 : vector<1x1x384xf32> to vector<1x384xf32>
    %17 = vector.broadcast %16 : vector<1x384xf32> to vector<16x384xf32>
    %18 = arith.addf %14, %17 : vector<16x384xf32>
    %19 = vector.extract_strided_slice %18 {offsets = [0, 0], sizes = [16, 128], strides = [1, 1]} : vector<16x384xf32> to vector<16x128xf32>
    %cst_21 = arith.constant 2.500000e-01 : f32
    %20 = vector.broadcast %cst_21 : f32 to vector<16x128xf32>
    %21 = arith.mulf %19, %20 : vector<16x128xf32>
    %22 = arith.truncf %21 : vector<16x128xf32> to vector<16x128xbf16>
    %23 = vector.extract_strided_slice %18 {offsets = [0, 128], sizes = [16, 128], strides = [1, 1]} : vector<16x384xf32> to vector<16x128xf32>
    %24 = arith.truncf %23 : vector<16x128xf32> to vector<16x128xbf16>
    %25 = vector.extract_strided_slice %18 {offsets = [0, 256], sizes = [16, 128], strides = [1, 1]} : vector<16x384xf32> to vector<16x128xf32>
    %26 = arith.truncf %25 : vector<16x128xf32> to vector<16x128xbf16>
    %27 = vector.shape_cast %24 : vector<16x128xbf16> to vector<1x16x128xbf16>
    %28 = vector.broadcast %27 : vector<1x16x128xbf16> to vector<8x16x128xbf16>
    %29 = arith.mulf %28, %8 : vector<8x16x128xbf16>
    %30 = vector.shape_cast %29 : vector<8x16x128xbf16> to vector<128x128xbf16>
    %31 = vector.shape_cast %26 : vector<16x128xbf16> to vector<1x16x128xbf16>
    %32 = vector.broadcast %31 : vector<1x16x128xbf16> to vector<8x16x128xbf16>
    %33 = arith.mulf %32, %8 : vector<8x16x128xbf16>
    %34 = vector.shape_cast %33 : vector<8x16x128xbf16> to vector<128x128xbf16>
    %cst_22 = arith.constant dense<0.000000e+00> : vector<16x128xf32>
    %35 = tpu.matmul %22, %30, %cst_22 {dimension_numbers = #tpu.dot_dimension_numbers<[1], [1], [0], [0], [0, 0, 1, 0], [], []>} : vector<16x128xbf16>, vector<128x128xbf16>, vector<16x128xf32> -> vector<16x128xf32>
    %36 = arith.addf %35, %9 : vector<16x128xf32>
    %cst_23 = arith.constant dense<0xFF800000> : vector<16xf32>
    %37 = vector.multi_reduction <maximumf>, %36, %cst_23 [1] : vector<16x128xf32> to vector<16xf32>
    %38 = vector.shape_cast %37 : vector<16xf32> to vector<16x1xf32>
    %39 = vector.broadcast %38 : vector<16x1xf32> to vector<16x128xf32>
    %40 = arith.subf %36, %39 : vector<16x128xf32>
    %41 = math.exp %40 : vector<16x128xf32>
    %cst_24 = arith.constant dense<0.000000e+00> : vector<16x128xf32>
    %42 = tpu.matmul %41, %10, %cst_24 {dimension_numbers = #tpu.dot_dimension_numbers<[1], [0], [0], [1], [0, 0, 1, 1], [], []>} : vector<16x128xf32>, vector<128x128xf32>, vector<16x128xf32> -> vector<16x128xf32>
    %cst_25 = arith.constant 0.000000e+00 : f32
    %43 = vector.broadcast %cst_25 : f32 to vector<16x128xf32>
    %44 = arith.cmpf ogt, %42, %43 : vector<16x128xf32>
    %cst_26 = arith.constant 1.000000e+00 : f32
    %45 = vector.broadcast %cst_26 : f32 to vector<16x128xf32>
    %46 = arith.select %44, %42, %45 : vector<16x128xi1>, vector<16x128xf32>
    %47 = tpu.reciprocal %46 : vector<16x128xf32> -> vector<16x128xf32>
    %48 = arith.mulf %41, %47 : vector<16x128xf32>
    %49 = arith.truncf %48 : vector<16x128xf32> to vector<16x128xbf16>
    %cst_27 = arith.constant dense<0.000000e+00> : vector<16x128xf32>
    %50 = tpu.matmul %49, %34, %cst_27 {dimension_numbers = #tpu.dot_dimension_numbers<[1], [0], [0], [1], [0, 0, 1, 1], [], []>} : vector<16x128xbf16>, vector<128x128xbf16>, vector<16x128xf32> -> vector<16x128xf32>
    %51 = arith.truncf %50 : vector<16x128xf32> to vector<16x128xbf16>
    %c0_28 = arith.constant 0 : index
    %c0_29 = arith.constant 0 : index
    %c0_30 = arith.constant 0 : index
    %52 = vector.load %arg9[%c0_28, %c0_29, %c0_30] : memref<3x128x128xbf16, #tpu.memory_space<vmem>>, vector<1x128x128xbf16>
    %53 = vector.shape_cast %52 : vector<1x128x128xbf16> to vector<128x128xbf16>
    %cst_31 = arith.constant dense<0.000000e+00> : vector<16x128xf32>
    %54 = tpu.matmul %51, %53, %cst_31 {dimension_numbers = #tpu.dot_dimension_numbers<[1], [0], [0], [1], [0, 0, 1, 1], [], []>} : vector<16x128xbf16>, vector<128x128xbf16>, vector<16x128xf32> -> vector<16x128xf32>
    %c0_32 = arith.constant 0 : index
    %c0_33 = arith.constant 0 : index
    %c0_34 = arith.constant 0 : index
    %55 = vector.load %arg10[%c0_32, %c0_33, %c0_34] : memref<3x1x128xf32, #tpu.memory_space<vmem>>, vector<1x1x128xf32>
    %56 = vector.shape_cast %55 : vector<1x1x128xf32> to vector<1x128xf32>
    %57 = vector.broadcast %56 : vector<1x128xf32> to vector<16x128xf32>
    %58 = arith.addf %54, %57 : vector<16x128xf32>
    %59 = arith.addf %7, %58 : vector<16x128xf32>
    %c0_35 = arith.constant 0 : index
    %c0_36 = arith.constant 0 : index
    %c0_37 = arith.constant 0 : index
    %60 = vector.load %arg11[%c0_35, %c0_36, %c0_37] : memref<3x1x128xf32, #tpu.memory_space<vmem>>, vector<1x1x128xf32>
    %61 = vector.shape_cast %60 : vector<1x1x128xf32> to vector<1x128xf32>
    %c0_38 = arith.constant 0 : index
    %c0_39 = arith.constant 0 : index
    %c0_40 = arith.constant 0 : index
    %62 = vector.load %arg12[%c0_38, %c0_39, %c0_40] : memref<3x1x128xf32, #tpu.memory_space<vmem>>, vector<1x1x128xf32>
    %63 = vector.shape_cast %62 : vector<1x1x128xf32> to vector<1x128xf32>
    %cst_41 = arith.constant dense<0.000000e+00> : vector<16xf32>
    %64 = vector.multi_reduction <add>, %59, %cst_41 [1] : vector<16x128xf32> to vector<16xf32>
    %65 = vector.shape_cast %64 : vector<16xf32> to vector<16x1xf32>
    %cst_42 = arith.constant 1.280000e+02 : f32
    %66 = vector.broadcast %cst_42 : f32 to vector<16x1xf32>
    %67 = arith.divf %65, %66 : vector<16x1xf32>
    %68 = vector.broadcast %67 : vector<16x1xf32> to vector<16x128xf32>
    %69 = arith.subf %59, %68 : vector<16x128xf32>
    %70 = arith.mulf %69, %69 : vector<16x128xf32>
    %cst_43 = arith.constant dense<0.000000e+00> : vector<16xf32>
    %71 = vector.multi_reduction <add>, %70, %cst_43 [1] : vector<16x128xf32> to vector<16xf32>
    %72 = vector.shape_cast %71 : vector<16xf32> to vector<16x1xf32>
    %cst_44 = arith.constant 1.280000e+02 : f32
    %73 = vector.broadcast %cst_44 : f32 to vector<16x1xf32>
    %74 = arith.divf %72, %73 : vector<16x1xf32>
    %75 = vector.broadcast %67 : vector<16x1xf32> to vector<16x128xf32>
    %76 = arith.subf %59, %75 : vector<16x128xf32>
    %cst_45 = arith.constant 9.99999974E-6 : f32
    %77 = vector.broadcast %cst_45 : f32 to vector<16x1xf32>
    %78 = arith.addf %74, %77 : vector<16x1xf32>
    %79 = math.rsqrt %78 : vector<16x1xf32>
    %80 = vector.broadcast %79 : vector<16x1xf32> to vector<16x128xf32>
    %81 = arith.mulf %76, %80 : vector<16x128xf32>
    %82 = vector.broadcast %61 : vector<1x128xf32> to vector<16x128xf32>
    %83 = arith.mulf %81, %82 : vector<16x128xf32>
    %84 = vector.broadcast %63 : vector<1x128xf32> to vector<16x128xf32>
    %85 = arith.addf %83, %84 : vector<16x128xf32>
    %86 = arith.truncf %85 : vector<16x128xf32> to vector<16x128xbf16>
    %c0_46 = arith.constant 0 : index
    %c0_47 = arith.constant 0 : index
    %c0_48 = arith.constant 0 : index
    %87 = vector.load %arg13[%c0_46, %c0_47, %c0_48] : memref<3x128x256xbf16, #tpu.memory_space<vmem>>, vector<1x128x256xbf16>
    %88 = vector.shape_cast %87 : vector<1x128x256xbf16> to vector<128x256xbf16>
    %cst_49 = arith.constant dense<0.000000e+00> : vector<16x256xf32>
    %89 = tpu.matmul %86, %88, %cst_49 {dimension_numbers = #tpu.dot_dimension_numbers<[1], [0], [0], [1], [0, 0, 1, 1], [], []>} : vector<16x128xbf16>, vector<128x256xbf16>, vector<16x256xf32> -> vector<16x256xf32>
    %c0_50 = arith.constant 0 : index
    %c0_51 = arith.constant 0 : index
    %c0_52 = arith.constant 0 : index
    %90 = vector.load %arg14[%c0_50, %c0_51, %c0_52] : memref<3x1x256xf32, #tpu.memory_space<vmem>>, vector<1x1x256xf32>
    %91 = vector.shape_cast %90 : vector<1x1x256xf32> to vector<1x256xf32>
    %92 = vector.broadcast %91 : vector<1x256xf32> to vector<16x256xf32>
    %93 = arith.addf %89, %92 : vector<16x256xf32>
    %cst_53 = arith.constant 0.000000e+00 : f32
    %94 = vector.broadcast %cst_53 : f32 to vector<16x256xf32>
    %95 = arith.maximumf %93, %94 : vector<16x256xf32>
    %96 = arith.truncf %95 : vector<16x256xf32> to vector<16x256xbf16>
    %c0_54 = arith.constant 0 : index
    %c0_55 = arith.constant 0 : index
    %c0_56 = arith.constant 0 : index
    %97 = vector.load %arg15[%c0_54, %c0_55, %c0_56] : memref<3x256x128xbf16, #tpu.memory_space<vmem>>, vector<1x256x128xbf16>
    %98 = vector.shape_cast %97 : vector<1x256x128xbf16> to vector<256x128xbf16>
    %cst_57 = arith.constant dense<0.000000e+00> : vector<16x128xf32>
    %99 = tpu.matmul %96, %98, %cst_57 {dimension_numbers = #tpu.dot_dimension_numbers<[1], [0], [0], [1], [0, 0, 1, 1], [], []>} : vector<16x256xbf16>, vector<256x128xbf16>, vector<16x128xf32> -> vector<16x128xf32>
    %c0_58 = arith.constant 0 : index
    %c0_59 = arith.constant 0 : index
    %c0_60 = arith.constant 0 : index
    %100 = vector.load %arg16[%c0_58, %c0_59, %c0_60] : memref<3x1x128xf32, #tpu.memory_space<vmem>>, vector<1x1x128xf32>
    %101 = vector.shape_cast %100 : vector<1x1x128xf32> to vector<1x128xf32>
    %102 = vector.broadcast %101 : vector<1x128xf32> to vector<16x128xf32>
    %103 = arith.addf %99, %102 : vector<16x128xf32>
    %104 = arith.addf %85, %103 : vector<16x128xf32>
    %c0_61 = arith.constant 0 : index
    %c0_62 = arith.constant 0 : index
    %c0_63 = arith.constant 0 : index
    %105 = vector.load %arg17[%c0_61, %c0_62, %c0_63] : memref<3x1x128xf32, #tpu.memory_space<vmem>>, vector<1x1x128xf32>
    %106 = vector.shape_cast %105 : vector<1x1x128xf32> to vector<1x128xf32>
    %c0_64 = arith.constant 0 : index
    %c0_65 = arith.constant 0 : index
    %c0_66 = arith.constant 0 : index
    %107 = vector.load %arg18[%c0_64, %c0_65, %c0_66] : memref<3x1x128xf32, #tpu.memory_space<vmem>>, vector<1x1x128xf32>
    %108 = vector.shape_cast %107 : vector<1x1x128xf32> to vector<1x128xf32>
    %cst_67 = arith.constant dense<0.000000e+00> : vector<16xf32>
    %109 = vector.multi_reduction <add>, %104, %cst_67 [1] : vector<16x128xf32> to vector<16xf32>
    %110 = vector.shape_cast %109 : vector<16xf32> to vector<16x1xf32>
    %cst_68 = arith.constant 1.280000e+02 : f32
    %111 = vector.broadcast %cst_68 : f32 to vector<16x1xf32>
    %112 = arith.divf %110, %111 : vector<16x1xf32>
    %113 = vector.broadcast %112 : vector<16x1xf32> to vector<16x128xf32>
    %114 = arith.subf %104, %113 : vector<16x128xf32>
    %115 = arith.mulf %114, %114 : vector<16x128xf32>
    %cst_69 = arith.constant dense<0.000000e+00> : vector<16xf32>
    %116 = vector.multi_reduction <add>, %115, %cst_69 [1] : vector<16x128xf32> to vector<16xf32>
    %117 = vector.shape_cast %116 : vector<16xf32> to vector<16x1xf32>
    %cst_70 = arith.constant 1.280000e+02 : f32
    %118 = vector.broadcast %cst_70 : f32 to vector<16x1xf32>
    %119 = arith.divf %117, %118 : vector<16x1xf32>
    %120 = vector.broadcast %112 : vector<16x1xf32> to vector<16x128xf32>
    %121 = arith.subf %104, %120 : vector<16x128xf32>
    %cst_71 = arith.constant 9.99999974E-6 : f32
    %122 = vector.broadcast %cst_71 : f32 to vector<16x1xf32>
    %123 = arith.addf %119, %122 : vector<16x1xf32>
    %124 = math.rsqrt %123 : vector<16x1xf32>
    %125 = vector.broadcast %124 : vector<16x1xf32> to vector<16x128xf32>
    %126 = arith.mulf %121, %125 : vector<16x128xf32>
    %127 = vector.broadcast %106 : vector<1x128xf32> to vector<16x128xf32>
    %128 = arith.mulf %126, %127 : vector<16x128xf32>
    %129 = vector.broadcast %108 : vector<1x128xf32> to vector<16x128xf32>
    %130 = arith.addf %128, %129 : vector<16x128xf32>
    %131 = arith.truncf %130 : vector<16x128xf32> to vector<16x128xbf16>
    %c1 = arith.constant 1 : index
    %c0_72 = arith.constant 0 : index
    %c0_73 = arith.constant 0 : index
    %132 = vector.load %arg7[%c1, %c0_72, %c0_73] : memref<3x128x384xbf16, #tpu.memory_space<vmem>>, vector<1x128x384xbf16>
    %133 = vector.shape_cast %132 : vector<1x128x384xbf16> to vector<128x384xbf16>
    %cst_74 = arith.constant dense<0.000000e+00> : vector<16x384xf32>
    %134 = tpu.matmul %131, %133, %cst_74 {dimension_numbers = #tpu.dot_dimension_numbers<[1], [0], [0], [1], [0, 0, 1, 1], [], []>} : vector<16x128xbf16>, vector<128x384xbf16>, vector<16x384xf32> -> vector<16x384xf32>
    %c1_75 = arith.constant 1 : index
    %c0_76 = arith.constant 0 : index
    %c0_77 = arith.constant 0 : index
    %135 = vector.load %arg8[%c1_75, %c0_76, %c0_77] : memref<3x1x384xf32, #tpu.memory_space<vmem>>, vector<1x1x384xf32>
    %136 = vector.shape_cast %135 : vector<1x1x384xf32> to vector<1x384xf32>
    %137 = vector.broadcast %136 : vector<1x384xf32> to vector<16x384xf32>
    %138 = arith.addf %134, %137 : vector<16x384xf32>
    %139 = vector.extract_strided_slice %138 {offsets = [0, 0], sizes = [16, 128], strides = [1, 1]} : vector<16x384xf32> to vector<16x128xf32>
    %cst_78 = arith.constant 2.500000e-01 : f32
    %140 = vector.broadcast %cst_78 : f32 to vector<16x128xf32>
    %141 = arith.mulf %139, %140 : vector<16x128xf32>
    %142 = arith.truncf %141 : vector<16x128xf32> to vector<16x128xbf16>
    %143 = vector.extract_strided_slice %138 {offsets = [0, 128], sizes = [16, 128], strides = [1, 1]} : vector<16x384xf32> to vector<16x128xf32>
    %144 = arith.truncf %143 : vector<16x128xf32> to vector<16x128xbf16>
    %145 = vector.extract_strided_slice %138 {offsets = [0, 256], sizes = [16, 128], strides = [1, 1]} : vector<16x384xf32> to vector<16x128xf32>
    %146 = arith.truncf %145 : vector<16x128xf32> to vector<16x128xbf16>
    %147 = vector.shape_cast %144 : vector<16x128xbf16> to vector<1x16x128xbf16>
    %148 = vector.broadcast %147 : vector<1x16x128xbf16> to vector<8x16x128xbf16>
    %149 = arith.mulf %148, %8 : vector<8x16x128xbf16>
    %150 = vector.shape_cast %149 : vector<8x16x128xbf16> to vector<128x128xbf16>
    %151 = vector.shape_cast %146 : vector<16x128xbf16> to vector<1x16x128xbf16>
    %152 = vector.broadcast %151 : vector<1x16x128xbf16> to vector<8x16x128xbf16>
    %153 = arith.mulf %152, %8 : vector<8x16x128xbf16>
    %154 = vector.shape_cast %153 : vector<8x16x128xbf16> to vector<128x128xbf16>
    %cst_79 = arith.constant dense<0.000000e+00> : vector<16x128xf32>
    %155 = tpu.matmul %142, %150, %cst_79 {dimension_numbers = #tpu.dot_dimension_numbers<[1], [1], [0], [0], [0, 0, 1, 0], [], []>} : vector<16x128xbf16>, vector<128x128xbf16>, vector<16x128xf32> -> vector<16x128xf32>
    %156 = arith.addf %155, %9 : vector<16x128xf32>
    %cst_80 = arith.constant dense<0xFF800000> : vector<16xf32>
    %157 = vector.multi_reduction <maximumf>, %156, %cst_80 [1] : vector<16x128xf32> to vector<16xf32>
    %158 = vector.shape_cast %157 : vector<16xf32> to vector<16x1xf32>
    %159 = vector.broadcast %158 : vector<16x1xf32> to vector<16x128xf32>
    %160 = arith.subf %156, %159 : vector<16x128xf32>
    %161 = math.exp %160 : vector<16x128xf32>
    %cst_81 = arith.constant dense<0.000000e+00> : vector<16x128xf32>
    %162 = tpu.matmul %161, %10, %cst_81 {dimension_numbers = #tpu.dot_dimension_numbers<[1], [0], [0], [1], [0, 0, 1, 1], [], []>} : vector<16x128xf32>, vector<128x128xf32>, vector<16x128xf32> -> vector<16x128xf32>
    %cst_82 = arith.constant 0.000000e+00 : f32
    %163 = vector.broadcast %cst_82 : f32 to vector<16x128xf32>
    %164 = arith.cmpf ogt, %162, %163 : vector<16x128xf32>
    %cst_83 = arith.constant 1.000000e+00 : f32
    %165 = vector.broadcast %cst_83 : f32 to vector<16x128xf32>
    %166 = arith.select %164, %162, %165 : vector<16x128xi1>, vector<16x128xf32>
    %167 = tpu.reciprocal %166 : vector<16x128xf32> -> vector<16x128xf32>
    %168 = arith.mulf %161, %167 : vector<16x128xf32>
    %169 = arith.truncf %168 : vector<16x128xf32> to vector<16x128xbf16>
    %cst_84 = arith.constant dense<0.000000e+00> : vector<16x128xf32>
    %170 = tpu.matmul %169, %154, %cst_84 {dimension_numbers = #tpu.dot_dimension_numbers<[1], [0], [0], [1], [0, 0, 1, 1], [], []>} : vector<16x128xbf16>, vector<128x128xbf16>, vector<16x128xf32> -> vector<16x128xf32>
    %171 = arith.truncf %170 : vector<16x128xf32> to vector<16x128xbf16>
    %c1_85 = arith.constant 1 : index
    %c0_86 = arith.constant 0 : index
    %c0_87 = arith.constant 0 : index
    %172 = vector.load %arg9[%c1_85, %c0_86, %c0_87] : memref<3x128x128xbf16, #tpu.memory_space<vmem>>, vector<1x128x128xbf16>
    %173 = vector.shape_cast %172 : vector<1x128x128xbf16> to vector<128x128xbf16>
    %cst_88 = arith.constant dense<0.000000e+00> : vector<16x128xf32>
    %174 = tpu.matmul %171, %173, %cst_88 {dimension_numbers = #tpu.dot_dimension_numbers<[1], [0], [0], [1], [0, 0, 1, 1], [], []>} : vector<16x128xbf16>, vector<128x128xbf16>, vector<16x128xf32> -> vector<16x128xf32>
    %c1_89 = arith.constant 1 : index
    %c0_90 = arith.constant 0 : index
    %c0_91 = arith.constant 0 : index
    %175 = vector.load %arg10[%c1_89, %c0_90, %c0_91] : memref<3x1x128xf32, #tpu.memory_space<vmem>>, vector<1x1x128xf32>
    %176 = vector.shape_cast %175 : vector<1x1x128xf32> to vector<1x128xf32>
    %177 = vector.broadcast %176 : vector<1x128xf32> to vector<16x128xf32>
    %178 = arith.addf %174, %177 : vector<16x128xf32>
    %179 = arith.addf %130, %178 : vector<16x128xf32>
    %c1_92 = arith.constant 1 : index
    %c0_93 = arith.constant 0 : index
    %c0_94 = arith.constant 0 : index
    %180 = vector.load %arg11[%c1_92, %c0_93, %c0_94] : memref<3x1x128xf32, #tpu.memory_space<vmem>>, vector<1x1x128xf32>
    %181 = vector.shape_cast %180 : vector<1x1x128xf32> to vector<1x128xf32>
    %c1_95 = arith.constant 1 : index
    %c0_96 = arith.constant 0 : index
    %c0_97 = arith.constant 0 : index
    %182 = vector.load %arg12[%c1_95, %c0_96, %c0_97] : memref<3x1x128xf32, #tpu.memory_space<vmem>>, vector<1x1x128xf32>
    %183 = vector.shape_cast %182 : vector<1x1x128xf32> to vector<1x128xf32>
    %cst_98 = arith.constant dense<0.000000e+00> : vector<16xf32>
    %184 = vector.multi_reduction <add>, %179, %cst_98 [1] : vector<16x128xf32> to vector<16xf32>
    %185 = vector.shape_cast %184 : vector<16xf32> to vector<16x1xf32>
    %cst_99 = arith.constant 1.280000e+02 : f32
    %186 = vector.broadcast %cst_99 : f32 to vector<16x1xf32>
    %187 = arith.divf %185, %186 : vector<16x1xf32>
    %188 = vector.broadcast %187 : vector<16x1xf32> to vector<16x128xf32>
    %189 = arith.subf %179, %188 : vector<16x128xf32>
    %190 = arith.mulf %189, %189 : vector<16x128xf32>
    %cst_100 = arith.constant dense<0.000000e+00> : vector<16xf32>
    %191 = vector.multi_reduction <add>, %190, %cst_100 [1] : vector<16x128xf32> to vector<16xf32>
    %192 = vector.shape_cast %191 : vector<16xf32> to vector<16x1xf32>
    %cst_101 = arith.constant 1.280000e+02 : f32
    %193 = vector.broadcast %cst_101 : f32 to vector<16x1xf32>
    %194 = arith.divf %192, %193 : vector<16x1xf32>
    %195 = vector.broadcast %187 : vector<16x1xf32> to vector<16x128xf32>
    %196 = arith.subf %179, %195 : vector<16x128xf32>
    %cst_102 = arith.constant 9.99999974E-6 : f32
    %197 = vector.broadcast %cst_102 : f32 to vector<16x1xf32>
    %198 = arith.addf %194, %197 : vector<16x1xf32>
    %199 = math.rsqrt %198 : vector<16x1xf32>
    %200 = vector.broadcast %199 : vector<16x1xf32> to vector<16x128xf32>
    %201 = arith.mulf %196, %200 : vector<16x128xf32>
    %202 = vector.broadcast %181 : vector<1x128xf32> to vector<16x128xf32>
    %203 = arith.mulf %201, %202 : vector<16x128xf32>
    %204 = vector.broadcast %183 : vector<1x128xf32> to vector<16x128xf32>
    %205 = arith.addf %203, %204 : vector<16x128xf32>
    %206 = arith.truncf %205 : vector<16x128xf32> to vector<16x128xbf16>
    %c1_103 = arith.constant 1 : index
    %c0_104 = arith.constant 0 : index
    %c0_105 = arith.constant 0 : index
    %207 = vector.load %arg13[%c1_103, %c0_104, %c0_105] : memref<3x128x256xbf16, #tpu.memory_space<vmem>>, vector<1x128x256xbf16>
    %208 = vector.shape_cast %207 : vector<1x128x256xbf16> to vector<128x256xbf16>
    %cst_106 = arith.constant dense<0.000000e+00> : vector<16x256xf32>
    %209 = tpu.matmul %206, %208, %cst_106 {dimension_numbers = #tpu.dot_dimension_numbers<[1], [0], [0], [1], [0, 0, 1, 1], [], []>} : vector<16x128xbf16>, vector<128x256xbf16>, vector<16x256xf32> -> vector<16x256xf32>
    %c1_107 = arith.constant 1 : index
    %c0_108 = arith.constant 0 : index
    %c0_109 = arith.constant 0 : index
    %210 = vector.load %arg14[%c1_107, %c0_108, %c0_109] : memref<3x1x256xf32, #tpu.memory_space<vmem>>, vector<1x1x256xf32>
    %211 = vector.shape_cast %210 : vector<1x1x256xf32> to vector<1x256xf32>
    %212 = vector.broadcast %211 : vector<1x256xf32> to vector<16x256xf32>
    %213 = arith.addf %209, %212 : vector<16x256xf32>
    %cst_110 = arith.constant 0.000000e+00 : f32
    %214 = vector.broadcast %cst_110 : f32 to vector<16x256xf32>
    %215 = arith.maximumf %213, %214 : vector<16x256xf32>
    %216 = arith.truncf %215 : vector<16x256xf32> to vector<16x256xbf16>
    %c1_111 = arith.constant 1 : index
    %c0_112 = arith.constant 0 : index
    %c0_113 = arith.constant 0 : index
    %217 = vector.load %arg15[%c1_111, %c0_112, %c0_113] : memref<3x256x128xbf16, #tpu.memory_space<vmem>>, vector<1x256x128xbf16>
    %218 = vector.shape_cast %217 : vector<1x256x128xbf16> to vector<256x128xbf16>
    %cst_114 = arith.constant dense<0.000000e+00> : vector<16x128xf32>
    %219 = tpu.matmul %216, %218, %cst_114 {dimension_numbers = #tpu.dot_dimension_numbers<[1], [0], [0], [1], [0, 0, 1, 1], [], []>} : vector<16x256xbf16>, vector<256x128xbf16>, vector<16x128xf32> -> vector<16x128xf32>
    %c1_115 = arith.constant 1 : index
    %c0_116 = arith.constant 0 : index
    %c0_117 = arith.constant 0 : index
    %220 = vector.load %arg16[%c1_115, %c0_116, %c0_117] : memref<3x1x128xf32, #tpu.memory_space<vmem>>, vector<1x1x128xf32>
    %221 = vector.shape_cast %220 : vector<1x1x128xf32> to vector<1x128xf32>
    %222 = vector.broadcast %221 : vector<1x128xf32> to vector<16x128xf32>
    %223 = arith.addf %219, %222 : vector<16x128xf32>
    %224 = arith.addf %205, %223 : vector<16x128xf32>
    %c1_118 = arith.constant 1 : index
    %c0_119 = arith.constant 0 : index
    %c0_120 = arith.constant 0 : index
    %225 = vector.load %arg17[%c1_118, %c0_119, %c0_120] : memref<3x1x128xf32, #tpu.memory_space<vmem>>, vector<1x1x128xf32>
    %226 = vector.shape_cast %225 : vector<1x1x128xf32> to vector<1x128xf32>
    %c1_121 = arith.constant 1 : index
    %c0_122 = arith.constant 0 : index
    %c0_123 = arith.constant 0 : index
    %227 = vector.load %arg18[%c1_121, %c0_122, %c0_123] : memref<3x1x128xf32, #tpu.memory_space<vmem>>, vector<1x1x128xf32>
    %228 = vector.shape_cast %227 : vector<1x1x128xf32> to vector<1x128xf32>
    %cst_124 = arith.constant dense<0.000000e+00> : vector<16xf32>
    %229 = vector.multi_reduction <add>, %224, %cst_124 [1] : vector<16x128xf32> to vector<16xf32>
    %230 = vector.shape_cast %229 : vector<16xf32> to vector<16x1xf32>
    %cst_125 = arith.constant 1.280000e+02 : f32
    %231 = vector.broadcast %cst_125 : f32 to vector<16x1xf32>
    %232 = arith.divf %230, %231 : vector<16x1xf32>
    %233 = vector.broadcast %232 : vector<16x1xf32> to vector<16x128xf32>
    %234 = arith.subf %224, %233 : vector<16x128xf32>
    %235 = arith.mulf %234, %234 : vector<16x128xf32>
    %cst_126 = arith.constant dense<0.000000e+00> : vector<16xf32>
    %236 = vector.multi_reduction <add>, %235, %cst_126 [1] : vector<16x128xf32> to vector<16xf32>
    %237 = vector.shape_cast %236 : vector<16xf32> to vector<16x1xf32>
    %cst_127 = arith.constant 1.280000e+02 : f32
    %238 = vector.broadcast %cst_127 : f32 to vector<16x1xf32>
    %239 = arith.divf %237, %238 : vector<16x1xf32>
    %240 = vector.broadcast %232 : vector<16x1xf32> to vector<16x128xf32>
    %241 = arith.subf %224, %240 : vector<16x128xf32>
    %cst_128 = arith.constant 9.99999974E-6 : f32
    %242 = vector.broadcast %cst_128 : f32 to vector<16x1xf32>
    %243 = arith.addf %239, %242 : vector<16x1xf32>
    %244 = math.rsqrt %243 : vector<16x1xf32>
    %245 = vector.broadcast %244 : vector<16x1xf32> to vector<16x128xf32>
    %246 = arith.mulf %241, %245 : vector<16x128xf32>
    %247 = vector.broadcast %226 : vector<1x128xf32> to vector<16x128xf32>
    %248 = arith.mulf %246, %247 : vector<16x128xf32>
    %249 = vector.broadcast %228 : vector<1x128xf32> to vector<16x128xf32>
    %250 = arith.addf %248, %249 : vector<16x128xf32>
    %251 = arith.truncf %250 : vector<16x128xf32> to vector<16x128xbf16>
    %c2 = arith.constant 2 : index
    %c0_129 = arith.constant 0 : index
    %c0_130 = arith.constant 0 : index
    %252 = vector.load %arg7[%c2, %c0_129, %c0_130] : memref<3x128x384xbf16, #tpu.memory_space<vmem>>, vector<1x128x384xbf16>
    %253 = vector.shape_cast %252 : vector<1x128x384xbf16> to vector<128x384xbf16>
    %cst_131 = arith.constant dense<0.000000e+00> : vector<16x384xf32>
    %254 = tpu.matmul %251, %253, %cst_131 {dimension_numbers = #tpu.dot_dimension_numbers<[1], [0], [0], [1], [0, 0, 1, 1], [], []>} : vector<16x128xbf16>, vector<128x384xbf16>, vector<16x384xf32> -> vector<16x384xf32>
    %c2_132 = arith.constant 2 : index
    %c0_133 = arith.constant 0 : index
    %c0_134 = arith.constant 0 : index
    %255 = vector.load %arg8[%c2_132, %c0_133, %c0_134] : memref<3x1x384xf32, #tpu.memory_space<vmem>>, vector<1x1x384xf32>
    %256 = vector.shape_cast %255 : vector<1x1x384xf32> to vector<1x384xf32>
    %257 = vector.broadcast %256 : vector<1x384xf32> to vector<16x384xf32>
    %258 = arith.addf %254, %257 : vector<16x384xf32>
    %259 = vector.extract_strided_slice %258 {offsets = [0, 0], sizes = [16, 128], strides = [1, 1]} : vector<16x384xf32> to vector<16x128xf32>
    %cst_135 = arith.constant 2.500000e-01 : f32
    %260 = vector.broadcast %cst_135 : f32 to vector<16x128xf32>
    %261 = arith.mulf %259, %260 : vector<16x128xf32>
    %262 = arith.truncf %261 : vector<16x128xf32> to vector<16x128xbf16>
    %263 = vector.extract_strided_slice %258 {offsets = [0, 128], sizes = [16, 128], strides = [1, 1]} : vector<16x384xf32> to vector<16x128xf32>
    %264 = arith.truncf %263 : vector<16x128xf32> to vector<16x128xbf16>
    %265 = vector.extract_strided_slice %258 {offsets = [0, 256], sizes = [16, 128], strides = [1, 1]} : vector<16x384xf32> to vector<16x128xf32>
    %266 = arith.truncf %265 : vector<16x128xf32> to vector<16x128xbf16>
    %267 = vector.shape_cast %264 : vector<16x128xbf16> to vector<1x16x128xbf16>
    %268 = vector.broadcast %267 : vector<1x16x128xbf16> to vector<8x16x128xbf16>
    %269 = arith.mulf %268, %8 : vector<8x16x128xbf16>
    %270 = vector.shape_cast %269 : vector<8x16x128xbf16> to vector<128x128xbf16>
    %271 = vector.shape_cast %266 : vector<16x128xbf16> to vector<1x16x128xbf16>
    %272 = vector.broadcast %271 : vector<1x16x128xbf16> to vector<8x16x128xbf16>
    %273 = arith.mulf %272, %8 : vector<8x16x128xbf16>
    %274 = vector.shape_cast %273 : vector<8x16x128xbf16> to vector<128x128xbf16>
    %cst_136 = arith.constant dense<0.000000e+00> : vector<16x128xf32>
    %275 = tpu.matmul %262, %270, %cst_136 {dimension_numbers = #tpu.dot_dimension_numbers<[1], [1], [0], [0], [0, 0, 1, 0], [], []>} : vector<16x128xbf16>, vector<128x128xbf16>, vector<16x128xf32> -> vector<16x128xf32>
    %276 = arith.addf %275, %9 : vector<16x128xf32>
    %cst_137 = arith.constant dense<0xFF800000> : vector<16xf32>
    %277 = vector.multi_reduction <maximumf>, %276, %cst_137 [1] : vector<16x128xf32> to vector<16xf32>
    %278 = vector.shape_cast %277 : vector<16xf32> to vector<16x1xf32>
    %279 = vector.broadcast %278 : vector<16x1xf32> to vector<16x128xf32>
    %280 = arith.subf %276, %279 : vector<16x128xf32>
    %281 = math.exp %280 : vector<16x128xf32>
    %cst_138 = arith.constant dense<0.000000e+00> : vector<16x128xf32>
    %282 = tpu.matmul %281, %10, %cst_138 {dimension_numbers = #tpu.dot_dimension_numbers<[1], [0], [0], [1], [0, 0, 1, 1], [], []>} : vector<16x128xf32>, vector<128x128xf32>, vector<16x128xf32> -> vector<16x128xf32>
    %cst_139 = arith.constant 0.000000e+00 : f32
    %283 = vector.broadcast %cst_139 : f32 to vector<16x128xf32>
    %284 = arith.cmpf ogt, %282, %283 : vector<16x128xf32>
    %cst_140 = arith.constant 1.000000e+00 : f32
    %285 = vector.broadcast %cst_140 : f32 to vector<16x128xf32>
    %286 = arith.select %284, %282, %285 : vector<16x128xi1>, vector<16x128xf32>
    %287 = tpu.reciprocal %286 : vector<16x128xf32> -> vector<16x128xf32>
    %288 = arith.mulf %281, %287 : vector<16x128xf32>
    %289 = arith.truncf %288 : vector<16x128xf32> to vector<16x128xbf16>
    %cst_141 = arith.constant dense<0.000000e+00> : vector<16x128xf32>
    %290 = tpu.matmul %289, %274, %cst_141 {dimension_numbers = #tpu.dot_dimension_numbers<[1], [0], [0], [1], [0, 0, 1, 1], [], []>} : vector<16x128xbf16>, vector<128x128xbf16>, vector<16x128xf32> -> vector<16x128xf32>
    %291 = arith.truncf %290 : vector<16x128xf32> to vector<16x128xbf16>
    %c2_142 = arith.constant 2 : index
    %c0_143 = arith.constant 0 : index
    %c0_144 = arith.constant 0 : index
    %292 = vector.load %arg9[%c2_142, %c0_143, %c0_144] : memref<3x128x128xbf16, #tpu.memory_space<vmem>>, vector<1x128x128xbf16>
    %293 = vector.shape_cast %292 : vector<1x128x128xbf16> to vector<128x128xbf16>
    %cst_145 = arith.constant dense<0.000000e+00> : vector<16x128xf32>
    %294 = tpu.matmul %291, %293, %cst_145 {dimension_numbers = #tpu.dot_dimension_numbers<[1], [0], [0], [1], [0, 0, 1, 1], [], []>} : vector<16x128xbf16>, vector<128x128xbf16>, vector<16x128xf32> -> vector<16x128xf32>
    %c2_146 = arith.constant 2 : index
    %c0_147 = arith.constant 0 : index
    %c0_148 = arith.constant 0 : index
    %295 = vector.load %arg10[%c2_146, %c0_147, %c0_148] : memref<3x1x128xf32, #tpu.memory_space<vmem>>, vector<1x1x128xf32>
    %296 = vector.shape_cast %295 : vector<1x1x128xf32> to vector<1x128xf32>
    %297 = vector.broadcast %296 : vector<1x128xf32> to vector<16x128xf32>
    %298 = arith.addf %294, %297 : vector<16x128xf32>
    %299 = arith.addf %250, %298 : vector<16x128xf32>
    %c2_149 = arith.constant 2 : index
    %c0_150 = arith.constant 0 : index
    %c0_151 = arith.constant 0 : index
    %300 = vector.load %arg11[%c2_149, %c0_150, %c0_151] : memref<3x1x128xf32, #tpu.memory_space<vmem>>, vector<1x1x128xf32>
    %301 = vector.shape_cast %300 : vector<1x1x128xf32> to vector<1x128xf32>
    %c2_152 = arith.constant 2 : index
    %c0_153 = arith.constant 0 : index
    %c0_154 = arith.constant 0 : index
    %302 = vector.load %arg12[%c2_152, %c0_153, %c0_154] : memref<3x1x128xf32, #tpu.memory_space<vmem>>, vector<1x1x128xf32>
    %303 = vector.shape_cast %302 : vector<1x1x128xf32> to vector<1x128xf32>
    %cst_155 = arith.constant dense<0.000000e+00> : vector<16xf32>
    %304 = vector.multi_reduction <add>, %299, %cst_155 [1] : vector<16x128xf32> to vector<16xf32>
    %305 = vector.shape_cast %304 : vector<16xf32> to vector<16x1xf32>
    %cst_156 = arith.constant 1.280000e+02 : f32
    %306 = vector.broadcast %cst_156 : f32 to vector<16x1xf32>
    %307 = arith.divf %305, %306 : vector<16x1xf32>
    %308 = vector.broadcast %307 : vector<16x1xf32> to vector<16x128xf32>
    %309 = arith.subf %299, %308 : vector<16x128xf32>
    %310 = arith.mulf %309, %309 : vector<16x128xf32>
    %cst_157 = arith.constant dense<0.000000e+00> : vector<16xf32>
    %311 = vector.multi_reduction <add>, %310, %cst_157 [1] : vector<16x128xf32> to vector<16xf32>
    %312 = vector.shape_cast %311 : vector<16xf32> to vector<16x1xf32>
    %cst_158 = arith.constant 1.280000e+02 : f32
    %313 = vector.broadcast %cst_158 : f32 to vector<16x1xf32>
    %314 = arith.divf %312, %313 : vector<16x1xf32>
    %315 = vector.broadcast %307 : vector<16x1xf32> to vector<16x128xf32>
    %316 = arith.subf %299, %315 : vector<16x128xf32>
    %cst_159 = arith.constant 9.99999974E-6 : f32
    %317 = vector.broadcast %cst_159 : f32 to vector<16x1xf32>
    %318 = arith.addf %314, %317 : vector<16x1xf32>
    %319 = math.rsqrt %318 : vector<16x1xf32>
    %320 = vector.broadcast %319 : vector<16x1xf32> to vector<16x128xf32>
    %321 = arith.mulf %316, %320 : vector<16x128xf32>
    %322 = vector.broadcast %301 : vector<1x128xf32> to vector<16x128xf32>
    %323 = arith.mulf %321, %322 : vector<16x128xf32>
    %324 = vector.broadcast %303 : vector<1x128xf32> to vector<16x128xf32>
    %325 = arith.addf %323, %324 : vector<16x128xf32>
    %326 = arith.truncf %325 : vector<16x128xf32> to vector<16x128xbf16>
    %c2_160 = arith.constant 2 : index
    %c0_161 = arith.constant 0 : index
    %c0_162 = arith.constant 0 : index
    %327 = vector.load %arg13[%c2_160, %c0_161, %c0_162] : memref<3x128x256xbf16, #tpu.memory_space<vmem>>, vector<1x128x256xbf16>
    %328 = vector.shape_cast %327 : vector<1x128x256xbf16> to vector<128x256xbf16>
    %cst_163 = arith.constant dense<0.000000e+00> : vector<16x256xf32>
    %329 = tpu.matmul %326, %328, %cst_163 {dimension_numbers = #tpu.dot_dimension_numbers<[1], [0], [0], [1], [0, 0, 1, 1], [], []>} : vector<16x128xbf16>, vector<128x256xbf16>, vector<16x256xf32> -> vector<16x256xf32>
    %c2_164 = arith.constant 2 : index
    %c0_165 = arith.constant 0 : index
    %c0_166 = arith.constant 0 : index
    %330 = vector.load %arg14[%c2_164, %c0_165, %c0_166] : memref<3x1x256xf32, #tpu.memory_space<vmem>>, vector<1x1x256xf32>
    %331 = vector.shape_cast %330 : vector<1x1x256xf32> to vector<1x256xf32>
    %332 = vector.broadcast %331 : vector<1x256xf32> to vector<16x256xf32>
    %333 = arith.addf %329, %332 : vector<16x256xf32>
    %cst_167 = arith.constant 0.000000e+00 : f32
    %334 = vector.broadcast %cst_167 : f32 to vector<16x256xf32>
    %335 = arith.maximumf %333, %334 : vector<16x256xf32>
    %336 = arith.truncf %335 : vector<16x256xf32> to vector<16x256xbf16>
    %c2_168 = arith.constant 2 : index
    %c0_169 = arith.constant 0 : index
    %c0_170 = arith.constant 0 : index
    %337 = vector.load %arg15[%c2_168, %c0_169, %c0_170] : memref<3x256x128xbf16, #tpu.memory_space<vmem>>, vector<1x256x128xbf16>
    %338 = vector.shape_cast %337 : vector<1x256x128xbf16> to vector<256x128xbf16>
    %cst_171 = arith.constant dense<0.000000e+00> : vector<16x128xf32>
    %339 = tpu.matmul %336, %338, %cst_171 {dimension_numbers = #tpu.dot_dimension_numbers<[1], [0], [0], [1], [0, 0, 1, 1], [], []>} : vector<16x256xbf16>, vector<256x128xbf16>, vector<16x128xf32> -> vector<16x128xf32>
    %c2_172 = arith.constant 2 : index
    %c0_173 = arith.constant 0 : index
    %c0_174 = arith.constant 0 : index
    %340 = vector.load %arg16[%c2_172, %c0_173, %c0_174] : memref<3x1x128xf32, #tpu.memory_space<vmem>>, vector<1x1x128xf32>
    %341 = vector.shape_cast %340 : vector<1x1x128xf32> to vector<1x128xf32>
    %342 = vector.broadcast %341 : vector<1x128xf32> to vector<16x128xf32>
    %343 = arith.addf %339, %342 : vector<16x128xf32>
    %344 = arith.addf %325, %343 : vector<16x128xf32>
    %c2_175 = arith.constant 2 : index
    %c0_176 = arith.constant 0 : index
    %c0_177 = arith.constant 0 : index
    %345 = vector.load %arg17[%c2_175, %c0_176, %c0_177] : memref<3x1x128xf32, #tpu.memory_space<vmem>>, vector<1x1x128xf32>
    %346 = vector.shape_cast %345 : vector<1x1x128xf32> to vector<1x128xf32>
    %c2_178 = arith.constant 2 : index
    %c0_179 = arith.constant 0 : index
    %c0_180 = arith.constant 0 : index
    %347 = vector.load %arg18[%c2_178, %c0_179, %c0_180] : memref<3x1x128xf32, #tpu.memory_space<vmem>>, vector<1x1x128xf32>
    %348 = vector.shape_cast %347 : vector<1x1x128xf32> to vector<1x128xf32>
    %cst_181 = arith.constant dense<0.000000e+00> : vector<16xf32>
    %349 = vector.multi_reduction <add>, %344, %cst_181 [1] : vector<16x128xf32> to vector<16xf32>
    %350 = vector.shape_cast %349 : vector<16xf32> to vector<16x1xf32>
    %cst_182 = arith.constant 1.280000e+02 : f32
    %351 = vector.broadcast %cst_182 : f32 to vector<16x1xf32>
    %352 = arith.divf %350, %351 : vector<16x1xf32>
    %353 = vector.broadcast %352 : vector<16x1xf32> to vector<16x128xf32>
    %354 = arith.subf %344, %353 : vector<16x128xf32>
    %355 = arith.mulf %354, %354 : vector<16x128xf32>
    %cst_183 = arith.constant dense<0.000000e+00> : vector<16xf32>
    %356 = vector.multi_reduction <add>, %355, %cst_183 [1] : vector<16x128xf32> to vector<16xf32>
    %357 = vector.shape_cast %356 : vector<16xf32> to vector<16x1xf32>
    %cst_184 = arith.constant 1.280000e+02 : f32
    %358 = vector.broadcast %cst_184 : f32 to vector<16x1xf32>
    %359 = arith.divf %357, %358 : vector<16x1xf32>
    %360 = vector.broadcast %352 : vector<16x1xf32> to vector<16x128xf32>
    %361 = arith.subf %344, %360 : vector<16x128xf32>
    %cst_185 = arith.constant 9.99999974E-6 : f32
    %362 = vector.broadcast %cst_185 : f32 to vector<16x1xf32>
    %363 = arith.addf %359, %362 : vector<16x1xf32>
    %364 = math.rsqrt %363 : vector<16x1xf32>
    %365 = vector.broadcast %364 : vector<16x1xf32> to vector<16x128xf32>
    %366 = arith.mulf %361, %365 : vector<16x128xf32>
    %367 = vector.broadcast %346 : vector<1x128xf32> to vector<16x128xf32>
    %368 = arith.mulf %366, %367 : vector<16x128xf32>
    %369 = vector.broadcast %348 : vector<1x128xf32> to vector<16x128xf32>
    %370 = arith.addf %368, %369 : vector<16x128xf32>
    %371 = vector.shape_cast %370 : vector<16x128xf32> to vector<2x8x128xf32>
    %372 = vector.extract_strided_slice %371 {offsets = [0, 7, 0], sizes = [2, 1, 128], strides = [1, 1, 1]} : vector<2x8x128xf32> to vector<2x1x128xf32>
    %373 = vector.shape_cast %372 : vector<2x1x128xf32> to vector<2x128xf32>
    %c0_186 = arith.constant 0 : index
    %c0_187 = arith.constant 0 : index
    %374 = vector.load %arg19[%c0_186, %c0_187] : memref<1x128xf32, #tpu.memory_space<vmem>>, vector<1x128xf32>
    %375 = vector.broadcast %374 : vector<1x128xf32> to vector<2x128xf32>
    %376 = arith.mulf %373, %375 : vector<2x128xf32>
    %cst_188 = arith.constant dense<0.000000e+00> : vector<2xf32>
    %377 = vector.multi_reduction <add>, %376, %cst_188 [1] : vector<2x128xf32> to vector<2xf32>
    %378 = vector.shape_cast %377 : vector<2xf32> to vector<2x1xf32>
    %c0_189 = arith.constant 0 : index
    %c0_190 = arith.constant 0 : index
    %379 = vector.load %arg20[%c0_189, %c0_190] : memref<1x1xf32, #tpu.memory_space<vmem>>, vector<1x1xf32>
    %380 = vector.broadcast %379 : vector<1x1xf32> to vector<2x1xf32>
    %381 = arith.addf %378, %380 : vector<2x1xf32>
    %c0_191 = arith.constant 0 : index
    %c0_192 = arith.constant 0 : index
    %382 = vector.load %arg21[%c0_191, %c0_192] : memref<2x1xf32, #tpu.memory_space<vmem>>, vector<2x1xf32>
    tpu.vector_store %arg21[%c0_191, %c0_192], %381 {strides = array<i32>} : memref<2x1xf32, #tpu.memory_space<vmem>>, vector<2x1xf32>,
    return
  }
}

</mosaic_0001>

<llo_original>
// kernel: tpu_custom_call.1
$region0: #{tpu_custom_call.1}
  #allocation0 [shape = 'u32[]', space=smem, size = 0x4, offset = 0x4, fixed_abs, tag = 'smem constant byte address 0x4 - core index']
  #allocation1 [shape = 'u32[144,128]{1,0:T(1,128)}', space=vmem, size = 0x12000, scoped, tag = 'internal scratch']
  #allocation2 [shape = 'f32[1,1]{1,0:T(1,128)S(1)}', space=vmem, size = 0x200, scoped, tag = 'scoped memory for tpu_custom_call.1']
  %s0 = inlined_call_operand.vmem [shape: f32[16,8], index: 0, kind: input, shape index: {}]
  %s1 = inlined_call_operand.hbm [shape: f32[8,128], index: 1, kind: input, shape index: {}]
  %s2 = inlined_call_operand.hbm [shape: f32[1,128], index: 2, kind: input, shape index: {}]
  %s3 = inlined_call_operand.vmem [shape: f32[16,128], index: 3, kind: input, shape index: {}]
  %s4 = inlined_call_operand.hbm [shape: bf16[8,16,128], index: 4, kind: input, shape index: {}]
  %s5 = inlined_call_operand.vmem [shape: f32[16,128], index: 5, kind: input, shape index: {}]
  %s6 = inlined_call_operand.hbm [shape: f32[128,128], index: 6, kind: input, shape index: {}]
  %s7 = inlined_call_operand.hbm [shape: bf16[3,128,384], index: 7, kind: input, shape index: {}]
  %s8 = inlined_call_operand.hbm [shape: f32[3,1,384], index: 8, kind: input, shape index: {}]
  %s9 = inlined_call_operand.hbm [shape: bf16[3,128,128], index: 9, kind: input, shape index: {}]
  %s10 = inlined_call_operand.vmem [shape: f32[3,1,128], index: 10, kind: input, shape index: {}]
  %s11 = inlined_call_operand.vmem [shape: f32[3,1,128], index: 11, kind: input, shape index: {}]
  %s12 = inlined_call_operand.vmem [shape: f32[3,1,128], index: 12, kind: input, shape index: {}]
  %s13 = inlined_call_operand.hbm [shape: bf16[3,128,256], index: 13, kind: input, shape index: {}]
  %s14 = inlined_call_operand.vmem [shape: f32[3,1,256], index: 14, kind: input, shape index: {}]
  %s15 = inlined_call_operand.hbm [shape: bf16[3,256,128], index: 15, kind: input, shape index: {}]
  %s16 = inlined_call_operand.vmem [shape: f32[3,1,128], index: 16, kind: input, shape index: {}]
  %s17 = inlined_call_operand.vmem [shape: f32[3,1,128], index: 17, kind: input, shape index: {}]
  %s18 = inlined_call_operand.vmem [shape: f32[3,1,128], index: 18, kind: input, shape index: {}]
  %s19 = inlined_call_operand.vmem [shape: f32[1,128], index: 19, kind: input, shape index: {}]
  %s20 = inlined_call_operand.<no memory space> [shape: f32[1,1], index: 20, kind: input, shape index: {}]
  %s21 = inlined_call_operand.vmem [shape: f32[2,1], index: 21, kind: output, shape index: {}]
  %s22 = sld [smem:[#allocation0]]
  $region130: #{tpu_custom_call.1} parent=0
    _
  %s24 = ssub.s32 1, %s22
  %s25 = scalar_select 0, %s24, %s22
  %v26 = vstv %s20
  %27 = vst [vmem:[#allocation2] sm:$0x1] %v26
  $region1: #{tpu_custom_call.1} parent=0
    #allocation3 [shape = 'u8[4096]{0}', space=vmem, size = 0x1000, scoped, tag = 'input window, operand 1, single buffered']
    #allocation4 [shape = 's32[1]{0}', space=sflag, size = 0x4, scoped, tag = 'scoped memory for tpu_custom_call.1']
    #allocation5 [shape = 'u8[512]{0}', space=vmem, size = 0x400, scoped, tag = 'input window, operand 2, single buffered']
    #allocation6 [shape = 's32[1]{0}', space=sflag, size = 0x4, scoped, tag = 'scoped memory for tpu_custom_call.1']
    #allocation7 [shape = 'u8[32768]{0}', space=vmem, size = 0x8000, scoped, tag = 'input window, operand 4, single buffered']
    #allocation8 [shape = 'u8[65536]{0}', space=vmem, size = 0x10000, scoped, tag = 'input window, operand 6, single buffered']
    #allocation9 [shape = 's32[1]{0}', space=sflag, size = 0x4, scoped, tag = 'scoped memory for tpu_custom_call.1']
    #allocation10 [shape = 'u8[294912]{0}', space=vmem, size = 0x48000, scoped, tag = 'input window, operand 7, single buffered']
    #allocation11 [shape = 'u8[4608]{0}', space=vmem, size = 0x1400, scoped, tag = 'input window, operand 8, single buffered']
    #allocation12 [shape = 's32[1]{0}', space=sflag, size = 0x4, scoped, tag = 'scoped memory for tpu_custom_call.1']
    #allocation13 [shape = 'u8[98304]{0}', space=vmem, size = 0x18000, scoped, tag = 'input window, operand 9, single buffered']
    #allocation14 [shape = 'u8[196608]{0}', space=vmem, size = 0x30000, scoped, tag = 'input window, operand 13, single buffered']
    #allocation15 [shape = 's32[1]{0}', space=sflag, size = 0x4, scoped, tag = 'scoped memory for tpu_custom_call.1']
    #allocation16 [shape = 'u8[196608]{0}', space=vmem, size = 0x30000, scoped, tag = 'input window, operand 15, single buffered']
    %28 = vsyncpa [#allocation4], 0
    %29 = vsyncpa [#allocation6], 0
    %30 = vsyncpa [#allocation9], 0
    %31 = vsyncpa [#allocation12], 0
    %32 = vsyncpa [#allocation15], 0
    // Predicated region
    $region2: #{tpu_custom_call.1} parent=1 // pred_check
      _
    $region3: #{tpu_custom_call.1} parent=1 // pred_check_branch
      %34 = sbr.rel (0) target = $region5
    $region4: #{tpu_custom_call.1} parent=1 // pred_region
      _
    $region5: #{tpu_custom_call.1} parent=1 // pred_fallthru
      _
    // Predicated region
    $region6: #{tpu_custom_call.1} parent=1 // pred_check
      _
    $region7: #{tpu_custom_call.1} parent=1 // pred_check_branch
      %36 = sbr.rel (0) target = $region9
    $region8: #{tpu_custom_call.1} parent=1 // pred_region
      %s38 = ssub.s32 128, 128
      %39 = vsyncadd [#allocation4], %s38
      %s41 = sshll.u32 [#allocation3], 4
      %s42 = int_to_ptr.vmem [resolvable:$true] %s41
      %44 = dma.hbm_to_vmem [thread:$0]  %s1, 128, %s42, [#allocation4]
    $region9: #{tpu_custom_call.1} parent=1 // pred_fallthru
      _
    // Predicated region
    $region10: #{tpu_custom_call.1} parent=1 // pred_check
      _
    $region11: #{tpu_custom_call.1} parent=1 // pred_check_branch
      %46 = sbr.rel (0) target = $region13
    $region12: #{tpu_custom_call.1} parent=1 // pred_region
      %s48 = ssub.s32 16, 16
      %49 = vsyncadd [#allocation6], %s48
      %s51 = sshll.u32 [#allocation5], 4
      %s52 = int_to_ptr.vmem [resolvable:$true] %s51
      %54 = dma.hbm_to_vmem [thread:$0]  %s2, 16, %s52, [#allocation6]
    $region13: #{tpu_custom_call.1} parent=1 // pred_fallthru
      _
    // Predicated region
    $region14: #{tpu_custom_call.1} parent=1 // pred_check
      _
    $region15: #{tpu_custom_call.1} parent=1 // pred_check_branch
      %56 = sbr.rel (0) target = $region17
    $region16: #{tpu_custom_call.1} parent=1 // pred_region
      _
    $region17: #{tpu_custom_call.1} parent=1 // pred_fallthru
      _
    // Predicated region
    $region18: #{tpu_custom_call.1} parent=1 // pred_check
      _
    $region19: #{tpu_custom_call.1} parent=1 // pred_check_branch
      %58 = sbr.rel (0) target = $region21
    $region20: #{tpu_custom_call.1} parent=1 // pred_region
      %s60 = ssub.s32 1024, 1024
      %61 = vsyncadd [#allocation6], %s60
      %s62 = sshll.u32 [#allocation7], 4
      %s63 = int_to_ptr.vmem [resolvable:$true] %s62
      %68 = dma.hbm_to_vmem [thread:$0]  %s4, 1024, %s63, [#allocation6], 64, 64, 4
    $region21: #{tpu_custom_call.1} parent=1 // pred_fallthru
      _
    // Predicated region
    $region22: #{tpu_custom_call.1} parent=1 // pred_check
      _
    $region23: #{tpu_custom_call.1} parent=1 // pred_check_branch
      %70 = sbr.rel (0) target = $region25
    $region24: #{tpu_custom_call.1} parent=1 // pred_region
      _
    $region25: #{tpu_custom_call.1} parent=1 // pred_fallthru
      _
    // Predicated region
    $region26: #{tpu_custom_call.1} parent=1 // pred_check
      _
    $region27: #{tpu_custom_call.1} parent=1 // pred_check_branch
      %72 = sbr.rel (0) target = $region29
    $region28: #{tpu_custom_call.1} parent=1 // pred_region
      %s74 = ssub.s32 2048, 2048
      %75 = vsyncadd [#allocation9], %s74
      %s76 = sshll.u32 [#allocation8], 4
      %s77 = int_to_ptr.vmem [resolvable:$true] %s76
      %82 = dma.hbm_to_vmem [thread:$0]  %s6, 2048, %s77, [#allocation9], 128, 128, 8
    $region29: #{tpu_custom_call.1} parent=1 // pred_fallthru
      _
    // Predicated region
    $region30: #{tpu_custom_call.1} parent=1 // pred_check
      _
    $region31: #{tpu_custom_call.1} parent=1 // pred_check_branch
      %84 = sbr.rel (0) target = $region33
    $region32: #{tpu_custom_call.1} parent=1 // pred_region
      %s86 = ssub.s32 9216, 9216
      %87 = vsyncadd [#allocation9], %s86
      %s88 = sshll.u32 [#allocation10], 4
      %s89 = int_to_ptr.vmem [resolvable:$true] %s88
      %94 = dma.hbm_to_vmem [thread:$0]  %s7, 9216, %s89, [#allocation9], 192, 192, 12
    $region33: #{tpu_custom_call.1} parent=1 // pred_fallthru
      _
    // Predicated region
    $region34: #{tpu_custom_call.1} parent=1 // pred_check
      _
    $region35: #{tpu_custom_call.1} parent=1 // pred_check_branch
      %96 = sbr.rel (0) target = $region37
    $region36: #{tpu_custom_call.1} parent=1 // pred_region
      %s98 = ssub.s32 144, 144
      %99 = vsyncadd [#allocation12], %s98
      %s100 = sshll.u32 [#allocation11], 4
      %s101 = int_to_ptr.vmem [resolvable:$true] %s100
      %106 = dma.hbm_to_vmem [thread:$0]  %s8, 144, %s101, [#allocation12], 48, 48, 3
    $region37: #{tpu_custom_call.1} parent=1 // pred_fallthru
      _
    // Predicated region
    $region38: #{tpu_custom_call.1} parent=1 // pred_check
      _
    $region39: #{tpu_custom_call.1} parent=1 // pred_check_branch
      %108 = sbr.rel (0) target = $region41
    $region40: #{tpu_custom_call.1} parent=1 // pred_region
      %s110 = ssub.s32 3072, 3072
      %111 = vsyncadd [#allocation12], %s110
      %s112 = sshll.u32 [#allocation13], 4
      %s113 = int_to_ptr.vmem [resolvable:$true] %s112
      %118 = dma.hbm_to_vmem [thread:$0]  %s9, 3072, %s113, [#allocation12], 64, 64, 4
    $region41: #{tpu_custom_call.1} parent=1 // pred_fallthru
      _
    // Predicated region
    $region42: #{tpu_custom_call.1} parent=1 // pred_check
      _
    $region43: #{tpu_custom_call.1} parent=1 // pred_check_branch
      %120 = sbr.rel (0) target = $region45
    $region44: #{tpu_custom_call.1} parent=1 // pred_region
      _
    $region45: #{tpu_custom_call.1} parent=1 // pred_fallthru
      _
    // Predicated region
    $region46: #{tpu_custom_call.1} parent=1 // pred_check
      _
    $region47: #{tpu_custom_call.1} parent=1 // pred_check_branch
      %122 = sbr.rel (0) target = $region49
    $region48: #{tpu_custom_call.1} parent=1 // pred_region
      _
    $region49: #{tpu_custom_call.1} parent=1 // pred_fallthru
      _
    // Predicated region
    $region50: #{tpu_custom_call.1} parent=1 // pred_check
      _
    $region51: #{tpu_custom_call.1} parent=1 // pred_check_branch
      %124 = sbr.rel (0) target = $region53
    $region52: #{tpu_custom_call.1} parent=1 // pred_region
      _
    $region53: #{tpu_custom_call.1} parent=1 // pred_fallthru
      _
    // Predicated region
    $region54: #{tpu_custom_call.1} parent=1 // pred_check
      _
    $region55: #{tpu_custom_call.1} parent=1 // pred_check_branch
      %126 = sbr.rel (0) target = $region57
    $region56: #{tpu_custom_call.1} parent=1 // pred_region
      %s128 = ssub.s32 6144, 6144
      %129 = vsyncadd [#allocation15], %s128
      %s130 = sshll.u32 [#allocation14], 4
      %s131 = int_to_ptr.vmem [resolvable:$true] %s130
      %136 = dma.hbm_to_vmem [thread:$0]  %s13, 6144, %s131, [#allocation15], 128, 128, 8
    $region57: #{tpu_custom_call.1} parent=1 // pred_fallthru
      _
    // Predicated region
    $region58: #{tpu_custom_call.1} parent=1 // pred_check
      _
    $region59: #{tpu_custom_call.1} parent=1 // pred_check_branch
      %138 = sbr.rel (0) target = $region61
    $region60: #{tpu_custom_call.1} parent=1 // pred_region
      _
    $region61: #{tpu_custom_call.1} parent=1 // pred_fallthru
      _
    // Predicated region
    $region62: #{tpu_custom_call.1} parent=1 // pred_check
      _
    $region63: #{tpu_custom_call.1} parent=1 // pred_check_branch
      %140 = sbr.rel (0) target = $region65
    $region64: #{tpu_custom_call.1} parent=1 // pred_region
      %s142 = ssub.s32 6144, 6144
      %143 = vsyncadd [#allocation15], %s142
      %s144 = sshll.u32 [#allocation16], 4
      %s145 = int_to_ptr.vmem [resolvable:$true] %s144
      %150 = dma.hbm_to_vmem [thread:$0]  %s15, 6144, %s145, [#allocation15], 64, 64, 4
    $region65: #{tpu_custom_call.1} parent=1 // pred_fallthru
      _
    // Predicated region
    $region66: #{tpu_custom_call.1} parent=1 // pred_check
      _
    $region67: #{tpu_custom_call.1} parent=1 // pred_check_branch
      %152 = sbr.rel (0) target = $region69
    $region68: #{tpu_custom_call.1} parent=1 // pred_region
      _
    $region69: #{tpu_custom_call.1} parent=1 // pred_fallthru
      _
    // Predicated region
    $region70: #{tpu_custom_call.1} parent=1 // pred_check
      _
    $region71: #{tpu_custom_call.1} parent=1 // pred_check_branch
      %154 = sbr.rel (0) target = $region73
    $region72: #{tpu_custom_call.1} parent=1 // pred_region
      _
    $region73: #{tpu_custom_call.1} parent=1 // pred_fallthru
      _
    // Predicated region
    $region74: #{tpu_custom_call.1} parent=1 // pred_check
      _
    $region75: #{tpu_custom_call.1} parent=1 // pred_check_branch
      %156 = sbr.rel (0) target = $region77
    $region76: #{tpu_custom_call.1} parent=1 // pred_region
      _
    $region77: #{tpu_custom_call.1} parent=1 // pred_fallthru
      _
    // Predicated region
    $region78: #{tpu_custom_call.1} parent=1 // pred_check
      _
    $region79: #{tpu_custom_call.1} parent=1 // pred_check_branch
      %158 = sbr.rel (0) target = $region81
    $region80: #{tpu_custom_call.1} parent=1 // pred_region
      _
    $region81: #{tpu_custom_call.1} parent=1 // pred_fallthru
      _
    // Predicated region
    $region82: #{tpu_custom_call.1} parent=1 // pred_check
      _
    $region83: #{tpu_custom_call.1} parent=1 // pred_check_branch
      %160 = sbr.rel (0) target = $region85
    $region84: #{tpu_custom_call.1} parent=1 // pred_region
      _
    $region85: #{tpu_custom_call.1} parent=1 // pred_fallthru
      _
    // Predicated region
    $region86: #{tpu_custom_call.1} parent=1 // pred_check
      _
    $region87: #{tpu_custom_call.1} parent=1 // pred_check_branch
      %162 = sbr.rel (0) target = $region89
    $region88: #{tpu_custom_call.1} parent=1 // pred_region
      %163 = dma.done [#allocation4], 128
    $region89: #{tpu_custom_call.1} parent=1 // pred_fallthru
      _
    // Predicated region
    $region90: #{tpu_custom_call.1} parent=1 // pred_check
      _
    $region91: #{tpu_custom_call.1} parent=1 // pred_check_branch
      %165 = sbr.rel (0) target = $region93
    $region92: #{tpu_custom_call.1} parent=1 // pred_region
      %166 = dma.done [#allocation6], 16
    $region93: #{tpu_custom_call.1} parent=1 // pred_fallthru
      _
    // Predicated region
    $region94: #{tpu_custom_call.1} parent=1 // pred_check
      _
    $region95: #{tpu_custom_call.1} parent=1 // pred_check_branch
      %168 = sbr.rel (0) target = $region97
    $region96: #{tpu_custom_call.1} parent=1 // pred_region
      %169 = dma.done [#allocation6], 1024
    $region97: #{tpu_custom_call.1} parent=1 // pred_fallthru
      _
    // Predicated region
    $region98: #{tpu_custom_call.1} parent=1 // pred_check
      _
    $region99: #{tpu_custom_call.1} parent=1 // pred_check_branch
      %171 = sbr.rel (0) target = $region101
    $region100: #{tpu_custom_call.1} parent=1 // pred_region
      %172 = dma.done [#allocation9], 2048
    $region101: #{tpu_custom_call.1} parent=1 // pred_fallthru
      _
    // Predicated region
    $region102: #{tpu_custom_call.1} parent=1 // pred_check
      _
    $region103: #{tpu_custom_call.1} parent=1 // pred_check_branch
      %174 = sbr.rel (0) target = $region105
    $region104: #{tpu_custom_call.1} parent=1 // pred_region
      %175 = dma.done [#allocation9], 9216
    $region105: #{tpu_custom_call.1} parent=1 // pred_fallthru
      _
    // Predicated region
    $region106: #{tpu_custom_call.1} parent=1 // pred_check
      _
    $region107: #{tpu_custom_call.1} parent=1 // pred_check_branch
      %177 = sbr.rel (0) target = $region109
    $region108: #{tpu_custom_call.1} parent=1 // pred_region
      %178 = dma.done [#allocation12], 144
    $region109: #{tpu_custom_call.1} parent=1 // pred_fallthru
      _
    // Predicated region
    $region110: #{tpu_custom_call.1} parent=1 // pred_check
      _
    $region111: #{tpu_custom_call.1} parent=1 // pred_check_branch
      %180 = sbr.rel (0) target = $region113
    $region112: #{tpu_custom_call.1} parent=1 // pred_region
      %181 = dma.done [#allocation12], 3072
    $region113: #{tpu_custom_call.1} parent=1 // pred_fallthru
      _
    // Predicated region
    $region114: #{tpu_custom_call.1} parent=1 // pred_check
      _
    $region115: #{tpu_custom_call.1} parent=1 // pred_check_branch
      %183 = sbr.rel (0) target = $region117
    $region116: #{tpu_custom_call.1} parent=1 // pred_region
      %184 = dma.done [#allocation15], 6144
    $region117: #{tpu_custom_call.1} parent=1 // pred_fallthru
      _
    // Predicated region
    $region118: #{tpu_custom_call.1} parent=1 // pred_check
      _
    $region119: #{tpu_custom_call.1} parent=1 // pred_check_branch
      %186 = sbr.rel (0) target = $region121
    $region120: #{tpu_custom_call.1} parent=1 // pred_region
      %187 = dma.done [#allocation15], 6144
    $region121: #{tpu_custom_call.1} parent=1 // pred_fallthru
      _
    %v189 = vld [vmem:[%s0] sm:$0xff]
    %v190 = vld [vmem:[%s0 + $0x8] sm:$0xff]
    %v191 = vld [vmem:[#allocation3] sm:$0xff]
    %v192 = vld [vmem:[#allocation5] sm:$0x1]
    %v194 = vlaneseq
    %v195 = vshrl.u32 %v194, 7
    %v196 = vsub.s32 0, %v195
    %v197 = vrot.slane %v192, %v196
    %vm199 = vcmask 64512
    %v201 = vsel %vm199, %v189, 0
    %v204 = vsel %vm199, %v190, 0
    %206 = vmatprep.subr.mxu0 0.0
    %207 = vmatpush1.msra.mxu0 0.0
    %208 = vmatprep.subr.mxu0 0.0
    %209 = vmatpush1.msra.mxu0 0.0
    %210 = vmatprep.subr.mxu0 0.0
    %211 = vmatpush1.msra.mxu0 0.0
    %212 = vmatprep.subr.mxu0 0.0
    %213 = vmatpush1.msra.mxu0 0.0
    %214 = vmatprep.subr.mxu0 0.0
    %215 = vmatpush1.msra.mxu0 0.0
    %216 = vmatprep.subr.mxu0 0.0
    %217 = vmatpush1.msra.mxu0 0.0
    %218 = vmatprep.subr.mxu0 0.0
    %219 = vmatpush1.msra.mxu0 0.0
    %220 = vmatprep.subr.mxu0 0.0
    %221 = vmatpush1.msra.mxu0 0.0
    %222 = vmatprep.subr.mxu0 0.0
    %223 = vmatpush1.msra.mxu0 0.0
    %224 = vmatprep.subr.mxu0 0.0
    %225 = vmatpush1.msra.mxu0 0.0
    %226 = vmatprep.subr.mxu0 0.0
    %227 = vmatpush1.msra.mxu0 0.0
    %228 = vmatprep.subr.mxu0 0.0
    %229 = vmatpush1.msra.mxu0 0.0
    %230 = vmatprep.subr.mxu0 0.0
    %231 = vmatpush1.msra.mxu0 0.0
    %232 = vmatprep.subr.mxu0 0.0
    %233 = vmatpush1.msra.mxu0 0.0
    %234 = vmatprep.subr.mxu0 0.0
    %235 = vmatpush1.msra.mxu0 0.0
    %236 = vmatprep.subr.mxu0 0.0
    %237 = vmatpush1.msra.mxu0 %v191
    %238 = vmatprep.subr.mxu0 0.0
    %239 = vmatpush2.msra.mxu0 0.0
    %240 = vmatprep.subr.mxu0 0.0
    %241 = vmatpush2.msra.mxu0 0.0
    %242 = vmatprep.subr.mxu0 0.0
    %243 = vmatpush2.msra.mxu0 0.0
    %244 = vmatprep.subr.mxu0 0.0
    %245 = vmatpush2.msra.mxu0 0.0
    %246 = vmatprep.subr.mxu0 0.0
    %247 = vmatpush2.msra.mxu0 0.0
    %248 = vmatprep.subr.mxu0 0.0
    %249 = vmatpush2.msra.mxu0 0.0
    %250 = vmatprep.subr.mxu0 0.0
    %251 = vmatpush2.msra.mxu0 0.0
    %252 = vmatprep.subr.mxu0 0.0
    %253 = vmatpush2.msra.mxu0 0.0
    %254 = vmatprep.subr.mxu0 0.0
    %255 = vmatpush2.msra.mxu0 0.0
    %256 = vmatprep.subr.mxu0 0.0
    %257 = vmatpush2.msra.mxu0 0.0
    %258 = vmatprep.subr.mxu0 0.0
    %259 = vmatpush2.msra.mxu0 0.0
    %260 = vmatprep.subr.mxu0 0.0
    %261 = vmatpush2.msra.mxu0 0.0
    %262 = vmatprep.subr.mxu0 0.0
    %263 = vmatpush2.msra.mxu0 0.0
    %264 = vmatprep.subr.mxu0 0.0
    %265 = vmatpush2.msra.mxu0 0.0
    %266 = vmatprep.subr.mxu0 0.0
    %267 = vmatpush2.msra.mxu0 0.0
    %268 = vmatprep.subr.mxu0 0.0
    %269 = vmatpush2.msra.mxu0 0.0
    %270 = vmatprep.mubr.f32.mxu0 0.0
    %271 = vmatmul.mubr.f32.gmra.mxu0 %v201
    %v272 = vpop.f32.mrf.mxu0
    %v273 = vadd.f32 %v197, %v272
    %v274 = vpop.f32.mrf.mxu0
    %275 = vmatprep.mubr.f32.mxu0 0.0
    %276 = vmatmul.mubr.f32.gmra.mxu0 %v204
    %v277 = vpop.f32.mrf.mxu0
    %v278 = vadd.f32 %v197, %v277
    %v279 = vpop.f32.mrf.mxu0
    %280 = vdwg.mxu0
    %v281 = vld [vmem:[%s3] sm:$0xff]
    %v282 = vld [vmem:[%s3 + $0x8] sm:$0xff]
    %v283 = vadd.f32 %v273, %v281
    %v284 = vadd.f32 %v278, %v282
    %v285 = vld [vmem:[#allocation7] sm:$0xf]
    %v286 = vld [vmem:[#allocation7 + $0x4] sm:$0xf]
    %v287 = vld [vmem:[#allocation7 + $0x8] sm:$0xf]
    %v288 = vld [vmem:[#allocation7 + $0xc] sm:$0xf]
    %v289 = vld [vmem:[#allocation7 + $0x10] sm:$0xf]
    %v290 = vld [vmem:[#allocation7 + $0x14] sm:$0xf]
    %v291 = vld [vmem:[#allocation7 + $0x18] sm:$0xf]
    %v292 = vld [vmem:[#allocation7 + $0x1c] sm:$0xf]
    %v293 = vld [vmem:[#allocation7 + $0x20] sm:$0xf]
    %v294 = vld [vmem:[#allocation7 + $0x24] sm:$0xf]
    %v295 = vld [vmem:[#allocation7 + $0x28] sm:$0xf]
    %v296 = vld [vmem:[#allocation7 + $0x2c] sm:$0xf]
    %v297 = vld [vmem:[#allocation7 + $0x30] sm:$0xf]
    %v298 = vld [vmem:[#allocation7 + $0x34] sm:$0xf]
    %v299 = vld [vmem:[#allocation7 + $0x38] sm:$0xf]
    %v300 = vld [vmem:[#allocation7 + $0x3c] sm:$0xf]
    %v301 = vld [vmem:[%s5] sm:$0xff]
    %v302 = vld [vmem:[%s5 + $0x8] sm:$0xff]
    %v303 = vld [vmem:[#allocation8] sm:$0xff]
    %v304 = vld [vmem:[#allocation8 + $0x8] sm:$0xff]
    %v305 = vld [vmem:[#allocation8 + $0x10] sm:$0xff]
    %v306 = vld [vmem:[#allocation8 + $0x18] sm:$0xff]
    %v307 = vld [vmem:[#allocation8 + $0x20] sm:$0xff]
    %v308 = vld [vmem:[#allocation8 + $0x28] sm:$0xff]
    %v309 = vld [vmem:[#allocation8 + $0x30] sm:$0xff]
    %v310 = vld [vmem:[#allocation8 + $0x38] sm:$0xff]
    %v311 = vld [vmem:[#allocation8 + $0x40] sm:$0xff]
    %v312 = vld [vmem:[#allocation8 + $0x48] sm:$0xff]
    %v313 = vld [vmem:[#allocation8 + $0x50] sm:$0xff]
    %v314 = vld [vmem:[#allocation8 + $0x58] sm:$0xff]
    %v315 = vld [vmem:[#allocation8 + $0x60] sm:$0xff]
    %v316 = vld [vmem:[#allocation8 + $0x68] sm:$0xff]
    %v317 = vld [vmem:[#allocation8 + $0x70] sm:$0xff]
    %v318 = vld [vmem:[#allocation8 + $0x78] sm:$0xff]
    %v319 = vpack.c.bf16 %v284, %v283
    %v320 = vld [vmem:[#allocation10] sm:$0xff]
    %v321 = vld [vmem:[#allocation10 + $0x8] sm:$0xf]
    %v322 = vld [vmem:[#allocation10 + $0xc] sm:$0xff]
    %v323 = vld [vmem:[#allocation10 + $0x14] sm:$0xf]
    %v324 = vld [vmem:[#allocation10 + $0x18] sm:$0xff]
    %v325 = vld [vmem:[#allocation10 + $0x20] sm:$0xf]
    %v326 = vld [vmem:[#allocation10 + $0x24] sm:$0xff]
    %v327 = vld [vmem:[#allocation10 + $0x2c] sm:$0xf]
    %v328 = vld [vmem:[#allocation10 + $0x30] sm:$0xff]
    %v329 = vld [vmem:[#allocation10 + $0x38] sm:$0xf]
    %v330 = vld [vmem:[#allocation10 + $0x3c] sm:$0xff]
    %v331 = vld [vmem:[#allocation10 + $0x44] sm:$0xf]
    %v332 = vld [vmem:[#allocation10 + $0x48] sm:$0xff]
    %v333 = vld [vmem:[#allocation10 + $0x50] sm:$0xf]
    %v334 = vld [vmem:[#allocation10 + $0x54] sm:$0xff]
    %v335 = vld [vmem:[#allocation10 + $0x5c] sm:$0xf]
    %v336 = vld [vmem:[#allocation10 + $0x60] sm:$0xff]
    %v337 = vld [vmem:[#allocation10 + $0x68] sm:$0xf]
    %v338 = vld [vmem:[#allocation10 + $0x6c] sm:$0xff]
    %v339 = vld [vmem:[#allocation10 + $0x74] sm:$0xf]
    %v340 = vld [vmem:[#allocation10 + $0x78] sm:$0xff]
    %v341 = vld [vmem:[#allocation10 + $0x80] sm:$0xf]
    %v342 = vld [vmem:[#allocation10 + $0x84] sm:$0xff]
    %v343 = vld [vmem:[#allocation10 + $0x8c] sm:$0xf]
    %v344 = vld [vmem:[#allocation10 + $0x90] sm:$0xff]
    %v345 = vld [vmem:[#allocation10 + $0x98] sm:$0xf]
    %v346 = vld [vmem:[#allocation10 + $0x9c] sm:$0xff]
    %v347 = vld [vmem:[#allocation10 + $0xa4] sm:$0xf]
    %v348 = vld [vmem:[#allocation10 + $0xa8] sm:$0xff]
    %v349 = vld [vmem:[#allocation10 + $0xb0] sm:$0xf]
    %v350 = vld [vmem:[#allocation10 + $0xb4] sm:$0xff]
    %v351 = vld [vmem:[#allocation10 + $0xbc] sm:$0xf]
    %v352 = vld [vmem:[#allocation11] sm:$0x7]
    %v354 = vlaneseq
    %v355 = vshrl.u32 %v354, 7
    %v356 = vsub.s32 0, %v355
    %v357 = vrot.slane %v352, %v356
    %v358 = vlaneseq
    %v359 = vshrl.u32 %v358, 7
    %v360 = vsub.s32 1, %v359
    %v361 = vrot.slane %v352, %v360
    %v362 = vlaneseq
    %v363 = vshrl.u32 %v362, 7
    %v364 = vsub.s32 2, %v363
    %v365 = vrot.slane %v352, %v364
    %v401 = vunpack.c.l.b16 %v320
    %v402 = vunpack.c.h.b16 %v320
    %v403 = vunpack.c.l.b16 %v321
    %v404 = vunpack.c.l.b16 %v322
    %v405 = vunpack.c.h.b16 %v322
    %v406 = vunpack.c.l.b16 %v323
    %v407 = vunpack.c.l.b16 %v324
    %v408 = vunpack.c.h.b16 %v324
    %v409 = vunpack.c.l.b16 %v325
    %v410 = vunpack.c.l.b16 %v326
    %v411 = vunpack.c.h.b16 %v326
    %v412 = vunpack.c.l.b16 %v327
    %v413 = vunpack.c.l.b16 %v328
    %v414 = vunpack.c.h.b16 %v328
    %v415 = vunpack.c.l.b16 %v329
    %v416 = vunpack.c.l.b16 %v330
    %v417 = vunpack.c.h.b16 %v330
    %v418 = vunpack.c.l.b16 %v331
    %v419 = vunpack.c.l.b16 %v332
    %v420 = vunpack.c.h.b16 %v332
    %v421 = vunpack.c.l.b16 %v333
    %v422 = vunpack.c.l.b16 %v334
    %v423 = vunpack.c.h.b16 %v334
    %v424 = vunpack.c.l.b16 %v335
    %v425 = vunpack.c.l.b16 %v336
    %v426 = vunpack.c.h.b16 %v336
    %v427 = vunpack.c.l.b16 %v337
    %v428 = vunpack.c.l.b16 %v338
    %v429 = vunpack.c.h.b16 %v338
    %v430 = vunpack.c.l.b16 %v339
    %v431 = vunpack.c.l.b16 %v340
    %v432 = vunpack.c.h.b16 %v340
    %v433 = vunpack.c.l.b16 %v341
    %v434 = vunpack.c.l.b16 %v342
    %v435 = vunpack.c.h.b16 %v342
    %v436 = vunpack.c.l.b16 %v343
    %v437 = vunpack.c.l.b16 %v344
    %v438 = vunpack.c.h.b16 %v344
    %v439 = vunpack.c.l.b16 %v345
    %v440 = vunpack.c.l.b16 %v346
    %v441 = vunpack.c.h.b16 %v346
    %v442 = vunpack.c.l.b16 %v347
    %v443 = vunpack.c.l.b16 %v348
    %v444 = vunpack.c.h.b16 %v348
    %v445 = vunpack.c.l.b16 %v349
    %v446 = vunpack.c.l.b16 %v350
    %v447 = vunpack.c.h.b16 %v350
    %v448 = vunpack.c.l.b16 %v351
    %v449 = vpack.c.b16 %v404, %v401
    %v450 = vpack.c.b16 %v405, %v402
    %v451 = vpack.c.b16 %v406, %v403
    %v452 = vpack.c.b16 %v410, %v407
    %v453 = vpack.c.b16 %v411, %v408
    %v454 = vpack.c.b16 %v412, %v409
    %v455 = vpack.c.b16 %v416, %v413
    %v456 = vpack.c.b16 %v417, %v414
    %v457 = vpack.c.b16 %v418, %v415
    %v458 = vpack.c.b16 %v422, %v419
    %v459 = vpack.c.b16 %v423, %v420
    %v460 = vpack.c.b16 %v424, %v421
    %v461 = vpack.c.b16 %v428, %v425
    %v462 = vpack.c.b16 %v429, %v426
    %v463 = vpack.c.b16 %v430, %v427
    %v464 = vpack.c.b16 %v434, %v431
    %v465 = vpack.c.b16 %v435, %v432
    %v466 = vpack.c.b16 %v436, %v433
    %v467 = vpack.c.b16 %v440, %v437
    %v468 = vpack.c.b16 %v441, %v438
    %v469 = vpack.c.b16 %v442, %v439
    %v470 = vpack.c.b16 %v446, %v443
    %v471 = vpack.c.b16 %v447, %v444
    %v472 = vpack.c.b16 %v448, %v445
    %497 = vmatprep.subr.bf16.mxu0 %v471
    %498 = vmatpush1.bf16.msra.mxu0 %v470
    %499 = vmatprep.subr.bf16.mxu0 %v468
    %500 = vmatpush1.bf16.msra.mxu0 %v467
    %501 = vmatprep.subr.bf16.mxu0 %v465
    %502 = vmatpush1.bf16.msra.mxu0 %v464
    %503 = vmatprep.subr.bf16.mxu0 %v462
    %504 = vmatpush1.bf16.msra.mxu0 %v461
    %505 = vmatprep.subr.bf16.mxu0 %v459
    %506 = vmatpush1.bf16.msra.mxu0 %v458
    %507 = vmatprep.subr.bf16.mxu0 %v456
    %508 = vmatpush1.bf16.msra.mxu0 %v455
    %509 = vmatprep.subr.bf16.mxu0 %v453
    %510 = vmatpush1.bf16.msra.mxu0 %v452
    %511 = vmatprep.subr.bf16.mxu0 %v450
    %512 = vmatpush1.bf16.msra.mxu0 %v449
    %513 = vmatprep.subr.bf16.mxu0 0
    %514 = vmatpush2.bf16.msra.mxu0 0
    %515 = vmatprep.subr.bf16.mxu0 0
    %516 = vmatpush2.bf16.msra.mxu0 0
    %517 = vmatprep.subr.bf16.mxu0 0
    %518 = vmatpush2.bf16.msra.mxu0 0
    %519 = vmatprep.subr.bf16.mxu0 0
    %520 = vmatpush2.bf16.msra.mxu0 0
    %521 = vmatprep.subr.bf16.mxu0 0
    %522 = vmatpush2.bf16.msra.mxu0 0
    %523 = vmatprep.subr.bf16.mxu0 0
    %524 = vmatpush2.bf16.msra.mxu0 0
    %525 = vmatprep.subr.bf16.mxu0 0
    %526 = vmatpush2.bf16.msra.mxu0 0
    %527 = vmatprep.subr.bf16.mxu0 0
    %528 = vmatpush2.bf16.msra.mxu0 0
    %529 = vmatprep.mubr.bf16.mxu0 0
    %530 = vmatmul.mubr.bf16.gmra.mxu0 %v319
    %v531 = vpop.f32.mrf.mxu0
    %v532 = vadd.f32 %v357, %v531
    %v533 = vpop.f32.mrf.mxu0
    %v534 = vadd.f32 %v361, %v533
    %v535 = vpop.f32.mrf.mxu0
    %v536 = vadd.f32 %v357, %v535
    %v537 = vpop.f32.mrf.mxu0
    %v538 = vadd.f32 %v361, %v537
    %539 = vdwg.mxu0
    %540 = vmatprep.subr.bf16.mxu0 0
    %541 = vmatpush1.bf16.msra.mxu0 %v472
    %542 = vmatprep.subr.bf16.mxu0 0
    %543 = vmatpush1.bf16.msra.mxu0 %v469
    %544 = vmatprep.subr.bf16.mxu0 0
    %545 = vmatpush1.bf16.msra.mxu0 %v466
    %546 = vmatprep.subr.bf16.mxu0 0
    %547 = vmatpush1.bf16.msra.mxu0 %v463
    %548 = vmatprep.subr.bf16.mxu0 0
    %549 = vmatpush1.bf16.msra.mxu0 %v460
    %550 = vmatprep.subr.bf16.mxu0 0
    %551 = vmatpush1.bf16.msra.mxu0 %v457
    %552 = vmatprep.subr.bf16.mxu0 0
    %553 = vmatpush1.bf16.msra.mxu0 %v454
    %554 = vmatprep.subr.bf16.mxu0 0
    %555 = vmatpush1.bf16.msra.mxu0 %v451
    %556 = vmatprep.subr.bf16.mxu0 0
    %557 = vmatpush2.bf16.msra.mxu0 0
    %558 = vmatprep.subr.bf16.mxu0 0
    %559 = vmatpush2.bf16.msra.mxu0 0
    %560 = vmatprep.subr.bf16.mxu0 0
    %561 = vmatpush2.bf16.msra.mxu0 0
    %562 = vmatprep.subr.bf16.mxu0 0
    %563 = vmatpush2.bf16.msra.mxu0 0
    %564 = vmatprep.subr.bf16.mxu0 0
    %565 = vmatpush2.bf16.msra.mxu0 0
    %566 = vmatprep.subr.bf16.mxu0 0
    %567 = vmatpush2.bf16.msra.mxu0 0
    %568 = vmatprep.subr.bf16.mxu0 0
    %569 = vmatpush2.bf16.msra.mxu0 0
    %570 = vmatprep.subr.bf16.mxu0 0
    %571 = vmatpush2.bf16.msra.mxu0 0
    %572 = vmatprep.mubr.bf16.mxu0 0
    %573 = vmatmul.mubr.bf16.gmra.mxu0 %v319
    %v574 = vpop.f32.mrf.mxu0
    %v575 = vadd.f32 %v365, %v574
    %v576 = vpop.f32.mrf.mxu0
    %v577 = vpop.f32.mrf.mxu0
    %v578 = vadd.f32 %v365, %v577
    %v579 = vpop.f32.mrf.mxu0
    %580 = vdwg.mxu0
    %v581 = vmul.f32 %v532, 0.25
    %v582 = vmul.f32 %v536, 0.25
    %v583 = vpack.c.bf16 %v582, %v581
    %v584 = vpack.c.bf16 %v538, %v534
    %v585 = vpack.c.bf16 %v578, %v575
    %v602 = vunpack.c.l.b16 %v285
    %v603 = vunpack.c.l.b16 %v286
    %v604 = vunpack.c.l.b16 %v287
    %v605 = vunpack.c.l.b16 %v288
    %v606 = vunpack.c.l.b16 %v289
    %v607 = vunpack.c.l.b16 %v290
    %v608 = vunpack.c.l.b16 %v291
    %v609 = vunpack.c.l.b16 %v292
    %v610 = vunpack.c.l.b16 %v293
    %v611 = vunpack.c.l.b16 %v294
    %v612 = vunpack.c.l.b16 %v295
    %v613 = vunpack.c.l.b16 %v296
    %v614 = vunpack.c.l.b16 %v297
    %v615 = vunpack.c.l.b16 %v298
    %v616 = vunpack.c.l.b16 %v299
    %v617 = vunpack.c.l.b16 %v300
    %v618 = vpack.c.b16 %v603, %v602
    %v619 = vpack.c.b16 %v605, %v604
    %v620 = vpack.c.b16 %v607, %v606
    %v621 = vpack.c.b16 %v609, %v608
    %v622 = vpack.c.b16 %v611, %v610
    %v623 = vpack.c.b16 %v613, %v612
    %v624 = vpack.c.b16 %v615, %v614
    %v625 = vpack.c.b16 %v617, %v616
    %v634 = vmul.bf16 %v584, %v618
    %v635 = vmul.bf16 %v584, %v619
    %v636 = vmul.bf16 %v584, %v620
    %v637 = vmul.bf16 %v584, %v621
    %v638 = vmul.bf16 %v584, %v622
    %v639 = vmul.bf16 %v584, %v623
    %v640 = vmul.bf16 %v584, %v624
    %v641 = vmul.bf16 %v584, %v625
    %v642 = vmul.bf16 %v585, %v618
    %v643 = vmul.bf16 %v585, %v619
    %v644 = vmul.bf16 %v585, %v620
    %v645 = vmul.bf16 %v585, %v621
    %v646 = vmul.bf16 %v585, %v622
    %v647 = vmul.bf16 %v585, %v623
    %v648 = vmul.bf16 %v585, %v624
    %v649 = vmul.bf16 %v585, %v625
    %650 = vmatprep.subr.bf16.mxu0 0
    %651 = vmatpush1.bf16.xpose.msra.mxu0 %v641
    %652 = vmatprep.subr.bf16.mxu0 0
    %653 = vmatpush1.bf16.xpose.msra.mxu0 %v640
    %654 = vmatprep.subr.bf16.mxu0 0
    %655 = vmatpush1.bf16.xpose.msra.mxu0 %v639
    %656 = vmatprep.subr.bf16.mxu0 0
    %657 = vmatpush1.bf16.xpose.msra.mxu0 %v638
    %658 = vmatprep.subr.bf16.mxu0 0
    %659 = vmatpush1.bf16.xpose.msra.mxu0 %v637
    %660 = vmatprep.subr.bf16.mxu0 0
    %661 = vmatpush1.bf16.xpose.msra.mxu0 %v636
    %662 = vmatprep.subr.bf16.mxu0 0
    %663 = vmatpush1.bf16.xpose.msra.mxu0 %v635
    %664 = vmatprep.subr.bf16.mxu0 0
    %665 = vmatpush1.bf16.xpose.msra.mxu0 %v634
    %666 = vmatprep.subr.bf16.mxu0 0
    %667 = vmatpush2.bf16.xpose.msra.mxu0 0
    %668 = vmatprep.subr.bf16.mxu0 0
    %669 = vmatpush2.bf16.xpose.msra.mxu0 0
    %670 = vmatprep.subr.bf16.mxu0 0
    %671 = vmatpush2.bf16.xpose.msra.mxu0 0
    %672 = vmatprep.subr.bf16.mxu0 0
    %673 = vmatpush2.bf16.xpose.msra.mxu0 0
    %674 = vmatprep.subr.bf16.mxu0 0
    %675 = vmatpush2.bf16.xpose.msra.mxu0 0
    %676 = vmatprep.subr.bf16.mxu0 0
    %677 = vmatpush2.bf16.xpose.msra.mxu0 0
    %678 = vmatprep.subr.bf16.mxu0 0
    %679 = vmatpush2.bf16.xpose.msra.mxu0 0
    %680 = vmatprep.subr.bf16.mxu0 0
    %681 = vmatpush2.bf16.xpose.msra.mxu0 0
    %682 = vmatprep.mubr.bf16.mxu0 0
    %683 = vmatmul.mubr.bf16.gmra.mxu0 %v583
    %v684 = vpop.f32.mrf.mxu0
    %v685 = vadd.f32 %v301, %v684
    %v686 = vpop.f32.mrf.mxu0
    %v687 = vpop.f32.mrf.mxu0
    %v688 = vadd.f32 %v302, %v687
    %v689 = vpop.f32.mrf.mxu0
    %690 = vdwg.mxu0
    %691 = vmax.xlane.f32.xlu0 %v685
    %v692 = vpop.xlane.xlu0 %691
    %693 = vmax.xlane.f32.xlu0 %v688
    %v694 = vpop.xlane.xlu0 %693
    %v695 = vsub.f32 %v685, %v692
    %v696 = vsub.f32 %v688, %v694
    %v697 = vmul.f32 %v695, 1.442695
    %v698 = vpow.pop %v697
    %v699 = vmul.f32 %v696, 1.442695
    %v700 = vpow.pop %v699
    %701 = vmatprep.subr.mxu0 0.0
    %702 = vmatpush1.msra.mxu0 %v318
    %703 = vmatprep.subr.mxu0 0.0
    %704 = vmatpush1.msra.mxu0 %v317
    %705 = vmatprep.subr.mxu0 0.0
    %706 = vmatpush1.msra.mxu0 %v316
    %707 = vmatprep.subr.mxu0 0.0
    %708 = vmatpush1.msra.mxu0 %v315
    %709 = vmatprep.subr.mxu0 0.0
    %710 = vmatpush1.msra.mxu0 %v314
    %711 = vmatprep.subr.mxu0 0.0
    %712 = vmatpush1.msra.mxu0 %v313
    %713 = vmatprep.subr.mxu0 0.0
    %714 = vmatpush1.msra.mxu0 %v312
    %715 = vmatprep.subr.mxu0 0.0
    %716 = vmatpush1.msra.mxu0 %v311
    %717 = vmatprep.subr.mxu0 0.0
    %718 = vmatpush1.msra.mxu0 %v310
    %719 = vmatprep.subr.mxu0 0.0
    %720 = vmatpush1.msra.mxu0 %v309
    %721 = vmatprep.subr.mxu0 0.0
    %722 = vmatpush1.msra.mxu0 %v308
    %723 = vmatprep.subr.mxu0 0.0
    %724 = vmatpush1.msra.mxu0 %v307
    %725 = vmatprep.subr.mxu0 0.0
    %726 = vmatpush1.msra.mxu0 %v306
    %727 = vmatprep.subr.mxu0 0.0
    %728 = vmatpush1.msra.mxu0 %v305
    %729 = vmatprep.subr.mxu0 0.0
    %730 = vmatpush1.msra.mxu0 %v304
    %731 = vmatprep.subr.mxu0 0.0
    %732 = vmatpush1.msra.mxu0 %v303
    %733 = vmatprep.subr.mxu0 0.0
    %734 = vmatpush2.msra.mxu0 0.0
    %735 = vmatprep.subr.mxu0 0.0
    %736 = vmatpush2.msra.mxu0 0.0
    %737 = vmatprep.subr.mxu0 0.0
    %738 = vmatpush2.msra.mxu0 0.0
    %739 = vmatprep.subr.mxu0 0.0
    %740 = vmatpush2.msra.mxu0 0.0
    %741 = vmatprep.subr.mxu0 0.0
    %742 = vmatpush2.msra.mxu0 0.0
    %743 = vmatprep.subr.mxu0 0.0
    %744 = vmatpush2.msra.mxu0 0.0
    %745 = vmatprep.subr.mxu0 0.0
    %746 = vmatpush2.msra.mxu0 0.0
    %747 = vmatprep.subr.mxu0 0.0
    %748 = vmatpush2.msra.mxu0 0.0
    %749 = vmatprep.subr.mxu0 0.0
    %750 = vmatpush2.msra.mxu0 0.0
    %751 = vmatprep.subr.mxu0 0.0
    %752 = vmatpush2.msra.mxu0 0.0
    %753 = vmatprep.subr.mxu0 0.0
    %754 = vmatpush2.msra.mxu0 0.0
    %755 = vmatprep.subr.mxu0 0.0
    %756 = vmatpush2.msra.mxu0 0.0
    %757 = vmatprep.subr.mxu0 0.0
    %758 = vmatpush2.msra.mxu0 0.0
    %759 = vmatprep.subr.mxu0 0.0
    %760 = vmatpush2.msra.mxu0 0.0
    %761 = vmatprep.subr.mxu0 0.0
    %762 = vmatpush2.msra.mxu0 0.0
    %763 = vmatprep.subr.mxu0 0.0
    %764 = vmatpush2.msra.mxu0 0.0
    %765 = vmatprep.mubr.f32.mxu0 0.0
    %766 = vmatmul.mubr.f32.gmra.mxu0 %v698
    %v767 = vpop.f32.mrf.mxu0
    %v768 = vadd.f32 0.0, %v767
    %v769 = vpop.f32.mrf.mxu0
    %770 = vmatprep.mubr.f32.mxu0 0.0
    %771 = vmatmul.mubr.f32.gmra.mxu0 %v700
    %v772 = vpop.f32.mrf.mxu0
    %v773 = vadd.f32 0.0, %v772
    %v774 = vpop.f32.mrf.mxu0
    %775 = vdwg.mxu0
    %vm776 = vcmp.gt.f32.partialorder %v768, 0.0
    %vm777 = vcmp.gt.f32.partialorder %v773, 0.0
    %v778 = vsel %vm776, %v768, 1.0
    %v779 = vsel %vm777, %v773, 1.0
    %v780 = vrcp.pop %v778
    %v781 = vrcp.pop %v779
    %v782 = vmul.f32 %v698, %v780
    %v783 = vmul.f32 %v700, %v781
    %v784 = vpack.c.bf16 %v783, %v782
    %785 = vmatprep.subr.bf16.mxu0 0
    %786 = vmatpush1.bf16.msra.mxu0 %v649
    %787 = vmatprep.subr.bf16.mxu0 0
    %788 = vmatpush1.bf16.msra.mxu0 %v648
    %789 = vmatprep.subr.bf16.mxu0 0
    %790 = vmatpush1.bf16.msra.mxu0 %v647
    %791 = vmatprep.subr.bf16.mxu0 0
    %792 = vmatpush1.bf16.msra.mxu0 %v646
    %793 = vmatprep.subr.bf16.mxu0 0
    %794 = vmatpush1.bf16.msra.mxu0 %v645
    %795 = vmatprep.subr.bf16.mxu0 0
    %796 = vmatpush1.bf16.msra.mxu0 %v644
    %797 = vmatprep.subr.bf16.mxu0 0
    %798 = vmatpush1.bf16.msra.mxu0 %v643
    %799 = vmatprep.subr.bf16.mxu0 0
    %800 = vmatpush1.bf16.msra.mxu0 %v642
    %801 = vmatprep.subr.bf16.mxu0 0
    %802 = vmatpush2.bf16.msra.mxu0 0
    %803 = vmatprep.subr.bf16.mxu0 0
    %804 = vmatpush2.bf16.msra.mxu0 0
    %805 = vmatprep.subr.bf16.mxu0 0
    %806 = vmatpush2.bf16.msra.mxu0 0
    %807 = vmatprep.subr.bf16.mxu0 0
    %808 = vmatpush2.bf16.msra.mxu0 0
    %809 = vmatprep.subr.bf16.mxu0 0
    %810 = vmatpush2.bf16.msra.mxu0 0
    %811 = vmatprep.subr.bf16.mxu0 0
    %812 = vmatpush2.bf16.msra.mxu0 0
    %813 = vmatprep.subr.bf16.mxu0 0
    %814 = vmatpush2.bf16.msra.mxu0 0
    %815 = vmatprep.subr.bf16.mxu0 0
    %816 = vmatpush2.bf16.msra.mxu0 0
    %817 = vmatprep.mubr.bf16.mxu0 0
    %818 = vmatmul.mubr.bf16.gmra.mxu0 %v784
    %v819 = vpop.f32.mrf.mxu0
    %v820 = vadd.f32 0.0, %v819
    %v821 = vpop.f32.mrf.mxu0
    %v822 = vpop.f32.mrf.mxu0
    %v823 = vadd.f32 0.0, %v822
    %v824 = vpop.f32.mrf.mxu0
    %825 = vdwg.mxu0
    %v826 = vpack.c.bf16 %v823, %v820
    %v827 = vld [vmem:[#allocation13] sm:$0xf]
    %v828 = vld [vmem:[#allocation13 + $0x4] sm:$0xf]
    %v829 = vld [vmem:[#allocation13 + $0x8] sm:$0xf]
    %v830 = vld [vmem:[#allocation13 + $0xc] sm:$0xf]
    %v831 = vld [vmem:[#allocation13 + $0x10] sm:$0xf]
    %v832 = vld [vmem:[#allocation13 + $0x14] sm:$0xf]
    %v833 = vld [vmem:[#allocation13 + $0x18] sm:$0xf]
    %v834 = vld [vmem:[#allocation13 + $0x1c] sm:$0xf]
    %v835 = vld [vmem:[#allocation13 + $0x20] sm:$0xf]
    %v836 = vld [vmem:[#allocation13 + $0x24] sm:$0xf]
    %v837 = vld [vmem:[#allocation13 + $0x28] sm:$0xf]
    %v838 = vld [vmem:[#allocation13 + $0x2c] sm:$0xf]
    %v839 = vld [vmem:[#allocation13 + $0x30] sm:$0xf]
    %v840 = vld [vmem:[#allocation13 + $0x34] sm:$0xf]
    %v841 = vld [vmem:[#allocation13 + $0x38] sm:$0xf]
    %v842 = vld [vmem:[#allocation13 + $0x3c] sm:$0xf]
    %v843 = vld [vmem:[%s10] sm:$0x1]
    %v845 = vlaneseq
    %v846 = vshrl.u32 %v845, 7
    %v847 = vsub.s32 0, %v846
    %v848 = vrot.slane %v843, %v847
    %v866 = vunpack.c.l.b16 %v827
    %v867 = vunpack.c.l.b16 %v828
    %v868 = vunpack.c.l.b16 %v829
    %v869 = vunpack.c.l.b16 %v830
    %v870 = vunpack.c.l.b16 %v831
    %v871 = vunpack.c.l.b16 %v832
    %v872 = vunpack.c.l.b16 %v833
    %v873 = vunpack.c.l.b16 %v834
    %v874 = vunpack.c.l.b16 %v835
    %v875 = vunpack.c.l.b16 %v836
    %v876 = vunpack.c.l.b16 %v837
    %v877 = vunpack.c.l.b16 %v838
    %v878 = vunpack.c.l.b16 %v839
    %v879 = vunpack.c.l.b16 %v840
    %v880 = vunpack.c.l.b16 %v841
    %v881 = vunpack.c.l.b16 %v842
    %v882 = vpack.c.b16 %v867, %v866
    %v883 = vpack.c.b16 %v869, %v868
    %v884 = vpack.c.b16 %v871, %v870
    %v885 = vpack.c.b16 %v873, %v872
    %v886 = vpack.c.b16 %v875, %v874
    %v887 = vpack.c.b16 %v877, %v876
    %v888 = vpack.c.b16 %v879, %v878
    %v889 = vpack.c.b16 %v881, %v880
    %898 = vmatprep.subr.bf16.mxu0 0
    %899 = vmatpush1.bf16.msra.mxu0 %v889
    %900 = vmatprep.subr.bf16.mxu0 0
    %901 = vmatpush1.bf16.msra.mxu0 %v888
    %902 = vmatprep.subr.bf16.mxu0 0
    %903 = vmatpush1.bf16.msra.mxu0 %v887
    %904 = vmatprep.subr.bf16.mxu0 0
    %905 = vmatpush1.bf16.msra.mxu0 %v886
    %906 = vmatprep.subr.bf16.mxu0 0
    %907 = vmatpush1.bf16.msra.mxu0 %v885
    %908 = vmatprep.subr.bf16.mxu0 0
    %909 = vmatpush1.bf16.msra.mxu0 %v884
    %910 = vmatprep.subr.bf16.mxu0 0
    %911 = vmatpush1.bf16.msra.mxu0 %v883
    %912 = vmatprep.subr.bf16.mxu0 0
    %913 = vmatpush1.bf16.msra.mxu0 %v882
    %914 = vmatprep.subr.bf16.mxu0 0
    %915 = vmatpush2.bf16.msra.mxu0 0
    %916 = vmatprep.subr.bf16.mxu0 0
    %917 = vmatpush2.bf16.msra.mxu0 0
    %918 = vmatprep.subr.bf16.mxu0 0
    %919 = vmatpush2.bf16.msra.mxu0 0
    %920 = vmatprep.subr.bf16.mxu0 0
    %921 = vmatpush2.bf16.msra.mxu0 0
    %922 = vmatprep.subr.bf16.mxu0 0
    %923 = vmatpush2.bf16.msra.mxu0 0
    %924 = vmatprep.subr.bf16.mxu0 0
    %925 = vmatpush2.bf16.msra.mxu0 0
    %926 = vmatprep.subr.bf16.mxu0 0
    %927 = vmatpush2.bf16.msra.mxu0 0
    %928 = vmatprep.subr.bf16.mxu0 0
    %929 = vmatpush2.bf16.msra.mxu0 0
    %930 = vmatprep.mubr.bf16.mxu0 0
    %931 = vmatmul.mubr.bf16.gmra.mxu0 %v826
    %v932 = vpop.f32.mrf.mxu0
    %v933 = vadd.f32 %v848, %v932
    %v934 = vpop.f32.mrf.mxu0
    %v935 = vpop.f32.mrf.mxu0
    %v936 = vadd.f32 %v848, %v935
    %v937 = vpop.f32.mrf.mxu0
    %938 = vdwg.mxu0
    %v939 = vadd.f32 %v283, %v933
    %v940 = vadd.f32 %v284, %v936
    %v941 = vld [vmem:[%s11] sm:$0x1]
    %v942 = vld [vmem:[%s12] sm:$0x1]
    %943 = vadd.xlane.f32.xlu0 %v939
    %v944 = vpop.xlane.xlu0 %943
    %945 = vadd.xlane.f32.xlu0 %v940
    %v946 = vpop.xlane.xlu0 %945
    %v947 = vrcp.pop 128.0
    %v948 = vmul.f32 %v944, %v947
    %v949 = vmul.f32 %v946, %v947
    %v950 = vsub.f32 %v939, %v948
    %v951 = vsub.f32 %v940, %v949
    %v952 = vmul.f32 %v950, %v950
    %v953 = vmul.f32 %v951, %v951
    %954 = vadd.xlane.f32.xlu0 %v952
    %v955 = vpop.xlane.xlu0 %954
    %956 = vadd.xlane.f32.xlu0 %v953
    %v957 = vpop.xlane.xlu0 %956
    %v958 = vmul.f32 %v955, %v947
    %v959 = vmul.f32 %v957, %v947
    %v960 = vadd.f32 %v958, 1e-05
    %v961 = vadd.f32 %v959, 1e-05
    %v962 = vrsqrt.pop %v960
    %v963 = vrsqrt.pop %v961
    %v964 = vmul.f32 %v950, %v962
    %v965 = vmul.f32 %v951, %v963
    %v967 = vlaneseq
    %v968 = vshrl.u32 %v967, 7
    %v969 = vsub.s32 0, %v968
    %v970 = vrot.slane %v941, %v969
    %v972 = vmul.f32 %v964, %v970
    %v973 = vmul.f32 %v965, %v970
    %v975 = vlaneseq
    %v976 = vshrl.u32 %v975, 7
    %v977 = vsub.s32 0, %v976
    %v978 = vrot.slane %v942, %v977
    %v980 = vadd.f32 %v972, %v978
    %v981 = vadd.f32 %v973, %v978
    %v982 = vpack.c.bf16 %v981, %v980
    %v983 = vld [vmem:[#allocation14] sm:$0xff]
    %v984 = vld [vmem:[#allocation14 + $0x8] sm:$0xff]
    %v985 = vld [vmem:[#allocation14 + $0x10] sm:$0xff]
    %v986 = vld [vmem:[#allocation14 + $0x18] sm:$0xff]
    %v987 = vld [vmem:[#allocation14 + $0x20] sm:$0xff]
    %v988 = vld [vmem:[#allocation14 + $0x28] sm:$0xff]
    %v989 = vld [vmem:[#allocation14 + $0x30] sm:$0xff]
    %v990 = vld [vmem:[#allocation14 + $0x38] sm:$0xff]
    %v991 = vld [vmem:[#allocation14 + $0x40] sm:$0xff]
    %v992 = vld [vmem:[#allocation14 + $0x48] sm:$0xff]
    %v993 = vld [vmem:[#allocation14 + $0x50] sm:$0xff]
    %v994 = vld [vmem:[#allocation14 + $0x58] sm:$0xff]
    %v995 = vld [vmem:[#allocation14 + $0x60] sm:$0xff]
    %v996 = vld [vmem:[#allocation14 + $0x68] sm:$0xff]
    %v997 = vld [vmem:[#allocation14 + $0x70] sm:$0xff]
    %v998 = vld [vmem:[#allocation14 + $0x78] sm:$0xff]
    %v999 = vld [vmem:[%s14] sm:$0x3]
    %v1001 = vlaneseq
    %v1002 = vshrl.u32 %v1001, 7
    %v1003 = vsub.s32 0, %v1002
    %v1004 = vrot.slane %v999, %v1003
    %v1005 = vlaneseq
    %v1006 = vshrl.u32 %v1005, 7
    %v1007 = vsub.s32 1, %v1006
    %v1008 = vrot.slane %v999, %v1007
    %v1027 = vunpack.c.l.b16 %v983
    %v1028 = vunpack.c.h.b16 %v983
    %v1029 = vunpack.c.l.b16 %v984
    %v1030 = vunpack.c.h.b16 %v984
    %v1031 = vunpack.c.l.b16 %v985
    %v1032 = vunpack.c.h.b16 %v985
    %v1033 = vunpack.c.l.b16 %v986
    %v1034 = vunpack.c.h.b16 %v986
    %v1035 = vunpack.c.l.b16 %v987
    %v1036 = vunpack.c.h.b16 %v987
    %v1037 = vunpack.c.l.b16 %v988
    %v1038 = vunpack.c.h.b16 %v988
    %v1039 = vunpack.c.l.b16 %v989
    %v1040 = vunpack.c.h.b16 %v989
    %v1041 = vunpack.c.l.b16 %v990
    %v1042 = vunpack.c.h.b16 %v990
    %v1043 = vunpack.c.l.b16 %v991
    %v1044 = vunpack.c.h.b16 %v991
    %v1045 = vunpack.c.l.b16 %v992
    %v1046 = vunpack.c.h.b16 %v992
    %v1047 = vunpack.c.l.b16 %v993
    %v1048 = vunpack.c.h.b16 %v993
    %v1049 = vunpack.c.l.b16 %v994
    %v1050 = vunpack.c.h.b16 %v994
    %v1051 = vunpack.c.l.b16 %v995
    %v1052 = vunpack.c.h.b16 %v995
    %v1053 = vunpack.c.l.b16 %v996
    %v1054 = vunpack.c.h.b16 %v996
    %v1055 = vunpack.c.l.b16 %v997
    %v1056 = vunpack.c.h.b16 %v997
    %v1057 = vunpack.c.l.b16 %v998
    %v1058 = vunpack.c.h.b16 %v998
    %v1059 = vpack.c.b16 %v1029, %v1027
    %v1060 = vpack.c.b16 %v1030, %v1028
    %v1061 = vpack.c.b16 %v1033, %v1031
    %v1062 = vpack.c.b16 %v1034, %v1032
    %v1063 = vpack.c.b16 %v1037, %v1035
    %v1064 = vpack.c.b16 %v1038, %v1036
    %v1065 = vpack.c.b16 %v1041, %v1039
    %v1066 = vpack.c.b16 %v1042, %v1040
    %v1067 = vpack.c.b16 %v1045, %v1043
    %v1068 = vpack.c.b16 %v1046, %v1044
    %v1069 = vpack.c.b16 %v1049, %v1047
    %v1070 = vpack.c.b16 %v1050, %v1048
    %v1071 = vpack.c.b16 %v1053, %v1051
    %v1072 = vpack.c.b16 %v1054, %v1052
    %v1073 = vpack.c.b16 %v1057, %v1055
    %v1074 = vpack.c.b16 %v1058, %v1056
    %1091 = vmatprep.subr.bf16.mxu0 %v1074
    %1092 = vmatpush1.bf16.msra.mxu0 %v1073
    %1093 = vmatprep.subr.bf16.mxu0 %v1072
    %1094 = vmatpush1.bf16.msra.mxu0 %v1071
    %1095 = vmatprep.subr.bf16.mxu0 %v1070
    %1096 = vmatpush1.bf16.msra.mxu0 %v1069
    %1097 = vmatprep.subr.bf16.mxu0 %v1068
    %1098 = vmatpush1.bf16.msra.mxu0 %v1067
    %1099 = vmatprep.subr.bf16.mxu0 %v1066
    %1100 = vmatpush1.bf16.msra.mxu0 %v1065
    %1101 = vmatprep.subr.bf16.mxu0 %v1064
    %1102 = vmatpush1.bf16.msra.mxu0 %v1063
    %1103 = vmatprep.subr.bf16.mxu0 %v1062
    %1104 = vmatpush1.bf16.msra.mxu0 %v1061
    %1105 = vmatprep.subr.bf16.mxu0 %v1060
    %1106 = vmatpush1.bf16.msra.mxu0 %v1059
    %1107 = vmatprep.subr.bf16.mxu0 0
    %1108 = vmatpush2.bf16.msra.mxu0 0
    %1109 = vmatprep.subr.bf16.mxu0 0
    %1110 = vmatpush2.bf16.msra.mxu0 0
    %1111 = vmatprep.subr.bf16.mxu0 0
    %1112 = vmatpush2.bf16.msra.mxu0 0
    %1113 = vmatprep.subr.bf16.mxu0 0
    %1114 = vmatpush2.bf16.msra.mxu0 0
    %1115 = vmatprep.subr.bf16.mxu0 0
    %1116 = vmatpush2.bf16.msra.mxu0 0
    %1117 = vmatprep.subr.bf16.mxu0 0
    %1118 = vmatpush2.bf16.msra.mxu0 0
    %1119 = vmatprep.subr.bf16.mxu0 0
    %1120 = vmatpush2.bf16.msra.mxu0 0
    %1121 = vmatprep.subr.bf16.mxu0 0
    %1122 = vmatpush2.bf16.msra.mxu0 0
    %1123 = vmatprep.mubr.bf16.mxu0 0
    %1124 = vmatmul.mubr.bf16.gmra.mxu0 %v982
    %v1125 = vpop.f32.mrf.mxu0
    %v1126 = vadd.f32 %v1004, %v1125
    %v1127 = vpop.f32.mrf.mxu0
    %v1128 = vadd.f32 %v1008, %v1127
    %v1129 = vpop.f32.mrf.mxu0
    %v1130 = vadd.f32 %v1004, %v1129
    %v1131 = vpop.f32.mrf.mxu0
    %v1132 = vadd.f32 %v1008, %v1131
    %1133 = vdwg.mxu0
    %v1134 = vmax.f32 %v1126, 0.0
    %v1135 = vmax.f32 %v1128, 0.0
    %v1136 = vmax.f32 %v1130, 0.0
    %v1137 = vmax.f32 %v1132, 0.0
    %v1138 = vpack.c.bf16 %v1136, %v1134
    %v1139 = vpack.c.bf16 %v1137, %v1135
    %v1140 = vld [vmem:[#allocation16] sm:$0xf]
    %v1141 = vld [vmem:[#allocation16 + $0x4] sm:$0xf]
    %v1142 = vld [vmem:[#allocation16 + $0x8] sm:$0xf]
    %v1143 = vld [vmem:[#allocation16 + $0xc] sm:$0xf]
    %v1144 = vld [vmem:[#allocation16 + $0x10] sm:$0xf]
    %v1145 = vld [vmem:[#allocation16 + $0x14] sm:$0xf]
    %v1146 = vld [vmem:[#allocation16 + $0x18] sm:$0xf]
    %v1147 = vld [vmem:[#allocation16 + $0x1c] sm:$0xf]
    %v1148 = vld [vmem:[#allocation16 + $0x20] sm:$0xf]
    %v1149 = vld [vmem:[#allocation16 + $0x24] sm:$0xf]
    %v1150 = vld [vmem:[#allocation16 + $0x28] sm:$0xf]
    %v1151 = vld [vmem:[#allocation16 + $0x2c] sm:$0xf]
    %v1152 = vld [vmem:[#allocation16 + $0x30] sm:$0xf]
    %v1153 = vld [vmem:[#allocation16 + $0x34] sm:$0xf]
    %v1154 = vld [vmem:[#allocation16 + $0x38] sm:$0xf]
    %v1155 = vld [vmem:[#allocation16 + $0x3c] sm:$0xf]
    %v1156 = vld [vmem:[#allocation16 + $0x40] sm:$0xf]
    %v1157 = vld [vmem:[#allocation16 + $0x44] sm:$0xf]
    %v1158 = vld [vmem:[#allocation16 + $0x48] sm:$0xf]
    %v1159 = vld [vmem:[#allocation16 + $0x4c] sm:$0xf]
    %v1160 = vld [vmem:[#allocation16 + $0x50] sm:$0xf]
    %v1161 = vld [vmem:[#allocation16 + $0x54] sm:$0xf]
    %v1162 = vld [vmem:[#allocation16 + $0x58] sm:$0xf]
    %v1163 = vld [vmem:[#allocation16 + $0x5c] sm:$0xf]
    %v1164 = vld [vmem:[#allocation16 + $0x60] sm:$0xf]
    %v1165 = vld [vmem:[#allocation16 + $0x64] sm:$0xf]
    %v1166 = vld [vmem:[#allocation16 + $0x68] sm:$0xf]
    %v1167 = vld [vmem:[#allocation16 + $0x6c] sm:$0xf]
    %v1168 = vld [vmem:[#allocation16 + $0x70] sm:$0xf]
    %v1169 = vld [vmem:[#allocation16 + $0x74] sm:$0xf]
    %v1170 = vld [vmem:[#allocation16 + $0x78] sm:$0xf]
    %v1171 = vld [vmem:[#allocation16 + $0x7c] sm:$0xf]
    %v1172 = vld [vmem:[%s16] sm:$0x1]
    %v1174 = vlaneseq
    %v1175 = vshrl.u32 %v1174, 7
    %v1176 = vsub.s32 0, %v1175
    %v1177 = vrot.slane %v1172, %v1176
    %v1211 = vunpack.c.l.b16 %v1140
    %v1212 = vunpack.c.l.b16 %v1141
    %v1213 = vunpack.c.l.b16 %v1142
    %v1214 = vunpack.c.l.b16 %v1143
    %v1215 = vunpack.c.l.b16 %v1144
    %v1216 = vunpack.c.l.b16 %v1145
    %v1217 = vunpack.c.l.b16 %v1146
    %v1218 = vunpack.c.l.b16 %v1147
    %v1219 = vunpack.c.l.b16 %v1148
    %v1220 = vunpack.c.l.b16 %v1149
    %v1221 = vunpack.c.l.b16 %v1150
    %v1222 = vunpack.c.l.b16 %v1151
    %v1223 = vunpack.c.l.b16 %v1152
    %v1224 = vunpack.c.l.b16 %v1153
    %v1225 = vunpack.c.l.b16 %v1154
    %v1226 = vunpack.c.l.b16 %v1155
    %v1227 = vunpack.c.l.b16 %v1156
    %v1228 = vunpack.c.l.b16 %v1157
    %v1229 = vunpack.c.l.b16 %v1158
    %v1230 = vunpack.c.l.b16 %v1159
    %v1231 = vunpack.c.l.b16 %v1160
    %v1232 = vunpack.c.l.b16 %v1161
    %v1233 = vunpack.c.l.b16 %v1162
    %v1234 = vunpack.c.l.b16 %v1163
    %v1235 = vunpack.c.l.b16 %v1164
    %v1236 = vunpack.c.l.b16 %v1165
    %v1237 = vunpack.c.l.b16 %v1166
    %v1238 = vunpack.c.l.b16 %v1167
    %v1239 = vunpack.c.l.b16 %v1168
    %v1240 = vunpack.c.l.b16 %v1169
    %v1241 = vunpack.c.l.b16 %v1170
    %v1242 = vunpack.c.l.b16 %v1171
    %v1243 = vpack.c.b16 %v1212, %v1211
    %v1244 = vpack.c.b16 %v1214, %v1213
    %v1245 = vpack.c.b16 %v1216, %v1215
    %v1246 = vpack.c.b16 %v1218, %v1217
    %v1247 = vpack.c.b16 %v1220, %v1219
    %v1248 = vpack.c.b16 %v1222, %v1221
    %v1249 = vpack.c.b16 %v1224, %v1223
    %v1250 = vpack.c.b16 %v1226, %v1225
    %v1251 = vpack.c.b16 %v1228, %v1227
    %v1252 = vpack.c.b16 %v1230, %v1229
    %v1253 = vpack.c.b16 %v1232, %v1231
    %v1254 = vpack.c.b16 %v1234, %v1233
    %v1255 = vpack.c.b16 %v1236, %v1235
    %v1256 = vpack.c.b16 %v1238, %v1237
    %v1257 = vpack.c.b16 %v1240, %v1239
    %v1258 = vpack.c.b16 %v1242, %v1241
    %1275 = vmatprep.subr.bf16.mxu0 0
    %1276 = vmatpush1.bf16.msra.mxu0 %v1250
    %1277 = vmatprep.subr.bf16.mxu0 0
    %1278 = vmatpush1.bf16.msra.mxu0 %v1249
    %1279 = vmatprep.subr.bf16.mxu0 0
    %1280 = vmatpush1.bf16.msra.mxu0 %v1248
    %1281 = vmatprep.subr.bf16.mxu0 0
    %1282 = vmatpush1.bf16.msra.mxu0 %v1247
    %1283 = vmatprep.subr.bf16.mxu0 0
    %1284 = vmatpush1.bf16.msra.mxu0 %v1246
    %1285 = vmatprep.subr.bf16.mxu0 0
    %1286 = vmatpush1.bf16.msra.mxu0 %v1245
    %1287 = vmatprep.subr.bf16.mxu0 0
    %1288 = vmatpush1.bf16.msra.mxu0 %v1244
    %1289 = vmatprep.subr.bf16.mxu0 0
    %1290 = vmatpush1.bf16.msra.mxu0 %v1243
    %1291 = vmatprep.subr.bf16.mxu0 0
    %1292 = vmatpush2.bf16.msra.mxu0 %v1258
    %1293 = vmatprep.subr.bf16.mxu0 0
    %1294 = vmatpush2.bf16.msra.mxu0 %v1257
    %1295 = vmatprep.subr.bf16.mxu0 0
    %1296 = vmatpush2.bf16.msra.mxu0 %v1256
    %1297 = vmatprep.subr.bf16.mxu0 0
    %1298 = vmatpush2.bf16.msra.mxu0 %v1255
    %1299 = vmatprep.subr.bf16.mxu0 0
    %1300 = vmatpush2.bf16.msra.mxu0 %v1254
    %1301 = vmatprep.subr.bf16.mxu0 0
    %1302 = vmatpush2.bf16.msra.mxu0 %v1253
    %1303 = vmatprep.subr.bf16.mxu0 0
    %1304 = vmatpush2.bf16.msra.mxu0 %v1252
    %1305 = vmatprep.subr.bf16.mxu0 0
    %1306 = vmatpush2.bf16.msra.mxu0 %v1251
    %1307 = vmatprep.mubr.bf16.mxu0 %v1139
    %1308 = vmatmul.mubr.bf16.gmra.mxu0 %v1138
    %v1309 = vpop.f32.mrf.mxu0
    %v1310 = vadd.f32 %v1177, %v1309
    %v1311 = vpop.f32.mrf.mxu0
    %v1312 = vpop.f32.mrf.mxu0
    %v1313 = vadd.f32 %v1177, %v1312
    %v1314 = vpop.f32.mrf.mxu0
    %1315 = vdwg.mxu0
    %v1316 = vadd.f32 %v980, %v1310
    %v1317 = vadd.f32 %v981, %v1313
    %v1318 = vld [vmem:[%s17] sm:$0x1]
    %v1319 = vld [vmem:[%s18] sm:$0x1]
    %1320 = vadd.xlane.f32.xlu0 %v1316
    %v1321 = vpop.xlane.xlu0 %1320
    %1322 = vadd.xlane.f32.xlu0 %v1317
    %v1323 = vpop.xlane.xlu0 %1322
    %v1324 = vmul.f32 %v1321, %v947
    %v1325 = vmul.f32 %v1323, %v947
    %v1326 = vsub.f32 %v1316, %v1324
    %v1327 = vsub.f32 %v1317, %v1325
    %v1328 = vmul.f32 %v1326, %v1326
    %v1329 = vmul.f32 %v1327, %v1327
    %1330 = vadd.xlane.f32.xlu0 %v1328
    %v1331 = vpop.xlane.xlu0 %1330
    %1332 = vadd.xlane.f32.xlu0 %v1329
    %v1333 = vpop.xlane.xlu0 %1332
    %v1334 = vmul.f32 %v1331, %v947
    %v1335 = vmul.f32 %v1333, %v947
    %v1336 = vadd.f32 %v1334, 1e-05
    %v1337 = vadd.f32 %v1335, 1e-05
    %v1338 = vrsqrt.pop %v1336
    %v1339 = vrsqrt.pop %v1337
    %v1340 = vmul.f32 %v1326, %v1338
    %v1341 = vmul.f32 %v1327, %v1339
    %v1343 = vlaneseq
    %v1344 = vshrl.u32 %v1343, 7
    %v1345 = vsub.s32 0, %v1344
    %v1346 = vrot.slane %v1318, %v1345
    %v1348 = vmul.f32 %v1340, %v1346
    %v1349 = vmul.f32 %v1341, %v1346
    %v1351 = vlaneseq
    %v1352 = vshrl.u32 %v1351, 7
    %v1353 = vsub.s32 0, %v1352
    %v1354 = vrot.slane %v1319, %v1353
    %v1356 = vadd.f32 %v1348, %v1354
    %v1357 = vadd.f32 %v1349, %v1354
    %v1358 = vpack.c.bf16 %v1357, %v1356
    %s1359 = scalar_lea.vmem [#allocation10], 192
    %v1360 = vld [vmem:[%s1359] sm:$0xff]
    %v1361 = vld [vmem:[%s1359 + $0x8] sm:$0xf]
    %v1362 = vld [vmem:[%s1359 + $0xc] sm:$0xff]
    %v1363 = vld [vmem:[%s1359 + $0x14] sm:$0xf]
    %v1364 = vld [vmem:[%s1359 + $0x18] sm:$0xff]
    %v1365 = vld [vmem:[%s1359 + $0x20] sm:$0xf]
    %v1366 = vld [vmem:[%s1359 + $0x24] sm:$0xff]
    %v1367 = vld [vmem:[%s1359 + $0x2c] sm:$0xf]
    %v1368 = vld [vmem:[%s1359 + $0x30] sm:$0xff]
    %v1369 = vld [vmem:[%s1359 + $0x38] sm:$0xf]
    %v1370 = vld [vmem:[%s1359 + $0x3c] sm:$0xff]
    %v1371 = vld [vmem:[%s1359 + $0x44] sm:$0xf]
    %v1372 = vld [vmem:[%s1359 + $0x48] sm:$0xff]
    %v1373 = vld [vmem:[%s1359 + $0x50] sm:$0xf]
    %v1374 = vld [vmem:[%s1359 + $0x54] sm:$0xff]
    %v1375 = vld [vmem:[%s1359 + $0x5c] sm:$0xf]
    %v1376 = vld [vmem:[%s1359 + $0x60] sm:$0xff]
    %v1377 = vld [vmem:[%s1359 + $0x68] sm:$0xf]
    %v1378 = vld [vmem:[%s1359 + $0x6c] sm:$0xff]
    %v1379 = vld [vmem:[%s1359 + $0x74] sm:$0xf]
    %v1380 = vld [vmem:[%s1359 + $0x78] sm:$0xff]
    %v1381 = vld [vmem:[%s1359 + $0x80] sm:$0xf]
    %v1382 = vld [vmem:[%s1359 + $0x84] sm:$0xff]
    %v1383 = vld [vmem:[%s1359 + $0x8c] sm:$0xf]
    %v1384 = vld [vmem:[%s1359 + $0x90] sm:$0xff]
    %v1385 = vld [vmem:[%s1359 + $0x98] sm:$0xf]
    %v1386 = vld [vmem:[%s1359 + $0x9c] sm:$0xff]
    %v1387 = vld [vmem:[%s1359 + $0xa4] sm:$0xf]
    %v1388 = vld [vmem:[%s1359 + $0xa8] sm:$0xff]
    %v1389 = vld [vmem:[%s1359 + $0xb0] sm:$0xf]
    %v1390 = vld [vmem:[%s1359 + $0xb4] sm:$0xff]
    %v1391 = vld [vmem:[%s1359 + $0xbc] sm:$0xf]
    %s1392 = scalar_lea.vmem [#allocation11], 3
    %v1393 = vld [vmem:[%s1392] sm:$0x7]
    %v1395 = vlaneseq
    %v1396 = vshrl.u32 %v1395, 7
    %v1397 = vsub.s32 0, %v1396
    %v1398 = vrot.slane %v1393, %v1397
    %v1399 = vlaneseq
    %v1400 = vshrl.u32 %v1399, 7
    %v1401 = vsub.s32 1, %v1400
    %v1402 = vrot.slane %v1393, %v1401
    %v1403 = vlaneseq
    %v1404 = vshrl.u32 %v1403, 7
    %v1405 = vsub.s32 2, %v1404
    %v1406 = vrot.slane %v1393, %v1405
    %v1442 = vunpack.c.l.b16 %v1360
    %v1443 = vunpack.c.h.b16 %v1360
    %v1444 = vunpack.c.l.b16 %v1361
    %v1445 = vunpack.c.l.b16 %v1362
    %v1446 = vunpack.c.h.b16 %v1362
    %v1447 = vunpack.c.l.b16 %v1363
    %v1448 = vunpack.c.l.b16 %v1364
    %v1449 = vunpack.c.h.b16 %v1364
    %v1450 = vunpack.c.l.b16 %v1365
    %v1451 = vunpack.c.l.b16 %v1366
    %v1452 = vunpack.c.h.b16 %v1366
    %v1453 = vunpack.c.l.b16 %v1367
    %v1454 = vunpack.c.l.b16 %v1368
    %v1455 = vunpack.c.h.b16 %v1368
    %v1456 = vunpack.c.l.b16 %v1369
    %v1457 = vunpack.c.l.b16 %v1370
    %v1458 = vunpack.c.h.b16 %v1370
    %v1459 = vunpack.c.l.b16 %v1371
    %v1460 = vunpack.c.l.b16 %v1372
    %v1461 = vunpack.c.h.b16 %v1372
    %v1462 = vunpack.c.l.b16 %v1373
    %v1463 = vunpack.c.l.b16 %v1374
    %v1464 = vunpack.c.h.b16 %v1374
    %v1465 = vunpack.c.l.b16 %v1375
    %v1466 = vunpack.c.l.b16 %v1376
    %v1467 = vunpack.c.h.b16 %v1376
    %v1468 = vunpack.c.l.b16 %v1377
    %v1469 = vunpack.c.l.b16 %v1378
    %v1470 = vunpack.c.h.b16 %v1378
    %v1471 = vunpack.c.l.b16 %v1379
    %v1472 = vunpack.c.l.b16 %v1380
    %v1473 = vunpack.c.h.b16 %v1380
    %v1474 = vunpack.c.l.b16 %v1381
    %v1475 = vunpack.c.l.b16 %v1382
    %v1476 = vunpack.c.h.b16 %v1382
    %v1477 = vunpack.c.l.b16 %v1383
    %v1478 = vunpack.c.l.b16 %v1384
    %v1479 = vunpack.c.h.b16 %v1384
    %v1480 = vunpack.c.l.b16 %v1385
    %v1481 = vunpack.c.l.b16 %v1386
    %v1482 = vunpack.c.h.b16 %v1386
    %v1483 = vunpack.c.l.b16 %v1387
    %v1484 = vunpack.c.l.b16 %v1388
    %v1485 = vunpack.c.h.b16 %v1388
    %v1486 = vunpack.c.l.b16 %v1389
    %v1487 = vunpack.c.l.b16 %v1390
    %v1488 = vunpack.c.h.b16 %v1390
    %v1489 = vunpack.c.l.b16 %v1391
    %v1490 = vpack.c.b16 %v1445, %v1442
    %v1491 = vpack.c.b16 %v1446, %v1443
    %v1492 = vpack.c.b16 %v1447, %v1444
    %v1493 = vpack.c.b16 %v1451, %v1448
    %v1494 = vpack.c.b16 %v1452, %v1449
    %v1495 = vpack.c.b16 %v1453, %v1450
    %v1496 = vpack.c.b16 %v1457, %v1454
    %v1497 = vpack.c.b16 %v1458, %v1455
    %v1498 = vpack.c.b16 %v1459, %v1456
    %v1499 = vpack.c.b16 %v1463, %v1460
    %v1500 = vpack.c.b16 %v1464, %v1461
    %v1501 = vpack.c.b16 %v1465, %v1462
    %v1502 = vpack.c.b16 %v1469, %v1466
    %v1503 = vpack.c.b16 %v1470, %v1467
    %v1504 = vpack.c.b16 %v1471, %v1468
    %v1505 = vpack.c.b16 %v1475, %v1472
    %v1506 = vpack.c.b16 %v1476, %v1473
    %v1507 = vpack.c.b16 %v1477, %v1474
    %v1508 = vpack.c.b16 %v1481, %v1478
    %v1509 = vpack.c.b16 %v1482, %v1479
    %v1510 = vpack.c.b16 %v1483, %v1480
    %v1511 = vpack.c.b16 %v1487, %v1484
    %v1512 = vpack.c.b16 %v1488, %v1485
    %v1513 = vpack.c.b16 %v1489, %v1486
    %1538 = vmatprep.subr.bf16.mxu0 %v1512
    %1539 = vmatpush1.bf16.msra.mxu0 %v1511
    %1540 = vmatprep.subr.bf16.mxu0 %v1509
    %1541 = vmatpush1.bf16.msra.mxu0 %v1508
    %1542 = vmatprep.subr.bf16.mxu0 %v1506
    %1543 = vmatpush1.bf16.msra.mxu0 %v1505
    %1544 = vmatprep.subr.bf16.mxu0 %v1503
    %1545 = vmatpush1.bf16.msra.mxu0 %v1502
    %1546 = vmatprep.subr.bf16.mxu0 %v1500
    %1547 = vmatpush1.bf16.msra.mxu0 %v1499
    %1548 = vmatprep.subr.bf16.mxu0 %v1497
    %1549 = vmatpush1.bf16.msra.mxu0 %v1496
    %1550 = vmatprep.subr.bf16.mxu0 %v1494
    %1551 = vmatpush1.bf16.msra.mxu0 %v1493
    %1552 = vmatprep.subr.bf16.mxu0 %v1491
    %1553 = vmatpush1.bf16.msra.mxu0 %v1490
    %1554 = vmatprep.subr.bf16.mxu0 0
    %1555 = vmatpush2.bf16.msra.mxu0 0
    %1556 = vmatprep.subr.bf16.mxu0 0
    %1557 = vmatpush2.bf16.msra.mxu0 0
    %1558 = vmatprep.subr.bf16.mxu0 0
    %1559 = vmatpush2.bf16.msra.mxu0 0
    %1560 = vmatprep.subr.bf16.mxu0 0
    %1561 = vmatpush2.bf16.msra.mxu0 0
    %1562 = vmatprep.subr.bf16.mxu0 0
    %1563 = vmatpush2.bf16.msra.mxu0 0
    %1564 = vmatprep.subr.bf16.mxu0 0
    %1565 = vmatpush2.bf16.msra.mxu0 0
    %1566 = vmatprep.subr.bf16.mxu0 0
    %1567 = vmatpush2.bf16.msra.mxu0 0
    %1568 = vmatprep.subr.bf16.mxu0 0
    %1569 = vmatpush2.bf16.msra.mxu0 0
    %1570 = vmatprep.mubr.bf16.mxu0 0
    %1571 = vmatmul.mubr.bf16.gmra.mxu0 %v1358
    %v1572 = vpop.f32.mrf.mxu0
    %v1573 = vadd.f32 %v1398, %v1572
    %v1574 = vpop.f32.mrf.mxu0
    %v1575 = vadd.f32 %v1402, %v1574
    %v1576 = vpop.f32.mrf.mxu0
    %v1577 = vadd.f32 %v1398, %v1576
    %v1578 = vpop.f32.mrf.mxu0
    %v1579 = vadd.f32 %v1402, %v1578
    %1580 = vdwg.mxu0
    %1581 = vmatprep.subr.bf16.mxu0 0
    %1582 = vmatpush1.bf16.msra.mxu0 %v1513
    %1583 = vmatprep.subr.bf16.mxu0 0
    %1584 = vmatpush1.bf16.msra.mxu0 %v1510
    %1585 = vmatprep.subr.bf16.mxu0 0
    %1586 = vmatpush1.bf16.msra.mxu0 %v1507
    %1587 = vmatprep.subr.bf16.mxu0 0
    %1588 = vmatpush1.bf16.msra.mxu0 %v1504
    %1589 = vmatprep.subr.bf16.mxu0 0
    %1590 = vmatpush1.bf16.msra.mxu0 %v1501
    %1591 = vmatprep.subr.bf16.mxu0 0
    %1592 = vmatpush1.bf16.msra.mxu0 %v1498
    %1593 = vmatprep.subr.bf16.mxu0 0
    %1594 = vmatpush1.bf16.msra.mxu0 %v1495
    %1595 = vmatprep.subr.bf16.mxu0 0
    %1596 = vmatpush1.bf16.msra.mxu0 %v1492
    %1597 = vmatprep.subr.bf16.mxu0 0
    %1598 = vmatpush2.bf16.msra.mxu0 0
    %1599 = vmatprep.subr.bf16.mxu0 0
    %1600 = vmatpush2.bf16.msra.mxu0 0
    %1601 = vmatprep.subr.bf16.mxu0 0
    %1602 = vmatpush2.bf16.msra.mxu0 0
    %1603 = vmatprep.subr.bf16.mxu0 0
    %1604 = vmatpush2.bf16.msra.mxu0 0
    %1605 = vmatprep.subr.bf16.mxu0 0
    %1606 = vmatpush2.bf16.msra.mxu0 0
    %1607 = vmatprep.subr.bf16.mxu0 0
    %1608 = vmatpush2.bf16.msra.mxu0 0
    %1609 = vmatprep.subr.bf16.mxu0 0
    %1610 = vmatpush2.bf16.msra.mxu0 0
    %1611 = vmatprep.subr.bf16.mxu0 0
    %1612 = vmatpush2.bf16.msra.mxu0 0
    %1613 = vmatprep.mubr.bf16.mxu0 0
    %1614 = vmatmul.mubr.bf16.gmra.mxu0 %v1358
    %v1615 = vpop.f32.mrf.mxu0
    %v1616 = vadd.f32 %v1406, %v1615
    %v1617 = vpop.f32.mrf.mxu0
    %v1618 = vpop.f32.mrf.mxu0
    %v1619 = vadd.f32 %v1406, %v1618
    %v1620 = vpop.f32.mrf.mxu0
    %1621 = vdwg.mxu0
    %v1622 = vmul.f32 %v1573, 0.25
    %v1623 = vmul.f32 %v1577, 0.25
    %v1624 = vpack.c.bf16 %v1623, %v1622
    %v1625 = vpack.c.bf16 %v1579, %v1575
    %v1626 = vpack.c.bf16 %v1619, %v1616
    %v1627 = vmul.bf16 %v1625, %v618
    %v1628 = vmul.bf16 %v1625, %v619
    %v1629 = vmul.bf16 %v1625, %v620
    %v1630 = vmul.bf16 %v1625, %v621
    %v1631 = vmul.bf16 %v1625, %v622
    %v1632 = vmul.bf16 %v1625, %v623
    %v1633 = vmul.bf16 %v1625, %v624
    %v1634 = vmul.bf16 %v1625, %v625
    %v1635 = vmul.bf16 %v1626, %v618
    %v1636 = vmul.bf16 %v1626, %v619
    %v1637 = vmul.bf16 %v1626, %v620
    %v1638 = vmul.bf16 %v1626, %v621
    %v1639 = vmul.bf16 %v1626, %v622
    %v1640 = vmul.bf16 %v1626, %v623
    %v1641 = vmul.bf16 %v1626, %v624
    %v1642 = vmul.bf16 %v1626, %v625
    %1643 = vmatprep.subr.bf16.mxu0 0
    %1644 = vmatpush1.bf16.xpose.msra.mxu0 %v1634
    %1645 = vmatprep.subr.bf16.mxu0 0
    %1646 = vmatpush1.bf16.xpose.msra.mxu0 %v1633
    %1647 = vmatprep.subr.bf16.mxu0 0
    %1648 = vmatpush1.bf16.xpose.msra.mxu0 %v1632
    %1649 = vmatprep.subr.bf16.mxu0 0
    %1650 = vmatpush1.bf16.xpose.msra.mxu0 %v1631
    %1651 = vmatprep.subr.bf16.mxu0 0
    %1652 = vmatpush1.bf16.xpose.msra.mxu0 %v1630
    %1653 = vmatprep.subr.bf16.mxu0 0
    %1654 = vmatpush1.bf16.xpose.msra.mxu0 %v1629
    %1655 = vmatprep.subr.bf16.mxu0 0
    %1656 = vmatpush1.bf16.xpose.msra.mxu0 %v1628
    %1657 = vmatprep.subr.bf16.mxu0 0
    %1658 = vmatpush1.bf16.xpose.msra.mxu0 %v1627
    %1659 = vmatprep.subr.bf16.mxu0 0
    %1660 = vmatpush2.bf16.xpose.msra.mxu0 0
    %1661 = vmatprep.subr.bf16.mxu0 0
    %1662 = vmatpush2.bf16.xpose.msra.mxu0 0
    %1663 = vmatprep.subr.bf16.mxu0 0
    %1664 = vmatpush2.bf16.xpose.msra.mxu0 0
    %1665 = vmatprep.subr.bf16.mxu0 0
    %1666 = vmatpush2.bf16.xpose.msra.mxu0 0
    %1667 = vmatprep.subr.bf16.mxu0 0
    %1668 = vmatpush2.bf16.xpose.msra.mxu0 0
    %1669 = vmatprep.subr.bf16.mxu0 0
    %1670 = vmatpush2.bf16.xpose.msra.mxu0 0
    %1671 = vmatprep.subr.bf16.mxu0 0
    %1672 = vmatpush2.bf16.xpose.msra.mxu0 0
    %1673 = vmatprep.subr.bf16.mxu0 0
    %1674 = vmatpush2.bf16.xpose.msra.mxu0 0
    %1675 = vmatprep.mubr.bf16.mxu0 0
    %1676 = vmatmul.mubr.bf16.gmra.mxu0 %v1624
    %v1677 = vpop.f32.mrf.mxu0
    %v1678 = vadd.f32 %v301, %v1677
    %v1679 = vpop.f32.mrf.mxu0
    %v1680 = vpop.f32.mrf.mxu0
    %v1681 = vadd.f32 %v302, %v1680
    %v1682 = vpop.f32.mrf.mxu0
    %1683 = vdwg.mxu0
    %1684 = vmax.xlane.f32.xlu0 %v1678
    %v1685 = vpop.xlane.xlu0 %1684
    %1686 = vmax.xlane.f32.xlu0 %v1681
    %v1687 = vpop.xlane.xlu0 %1686
    %v1688 = vsub.f32 %v1678, %v1685
    %v1689 = vsub.f32 %v1681, %v1687
    %v1690 = vmul.f32 %v1688, 1.442695
    %v1691 = vpow.pop %v1690
    %v1692 = vmul.f32 %v1689, 1.442695
    %v1693 = vpow.pop %v1692
    %1694 = vmatprep.subr.mxu0 0.0
    %1695 = vmatpush1.msra.mxu0 %v318
    %1696 = vmatprep.subr.mxu0 0.0
    %1697 = vmatpush1.msra.mxu0 %v317
    %1698 = vmatprep.subr.mxu0 0.0
    %1699 = vmatpush1.msra.mxu0 %v316
    %1700 = vmatprep.subr.mxu0 0.0
    %1701 = vmatpush1.msra.mxu0 %v315
    %1702 = vmatprep.subr.mxu0 0.0
    %1703 = vmatpush1.msra.mxu0 %v314
    %1704 = vmatprep.subr.mxu0 0.0
    %1705 = vmatpush1.msra.mxu0 %v313
    %1706 = vmatprep.subr.mxu0 0.0
    %1707 = vmatpush1.msra.mxu0 %v312
    %1708 = vmatprep.subr.mxu0 0.0
    %1709 = vmatpush1.msra.mxu0 %v311
    %1710 = vmatprep.subr.mxu0 0.0
    %1711 = vmatpush1.msra.mxu0 %v310
    %1712 = vmatprep.subr.mxu0 0.0
    %1713 = vmatpush1.msra.mxu0 %v309
    %1714 = vmatprep.subr.mxu0 0.0
    %1715 = vmatpush1.msra.mxu0 %v308
    %1716 = vmatprep.subr.mxu0 0.0
    %1717 = vmatpush1.msra.mxu0 %v307
    %1718 = vmatprep.subr.mxu0 0.0
    %1719 = vmatpush1.msra.mxu0 %v306
    %1720 = vmatprep.subr.mxu0 0.0
    %1721 = vmatpush1.msra.mxu0 %v305
    %1722 = vmatprep.subr.mxu0 0.0
    %1723 = vmatpush1.msra.mxu0 %v304
    %1724 = vmatprep.subr.mxu0 0.0
    %1725 = vmatpush1.msra.mxu0 %v303
    %1726 = vmatprep.subr.mxu0 0.0
    %1727 = vmatpush2.msra.mxu0 0.0
    %1728 = vmatprep.subr.mxu0 0.0
    %1729 = vmatpush2.msra.mxu0 0.0
    %1730 = vmatprep.subr.mxu0 0.0
    %1731 = vmatpush2.msra.mxu0 0.0
    %1732 = vmatprep.subr.mxu0 0.0
    %1733 = vmatpush2.msra.mxu0 0.0
    %1734 = vmatprep.subr.mxu0 0.0
    %1735 = vmatpush2.msra.mxu0 0.0
    %1736 = vmatprep.subr.mxu0 0.0
    %1737 = vmatpush2.msra.mxu0 0.0
    %1738 = vmatprep.subr.mxu0 0.0
    %1739 = vmatpush2.msra.mxu0 0.0
    %1740 = vmatprep.subr.mxu0 0.0
    %1741 = vmatpush2.msra.mxu0 0.0
    %1742 = vmatprep.subr.mxu0 0.0
    %1743 = vmatpush2.msra.mxu0 0.0
    %1744 = vmatprep.subr.mxu0 0.0
    %1745 = vmatpush2.msra.mxu0 0.0
    %1746 = vmatprep.subr.mxu0 0.0
    %1747 = vmatpush2.msra.mxu0 0.0
    %1748 = vmatprep.subr.mxu0 0.0
    %1749 = vmatpush2.msra.mxu0 0.0
    %1750 = vmatprep.subr.mxu0 0.0
    %1751 = vmatpush2.msra.mxu0 0.0
    %1752 = vmatprep.subr.mxu0 0.0
    %1753 = vmatpush2.msra.mxu0 0.0
    %1754 = vmatprep.subr.mxu0 0.0
    %1755 = vmatpush2.msra.mxu0 0.0
    %1756 = vmatprep.subr.mxu0 0.0
    %1757 = vmatpush2.msra.mxu0 0.0
    %1758 = vmatprep.mubr.f32.mxu0 0.0
    %1759 = vmatmul.mubr.f32.gmra.mxu0 %v1691
    %v1760 = vpop.f32.mrf.mxu0
    %v1761 = vadd.f32 0.0, %v1760
    %v1762 = vpop.f32.mrf.mxu0
    %1763 = vmatprep.mubr.f32.mxu0 0.0
    %1764 = vmatmul.mubr.f32.gmra.mxu0 %v1693
    %v1765 = vpop.f32.mrf.mxu0
    %v1766 = vadd.f32 0.0, %v1765
    %v1767 = vpop.f32.mrf.mxu0
    %1768 = vdwg.mxu0
    %vm1769 = vcmp.gt.f32.partialorder %v1761, 0.0
    %vm1770 = vcmp.gt.f32.partialorder %v1766, 0.0
    %v1771 = vsel %vm1769, %v1761, 1.0
    %v1772 = vsel %vm1770, %v1766, 1.0
    %v1773 = vrcp.pop %v1771
    %v1774 = vrcp.pop %v1772
    %v1775 = vmul.f32 %v1691, %v1773
    %v1776 = vmul.f32 %v1693, %v1774
    %v1777 = vpack.c.bf16 %v1776, %v1775
    %1778 = vmatprep.subr.bf16.mxu0 0
    %1779 = vmatpush1.bf16.msra.mxu0 %v1642
    %1780 = vmatprep.subr.bf16.mxu0 0
    %1781 = vmatpush1.bf16.msra.mxu0 %v1641
    %1782 = vmatprep.subr.bf16.mxu0 0
    %1783 = vmatpush1.bf16.msra.mxu0 %v1640
    %1784 = vmatprep.subr.bf16.mxu0 0
    %1785 = vmatpush1.bf16.msra.mxu0 %v1639
    %1786 = vmatprep.subr.bf16.mxu0 0
    %1787 = vmatpush1.bf16.msra.mxu0 %v1638
    %1788 = vmatprep.subr.bf16.mxu0 0
    %1789 = vmatpush1.bf16.msra.mxu0 %v1637
    %1790 = vmatprep.subr.bf16.mxu0 0
    %1791 = vmatpush1.bf16.msra.mxu0 %v1636
    %1792 = vmatprep.subr.bf16.mxu0 0
    %1793 = vmatpush1.bf16.msra.mxu0 %v1635
    %1794 = vmatprep.subr.bf16.mxu0 0
    %1795 = vmatpush2.bf16.msra.mxu0 0
    %1796 = vmatprep.subr.bf16.mxu0 0
    %1797 = vmatpush2.bf16.msra.mxu0 0
    %1798 = vmatprep.subr.bf16.mxu0 0
    %1799 = vmatpush2.bf16.msra.mxu0 0
    %1800 = vmatprep.subr.bf16.mxu0 0
    %1801 = vmatpush2.bf16.msra.mxu0 0
    %1802 = vmatprep.subr.bf16.mxu0 0
    %1803 = vmatpush2.bf16.msra.mxu0 0
    %1804 = vmatprep.subr.bf16.mxu0 0
    %1805 = vmatpush2.bf16.msra.mxu0 0
    %1806 = vmatprep.subr.bf16.mxu0 0
    %1807 = vmatpush2.bf16.msra.mxu0 0
    %1808 = vmatprep.subr.bf16.mxu0 0
    %1809 = vmatpush2.bf16.msra.mxu0 0
    %1810 = vmatprep.mubr.bf16.mxu0 0
    %1811 = vmatmul.mubr.bf16.gmra.mxu0 %v1777
    %v1812 = vpop.f32.mrf.mxu0
    %v1813 = vadd.f32 0.0, %v1812
    %v1814 = vpop.f32.mrf.mxu0
    %v1815 = vpop.f32.mrf.mxu0
    %v1816 = vadd.f32 0.0, %v1815
    %v1817 = vpop.f32.mrf.mxu0
    %1818 = vdwg.mxu0
    %v1819 = vpack.c.bf16 %v1816, %v1813
    %s1820 = scalar_lea.vmem [#allocation13], 64
    %v1821 = vld [vmem:[%s1820] sm:$0xf]
    %v1822 = vld [vmem:[%s1820 + $0x4] sm:$0xf]
    %v1823 = vld [vmem:[%s1820 + $0x8] sm:$0xf]
    %v1824 = vld [vmem:[%s1820 + $0xc] sm:$0xf]
    %v1825 = vld [vmem:[%s1820 + $0x10] sm:$0xf]
    %v1826 = vld [vmem:[%s1820 + $0x14] sm:$0xf]
    %v1827 = vld [vmem:[%s1820 + $0x18] sm:$0xf]
    %v1828 = vld [vmem:[%s1820 + $0x1c] sm:$0xf]
    %v1829 = vld [vmem:[%s1820 + $0x20] sm:$0xf]
    %v1830 = vld [vmem:[%s1820 + $0x24] sm:$0xf]
    %v1831 = vld [vmem:[%s1820 + $0x28] sm:$0xf]
    %v1832 = vld [vmem:[%s1820 + $0x2c] sm:$0xf]
    %v1833 = vld [vmem:[%s1820 + $0x30] sm:$0xf]
    %v1834 = vld [vmem:[%s1820 + $0x34] sm:$0xf]
    %v1835 = vld [vmem:[%s1820 + $0x38] sm:$0xf]
    %v1836 = vld [vmem:[%s1820 + $0x3c] sm:$0xf]
    %s1837 = scalar_lea.vmem %s10, 1
    %v1838 = vld [vmem:[%s1837] sm:$0x1]
    %v1840 = vlaneseq
    %v1841 = vshrl.u32 %v1840, 7
    %v1842 = vsub.s32 0, %v1841
    %v1843 = vrot.slane %v1838, %v1842
    %v1861 = vunpack.c.l.b16 %v1821
    %v1862 = vunpack.c.l.b16 %v1822
    %v1863 = vunpack.c.l.b16 %v1823
    %v1864 = vunpack.c.l.b16 %v1824
    %v1865 = vunpack.c.l.b16 %v1825
    %v1866 = vunpack.c.l.b16 %v1826
    %v1867 = vunpack.c.l.b16 %v1827
    %v1868 = vunpack.c.l.b16 %v1828
    %v1869 = vunpack.c.l.b16 %v1829
    %v1870 = vunpack.c.l.b16 %v1830
    %v1871 = vunpack.c.l.b16 %v1831
    %v1872 = vunpack.c.l.b16 %v1832
    %v1873 = vunpack.c.l.b16 %v1833
    %v1874 = vunpack.c.l.b16 %v1834
    %v1875 = vunpack.c.l.b16 %v1835
    %v1876 = vunpack.c.l.b16 %v1836
    %v1877 = vpack.c.b16 %v1862, %v1861
    %v1878 = vpack.c.b16 %v1864, %v1863
    %v1879 = vpack.c.b16 %v1866, %v1865
    %v1880 = vpack.c.b16 %v1868, %v1867
    %v1881 = vpack.c.b16 %v1870, %v1869
    %v1882 = vpack.c.b16 %v1872, %v1871
    %v1883 = vpack.c.b16 %v1874, %v1873
    %v1884 = vpack.c.b16 %v1876, %v1875
    %1893 = vmatprep.subr.bf16.mxu0 0
    %1894 = vmatpush1.bf16.msra.mxu0 %v1884
    %1895 = vmatprep.subr.bf16.mxu0 0
    %1896 = vmatpush1.bf16.msra.mxu0 %v1883
    %1897 = vmatprep.subr.bf16.mxu0 0
    %1898 = vmatpush1.bf16.msra.mxu0 %v1882
    %1899 = vmatprep.subr.bf16.mxu0 0
    %1900 = vmatpush1.bf16.msra.mxu0 %v1881
    %1901 = vmatprep.subr.bf16.mxu0 0
    %1902 = vmatpush1.bf16.msra.mxu0 %v1880
    %1903 = vmatprep.subr.bf16.mxu0 0
    %1904 = vmatpush1.bf16.msra.mxu0 %v1879
    %1905 = vmatprep.subr.bf16.mxu0 0
    %1906 = vmatpush1.bf16.msra.mxu0 %v1878
    %1907 = vmatprep.subr.bf16.mxu0 0
    %1908 = vmatpush1.bf16.msra.mxu0 %v1877
    %1909 = vmatprep.subr.bf16.mxu0 0
    %1910 = vmatpush2.bf16.msra.mxu0 0
    %1911 = vmatprep.subr.bf16.mxu0 0
    %1912 = vmatpush2.bf16.msra.mxu0 0
    %1913 = vmatprep.subr.bf16.mxu0 0
    %1914 = vmatpush2.bf16.msra.mxu0 0
    %1915 = vmatprep.subr.bf16.mxu0 0
    %1916 = vmatpush2.bf16.msra.mxu0 0
    %1917 = vmatprep.subr.bf16.mxu0 0
    %1918 = vmatpush2.bf16.msra.mxu0 0
    %1919 = vmatprep.subr.bf16.mxu0 0
    %1920 = vmatpush2.bf16.msra.mxu0 0
    %1921 = vmatprep.subr.bf16.mxu0 0
    %1922 = vmatpush2.bf16.msra.mxu0 0
    %1923 = vmatprep.subr.bf16.mxu0 0
    %1924 = vmatpush2.bf16.msra.mxu0 0
    %1925 = vmatprep.mubr.bf16.mxu0 0
    %1926 = vmatmul.mubr.bf16.gmra.mxu0 %v1819
    %v1927 = vpop.f32.mrf.mxu0
    %v1928 = vadd.f32 %v1843, %v1927
    %v1929 = vpop.f32.mrf.mxu0
    %v1930 = vpop.f32.mrf.mxu0
    %v1931 = vadd.f32 %v1843, %v1930
    %v1932 = vpop.f32.mrf.mxu0
    %1933 = vdwg.mxu0
    %v1934 = vadd.f32 %v1356, %v1928
    %v1935 = vadd.f32 %v1357, %v1931
    %s1936 = scalar_lea.vmem %s11, 1
    %v1937 = vld [vmem:[%s1936] sm:$0x1]
    %s1938 = scalar_lea.vmem %s12, 1
    %v1939 = vld [vmem:[%s1938] sm:$0x1]
    %1940 = vadd.xlane.f32.xlu0 %v1934
    %v1941 = vpop.xlane.xlu0 %1940
    %1942 = vadd.xlane.f32.xlu0 %v1935
    %v1943 = vpop.xlane.xlu0 %1942
    %v1944 = vmul.f32 %v1941, %v947
    %v1945 = vmul.f32 %v1943, %v947
    %v1946 = vsub.f32 %v1934, %v1944
    %v1947 = vsub.f32 %v1935, %v1945
    %v1948 = vmul.f32 %v1946, %v1946
    %v1949 = vmul.f32 %v1947, %v1947
    %1950 = vadd.xlane.f32.xlu0 %v1948
    %v1951 = vpop.xlane.xlu0 %1950
    %1952 = vadd.xlane.f32.xlu0 %v1949
    %v1953 = vpop.xlane.xlu0 %1952
    %v1954 = vmul.f32 %v1951, %v947
    %v1955 = vmul.f32 %v1953, %v947
    %v1956 = vadd.f32 %v1954, 1e-05
    %v1957 = vadd.f32 %v1955, 1e-05
    %v1958 = vrsqrt.pop %v1956
    %v1959 = vrsqrt.pop %v1957
    %v1960 = vmul.f32 %v1946, %v1958
    %v1961 = vmul.f32 %v1947, %v1959
    %v1963 = vlaneseq
    %v1964 = vshrl.u32 %v1963, 7
    %v1965 = vsub.s32 0, %v1964
    %v1966 = vrot.slane %v1937, %v1965
    %v1968 = vmul.f32 %v1960, %v1966
    %v1969 = vmul.f32 %v1961, %v1966
    %v1971 = vlaneseq
    %v1972 = vshrl.u32 %v1971, 7
    %v1973 = vsub.s32 0, %v1972
    %v1974 = vrot.slane %v1939, %v1973
    %v1976 = vadd.f32 %v1968, %v1974
    %v1977 = vadd.f32 %v1969, %v1974
    %v1978 = vpack.c.bf16 %v1977, %v1976
    %s1979 = scalar_lea.vmem [#allocation14], 128
    %v1980 = vld [vmem:[%s1979] sm:$0xff]
    %v1981 = vld [vmem:[%s1979 + $0x8] sm:$0xff]
    %v1982 = vld [vmem:[%s1979 + $0x10] sm:$0xff]
    %v1983 = vld [vmem:[%s1979 + $0x18] sm:$0xff]
    %v1984 = vld [vmem:[%s1979 + $0x20] sm:$0xff]
    %v1985 = vld [vmem:[%s1979 + $0x28] sm:$0xff]
    %v1986 = vld [vmem:[%s1979 + $0x30] sm:$0xff]
    %v1987 = vld [vmem:[%s1979 + $0x38] sm:$0xff]
    %v1988 = vld [vmem:[%s1979 + $0x40] sm:$0xff]
    %v1989 = vld [vmem:[%s1979 + $0x48] sm:$0xff]
    %v1990 = vld [vmem:[%s1979 + $0x50] sm:$0xff]
    %v1991 = vld [vmem:[%s1979 + $0x58] sm:$0xff]
    %v1992 = vld [vmem:[%s1979 + $0x60] sm:$0xff]
    %v1993 = vld [vmem:[%s1979 + $0x68] sm:$0xff]
    %v1994 = vld [vmem:[%s1979 + $0x70] sm:$0xff]
    %v1995 = vld [vmem:[%s1979 + $0x78] sm:$0xff]
    %s1996 = scalar_lea.vmem %s14, 2
    %v1997 = vld [vmem:[%s1996] sm:$0x3]
    %v1999 = vlaneseq
    %v2000 = vshrl.u32 %v1999, 7
    %v2001 = vsub.s32 0, %v2000
    %v2002 = vrot.slane %v1997, %v2001
    %v2003 = vlaneseq
    %v2004 = vshrl.u32 %v2003, 7
    %v2005 = vsub.s32 1, %v2004
    %v2006 = vrot.slane %v1997, %v2005
    %v2025 = vunpack.c.l.b16 %v1980
    %v2026 = vunpack.c.h.b16 %v1980
    %v2027 = vunpack.c.l.b16 %v1981
    %v2028 = vunpack.c.h.b16 %v1981
    %v2029 = vunpack.c.l.b16 %v1982
    %v2030 = vunpack.c.h.b16 %v1982
    %v2031 = vunpack.c.l.b16 %v1983
    %v2032 = vunpack.c.h.b16 %v1983
    %v2033 = vunpack.c.l.b16 %v1984
    %v2034 = vunpack.c.h.b16 %v1984
    %v2035 = vunpack.c.l.b16 %v1985
    %v2036 = vunpack.c.h.b16 %v1985
    %v2037 = vunpack.c.l.b16 %v1986
    %v2038 = vunpack.c.h.b16 %v1986
    %v2039 = vunpack.c.l.b16 %v1987
    %v2040 = vunpack.c.h.b16 %v1987
    %v2041 = vunpack.c.l.b16 %v1988
    %v2042 = vunpack.c.h.b16 %v1988
    %v2043 = vunpack.c.l.b16 %v1989
    %v2044 = vunpack.c.h.b16 %v1989
    %v2045 = vunpack.c.l.b16 %v1990
    %v2046 = vunpack.c.h.b16 %v1990
    %v2047 = vunpack.c.l.b16 %v1991
    %v2048 = vunpack.c.h.b16 %v1991
    %v2049 = vunpack.c.l.b16 %v1992
    %v2050 = vunpack.c.h.b16 %v1992
    %v2051 = vunpack.c.l.b16 %v1993
    %v2052 = vunpack.c.h.b16 %v1993
    %v2053 = vunpack.c.l.b16 %v1994
    %v2054 = vunpack.c.h.b16 %v1994
    %v2055 = vunpack.c.l.b16 %v1995
    %v2056 = vunpack.c.h.b16 %v1995
    %v2057 = vpack.c.b16 %v2027, %v2025
    %v2058 = vpack.c.b16 %v2028, %v2026
    %v2059 = vpack.c.b16 %v2031, %v2029
    %v2060 = vpack.c.b16 %v2032, %v2030
    %v2061 = vpack.c.b16 %v2035, %v2033
    %v2062 = vpack.c.b16 %v2036, %v2034
    %v2063 = vpack.c.b16 %v2039, %v2037
    %v2064 = vpack.c.b16 %v2040, %v2038
    %v2065 = vpack.c.b16 %v2043, %v2041
    %v2066 = vpack.c.b16 %v2044, %v2042
    %v2067 = vpack.c.b16 %v2047, %v2045
    %v2068 = vpack.c.b16 %v2048, %v2046
    %v2069 = vpack.c.b16 %v2051, %v2049
    %v2070 = vpack.c.b16 %v2052, %v2050
    %v2071 = vpack.c.b16 %v2055, %v2053
    %v2072 = vpack.c.b16 %v2056, %v2054
    %2089 = vmatprep.subr.bf16.mxu0 %v2072
    %2090 = vmatpush1.bf16.msra.mxu0 %v2071
    %2091 = vmatprep.subr.bf16.mxu0 %v2070
    %2092 = vmatpush1.bf16.msra.mxu0 %v2069
    %2093 = vmatprep.subr.bf16.mxu0 %v2068
    %2094 = vmatpush1.bf16.msra.mxu0 %v2067
    %2095 = vmatprep.subr.bf16.mxu0 %v2066
    %2096 = vmatpush1.bf16.msra.mxu0 %v2065
    %2097 = vmatprep.subr.bf16.mxu0 %v2064
    %2098 = vmatpush1.bf16.msra.mxu0 %v2063
    %2099 = vmatprep.subr.bf16.mxu0 %v2062
    %2100 = vmatpush1.bf16.msra.mxu0 %v2061
    %2101 = vmatprep.subr.bf16.mxu0 %v2060
    %2102 = vmatpush1.bf16.msra.mxu0 %v2059
    %2103 = vmatprep.subr.bf16.mxu0 %v2058
    %2104 = vmatpush1.bf16.msra.mxu0 %v2057
    %2105 = vmatprep.subr.bf16.mxu0 0
    %2106 = vmatpush2.bf16.msra.mxu0 0
    %2107 = vmatprep.subr.bf16.mxu0 0
    %2108 = vmatpush2.bf16.msra.mxu0 0
    %2109 = vmatprep.subr.bf16.mxu0 0
    %2110 = vmatpush2.bf16.msra.mxu0 0
    %2111 = vmatprep.subr.bf16.mxu0 0
    %2112 = vmatpush2.bf16.msra.mxu0 0
    %2113 = vmatprep.subr.bf16.mxu0 0
    %2114 = vmatpush2.bf16.msra.mxu0 0
    %2115 = vmatprep.subr.bf16.mxu0 0
    %2116 = vmatpush2.bf16.msra.mxu0 0
    %2117 = vmatprep.subr.bf16.mxu0 0
    %2118 = vmatpush2.bf16.msra.mxu0 0
    %2119 = vmatprep.subr.bf16.mxu0 0
    %2120 = vmatpush2.bf16.msra.mxu0 0
    %2121 = vmatprep.mubr.bf16.mxu0 0
    %2122 = vmatmul.mubr.bf16.gmra.mxu0 %v1978
    %v2123 = vpop.f32.mrf.mxu0
    %v2124 = vadd.f32 %v2002, %v2123
    %v2125 = vpop.f32.mrf.mxu0
    %v2126 = vadd.f32 %v2006, %v2125
    %v2127 = vpop.f32.mrf.mxu0
    %v2128 = vadd.f32 %v2002, %v2127
    %v2129 = vpop.f32.mrf.mxu0
    %v2130 = vadd.f32 %v2006, %v2129
    %2131 = vdwg.mxu0
    %v2132 = vmax.f32 %v2124, 0.0
    %v2133 = vmax.f32 %v2126, 0.0
    %v2134 = vmax.f32 %v2128, 0.0
    %v2135 = vmax.f32 %v2130, 0.0
    %v2136 = vpack.c.bf16 %v2134, %v2132
    %v2137 = vpack.c.bf16 %v2135, %v2133
    %s2138 = scalar_lea.vmem [#allocation16], 128
    %v2139 = vld [vmem:[%s2138] sm:$0xf]
    %v2140 = vld [vmem:[%s2138 + $0x4] sm:$0xf]
    %v2141 = vld [vmem:[%s2138 + $0x8] sm:$0xf]
    %v2142 = vld [vmem:[%s2138 + $0xc] sm:$0xf]
    %v2143 = vld [vmem:[%s2138 + $0x10] sm:$0xf]
    %v2144 = vld [vmem:[%s2138 + $0x14] sm:$0xf]
    %v2145 = vld [vmem:[%s2138 + $0x18] sm:$0xf]
    %v2146 = vld [vmem:[%s2138 + $0x1c] sm:$0xf]
    %v2147 = vld [vmem:[%s2138 + $0x20] sm:$0xf]
    %v2148 = vld [vmem:[%s2138 + $0x24] sm:$0xf]
    %v2149 = vld [vmem:[%s2138 + $0x28] sm:$0xf]
    %v2150 = vld [vmem:[%s2138 + $0x2c] sm:$0xf]
    %v2151 = vld [vmem:[%s2138 + $0x30] sm:$0xf]
    %v2152 = vld [vmem:[%s2138 + $0x34] sm:$0xf]
    %v2153 = vld [vmem:[%s2138 + $0x38] sm:$0xf]
    %v2154 = vld [vmem:[%s2138 + $0x3c] sm:$0xf]
    %v2155 = vld [vmem:[%s2138 + $0x40] sm:$0xf]
    %v2156 = vld [vmem:[%s2138 + $0x44] sm:$0xf]
    %v2157 = vld [vmem:[%s2138 + $0x48] sm:$0xf]
    %v2158 = vld [vmem:[%s2138 + $0x4c] sm:$0xf]
    %v2159 = vld [vmem:[%s2138 + $0x50] sm:$0xf]
    %v2160 = vld [vmem:[%s2138 + $0x54] sm:$0xf]
    %v2161 = vld [vmem:[%s2138 + $0x58] sm:$0xf]
    %v2162 = vld [vmem:[%s2138 + $0x5c] sm:$0xf]
    %v2163 = vld [vmem:[%s2138 + $0x60] sm:$0xf]
    %v2164 = vld [vmem:[%s2138 + $0x64] sm:$0xf]
    %v2165 = vld [vmem:[%s2138 + $0x68] sm:$0xf]
    %v2166 = vld [vmem:[%s2138 + $0x6c] sm:$0xf]
    %v2167 = vld [vmem:[%s2138 + $0x70] sm:$0xf]
    %v2168 = vld [vmem:[%s2138 + $0x74] sm:$0xf]
    %v2169 = vld [vmem:[%s2138 + $0x78] sm:$0xf]
    %v2170 = vld [vmem:[%s2138 + $0x7c] sm:$0xf]
    %s2171 = scalar_lea.vmem %s16, 1
    %v2172 = vld [vmem:[%s2171] sm:$0x1]
    %v2174 = vlaneseq
    %v2175 = vshrl.u32 %v2174, 7
    %v2176 = vsub.s32 0, %v2175
    %v2177 = vrot.slane %v2172, %v2176
    %v2211 = vunpack.c.l.b16 %v2139
    %v2212 = vunpack.c.l.b16 %v2140
    %v2213 = vunpack.c.l.b16 %v2141
    %v2214 = vunpack.c.l.b16 %v2142
    %v2215 = vunpack.c.l.b16 %v2143
    %v2216 = vunpack.c.l.b16 %v2144
    %v2217 = vunpack.c.l.b16 %v2145
    %v2218 = vunpack.c.l.b16 %v2146
    %v2219 = vunpack.c.l.b16 %v2147
    %v2220 = vunpack.c.l.b16 %v2148
    %v2221 = vunpack.c.l.b16 %v2149
    %v2222 = vunpack.c.l.b16 %v2150
    %v2223 = vunpack.c.l.b16 %v2151
    %v2224 = vunpack.c.l.b16 %v2152
    %v2225 = vunpack.c.l.b16 %v2153
    %v2226 = vunpack.c.l.b16 %v2154
    %v2227 = vunpack.c.l.b16 %v2155
    %v2228 = vunpack.c.l.b16 %v2156
    %v2229 = vunpack.c.l.b16 %v2157
    %v2230 = vunpack.c.l.b16 %v2158
    %v2231 = vunpack.c.l.b16 %v2159
    %v2232 = vunpack.c.l.b16 %v2160
    %v2233 = vunpack.c.l.b16 %v2161
    %v2234 = vunpack.c.l.b16 %v2162
    %v2235 = vunpack.c.l.b16 %v2163
    %v2236 = vunpack.c.l.b16 %v2164
    %v2237 = vunpack.c.l.b16 %v2165
    %v2238 = vunpack.c.l.b16 %v2166
    %v2239 = vunpack.c.l.b16 %v2167
    %v2240 = vunpack.c.l.b16 %v2168
    %v2241 = vunpack.c.l.b16 %v2169
    %v2242 = vunpack.c.l.b16 %v2170
    %v2243 = vpack.c.b16 %v2212, %v2211
    %v2244 = vpack.c.b16 %v2214, %v2213
    %v2245 = vpack.c.b16 %v2216, %v2215
    %v2246 = vpack.c.b16 %v2218, %v2217
    %v2247 = vpack.c.b16 %v2220, %v2219
    %v2248 = vpack.c.b16 %v2222, %v2221
    %v2249 = vpack.c.b16 %v2224, %v2223
    %v2250 = vpack.c.b16 %v2226, %v2225
    %v2251 = vpack.c.b16 %v2228, %v2227
    %v2252 = vpack.c.b16 %v2230, %v2229
    %v2253 = vpack.c.b16 %v2232, %v2231
    %v2254 = vpack.c.b16 %v2234, %v2233
    %v2255 = vpack.c.b16 %v2236, %v2235
    %v2256 = vpack.c.b16 %v2238, %v2237
    %v2257 = vpack.c.b16 %v2240, %v2239
    %v2258 = vpack.c.b16 %v2242, %v2241
    %2275 = vmatprep.subr.bf16.mxu0 0
    %2276 = vmatpush1.bf16.msra.mxu0 %v2250
    %2277 = vmatprep.subr.bf16.mxu0 0
    %2278 = vmatpush1.bf16.msra.mxu0 %v2249
    %2279 = vmatprep.subr.bf16.mxu0 0
    %2280 = vmatpush1.bf16.msra.mxu0 %v2248
    %2281 = vmatprep.subr.bf16.mxu0 0
    %2282 = vmatpush1.bf16.msra.mxu0 %v2247
    %2283 = vmatprep.subr.bf16.mxu0 0
    %2284 = vmatpush1.bf16.msra.mxu0 %v2246
    %2285 = vmatprep.subr.bf16.mxu0 0
    %2286 = vmatpush1.bf16.msra.mxu0 %v2245
    %2287 = vmatprep.subr.bf16.mxu0 0
    %2288 = vmatpush1.bf16.msra.mxu0 %v2244
    %2289 = vmatprep.subr.bf16.mxu0 0
    %2290 = vmatpush1.bf16.msra.mxu0 %v2243
    %2291 = vmatprep.subr.bf16.mxu0 0
    %2292 = vmatpush2.bf16.msra.mxu0 %v2258
    %2293 = vmatprep.subr.bf16.mxu0 0
    %2294 = vmatpush2.bf16.msra.mxu0 %v2257
    %2295 = vmatprep.subr.bf16.mxu0 0
    %2296 = vmatpush2.bf16.msra.mxu0 %v2256
    %2297 = vmatprep.subr.bf16.mxu0 0
    %2298 = vmatpush2.bf16.msra.mxu0 %v2255
    %2299 = vmatprep.subr.bf16.mxu0 0
    %2300 = vmatpush2.bf16.msra.mxu0 %v2254
    %2301 = vmatprep.subr.bf16.mxu0 0
    %2302 = vmatpush2.bf16.msra.mxu0 %v2253
    %2303 = vmatprep.subr.bf16.mxu0 0
    %2304 = vmatpush2.bf16.msra.mxu0 %v2252
    %2305 = vmatprep.subr.bf16.mxu0 0
    %2306 = vmatpush2.bf16.msra.mxu0 %v2251
    %2307 = vmatprep.mubr.bf16.mxu0 %v2137
    %2308 = vmatmul.mubr.bf16.gmra.mxu0 %v2136
    %v2309 = vpop.f32.mrf.mxu0
    %v2310 = vadd.f32 %v2177, %v2309
    %v2311 = vpop.f32.mrf.mxu0
    %v2312 = vpop.f32.mrf.mxu0
    %v2313 = vadd.f32 %v2177, %v2312
    %v2314 = vpop.f32.mrf.mxu0
    %2315 = vdwg.mxu0
    %v2316 = vadd.f32 %v1976, %v2310
    %v2317 = vadd.f32 %v1977, %v2313
    %s2318 = scalar_lea.vmem %s17, 1
    %v2319 = vld [vmem:[%s2318] sm:$0x1]
    %s2320 = scalar_lea.vmem %s18, 1
    %v2321 = vld [vmem:[%s2320] sm:$0x1]
    %2322 = vadd.xlane.f32.xlu0 %v2316
    %v2323 = vpop.xlane.xlu0 %2322
    %2324 = vadd.xlane.f32.xlu0 %v2317
    %v2325 = vpop.xlane.xlu0 %2324
    %v2326 = vmul.f32 %v2323, %v947
    %v2327 = vmul.f32 %v2325, %v947
    %v2328 = vsub.f32 %v2316, %v2326
    %v2329 = vsub.f32 %v2317, %v2327
    %v2330 = vmul.f32 %v2328, %v2328
    %v2331 = vmul.f32 %v2329, %v2329
    %2332 = vadd.xlane.f32.xlu0 %v2330
    %v2333 = vpop.xlane.xlu0 %2332
    %2334 = vadd.xlane.f32.xlu0 %v2331
    %v2335 = vpop.xlane.xlu0 %2334
    %v2336 = vmul.f32 %v2333, %v947
    %v2337 = vmul.f32 %v2335, %v947
    %v2338 = vadd.f32 %v2336, 1e-05
    %v2339 = vadd.f32 %v2337, 1e-05
    %v2340 = vrsqrt.pop %v2338
    %v2341 = vrsqrt.pop %v2339
    %v2342 = vmul.f32 %v2328, %v2340
    %v2343 = vmul.f32 %v2329, %v2341
    %v2345 = vlaneseq
    %v2346 = vshrl.u32 %v2345, 7
    %v2347 = vsub.s32 0, %v2346
    %v2348 = vrot.slane %v2319, %v2347
    %v2350 = vmul.f32 %v2342, %v2348
    %v2351 = vmul.f32 %v2343, %v2348
    %v2353 = vlaneseq
    %v2354 = vshrl.u32 %v2353, 7
    %v2355 = vsub.s32 0, %v2354
    %v2356 = vrot.slane %v2321, %v2355
    %v2358 = vadd.f32 %v2350, %v2356
    %v2359 = vadd.f32 %v2351, %v2356
    %v2360 = vpack.c.bf16 %v2359, %v2358
    %s2361 = scalar_lea.vmem [#allocation10], 384
    %v2362 = vld [vmem:[%s2361] sm:$0xff]
    %v2363 = vld [vmem:[%s2361 + $0x8] sm:$0xf]
    %v2364 = vld [vmem:[%s2361 + $0xc] sm:$0xff]
    %v2365 = vld [vmem:[%s2361 + $0x14] sm:$0xf]
    %v2366 = vld [vmem:[%s2361 + $0x18] sm:$0xff]
    %v2367 = vld [vmem:[%s2361 + $0x20] sm:$0xf]
    %v2368 = vld [vmem:[%s2361 + $0x24] sm:$0xff]
    %v2369 = vld [vmem:[%s2361 + $0x2c] sm:$0xf]
    %v2370 = vld [vmem:[%s2361 + $0x30] sm:$0xff]
    %v2371 = vld [vmem:[%s2361 + $0x38] sm:$0xf]
    %v2372 = vld [vmem:[%s2361 + $0x3c] sm:$0xff]
    %v2373 = vld [vmem:[%s2361 + $0x44] sm:$0xf]
    %v2374 = vld [vmem:[%s2361 + $0x48] sm:$0xff]
    %v2375 = vld [vmem:[%s2361 + $0x50] sm:$0xf]
    %v2376 = vld [vmem:[%s2361 + $0x54] sm:$0xff]
    %v2377 = vld [vmem:[%s2361 + $0x5c] sm:$0xf]
    %v2378 = vld [vmem:[%s2361 + $0x60] sm:$0xff]
    %v2379 = vld [vmem:[%s2361 + $0x68] sm:$0xf]
    %v2380 = vld [vmem:[%s2361 + $0x6c] sm:$0xff]
    %v2381 = vld [vmem:[%s2361 + $0x74] sm:$0xf]
    %v2382 = vld [vmem:[%s2361 + $0x78] sm:$0xff]
    %v2383 = vld [vmem:[%s2361 + $0x80] sm:$0xf]
    %v2384 = vld [vmem:[%s2361 + $0x84] sm:$0xff]
    %v2385 = vld [vmem:[%s2361 + $0x8c] sm:$0xf]
    %v2386 = vld [vmem:[%s2361 + $0x90] sm:$0xff]
    %v2387 = vld [vmem:[%s2361 + $0x98] sm:$0xf]
    %v2388 = vld [vmem:[%s2361 + $0x9c] sm:$0xff]
    %v2389 = vld [vmem:[%s2361 + $0xa4] sm:$0xf]
    %v2390 = vld [vmem:[%s2361 + $0xa8] sm:$0xff]
    %v2391 = vld [vmem:[%s2361 + $0xb0] sm:$0xf]
    %v2392 = vld [vmem:[%s2361 + $0xb4] sm:$0xff]
    %v2393 = vld [vmem:[%s2361 + $0xbc] sm:$0xf]
    %s2394 = scalar_lea.vmem [#allocation11], 6
    %v2395 = vld [vmem:[%s2394] sm:$0x7]
    %v2397 = vlaneseq
    %v2398 = vshrl.u32 %v2397, 7
    %v2399 = vsub.s32 0, %v2398
    %v2400 = vrot.slane %v2395, %v2399
    %v2401 = vlaneseq
    %v2402 = vshrl.u32 %v2401, 7
    %v2403 = vsub.s32 1, %v2402
    %v2404 = vrot.slane %v2395, %v2403
    %v2405 = vlaneseq
    %v2406 = vshrl.u32 %v2405, 7
    %v2407 = vsub.s32 2, %v2406
    %v2408 = vrot.slane %v2395, %v2407
    %v2444 = vunpack.c.l.b16 %v2362
    %v2445 = vunpack.c.h.b16 %v2362
    %v2446 = vunpack.c.l.b16 %v2363
    %v2447 = vunpack.c.l.b16 %v2364
    %v2448 = vunpack.c.h.b16 %v2364
    %v2449 = vunpack.c.l.b16 %v2365
    %v2450 = vunpack.c.l.b16 %v2366
    %v2451 = vunpack.c.h.b16 %v2366
    %v2452 = vunpack.c.l.b16 %v2367
    %v2453 = vunpack.c.l.b16 %v2368
    %v2454 = vunpack.c.h.b16 %v2368
    %v2455 = vunpack.c.l.b16 %v2369
    %v2456 = vunpack.c.l.b16 %v2370
    %v2457 = vunpack.c.h.b16 %v2370
    %v2458 = vunpack.c.l.b16 %v2371
    %v2459 = vunpack.c.l.b16 %v2372
    %v2460 = vunpack.c.h.b16 %v2372
    %v2461 = vunpack.c.l.b16 %v2373
    %v2462 = vunpack.c.l.b16 %v2374
    %v2463 = vunpack.c.h.b16 %v2374
    %v2464 = vunpack.c.l.b16 %v2375
    %v2465 = vunpack.c.l.b16 %v2376
    %v2466 = vunpack.c.h.b16 %v2376
    %v2467 = vunpack.c.l.b16 %v2377
    %v2468 = vunpack.c.l.b16 %v2378
    %v2469 = vunpack.c.h.b16 %v2378
    %v2470 = vunpack.c.l.b16 %v2379
    %v2471 = vunpack.c.l.b16 %v2380
    %v2472 = vunpack.c.h.b16 %v2380
    %v2473 = vunpack.c.l.b16 %v2381
    %v2474 = vunpack.c.l.b16 %v2382
    %v2475 = vunpack.c.h.b16 %v2382
    %v2476 = vunpack.c.l.b16 %v2383
    %v2477 = vunpack.c.l.b16 %v2384
    %v2478 = vunpack.c.h.b16 %v2384
    %v2479 = vunpack.c.l.b16 %v2385
    %v2480 = vunpack.c.l.b16 %v2386
    %v2481 = vunpack.c.h.b16 %v2386
    %v2482 = vunpack.c.l.b16 %v2387
    %v2483 = vunpack.c.l.b16 %v2388
    %v2484 = vunpack.c.h.b16 %v2388
    %v2485 = vunpack.c.l.b16 %v2389
    %v2486 = vunpack.c.l.b16 %v2390
    %v2487 = vunpack.c.h.b16 %v2390
    %v2488 = vunpack.c.l.b16 %v2391
    %v2489 = vunpack.c.l.b16 %v2392
    %v2490 = vunpack.c.h.b16 %v2392
    %v2491 = vunpack.c.l.b16 %v2393
    %v2492 = vpack.c.b16 %v2447, %v2444
    %v2493 = vpack.c.b16 %v2448, %v2445
    %v2494 = vpack.c.b16 %v2449, %v2446
    %v2495 = vpack.c.b16 %v2453, %v2450
    %v2496 = vpack.c.b16 %v2454, %v2451
    %v2497 = vpack.c.b16 %v2455, %v2452
    %v2498 = vpack.c.b16 %v2459, %v2456
    %v2499 = vpack.c.b16 %v2460, %v2457
    %v2500 = vpack.c.b16 %v2461, %v2458
    %v2501 = vpack.c.b16 %v2465, %v2462
    %v2502 = vpack.c.b16 %v2466, %v2463
    %v2503 = vpack.c.b16 %v2467, %v2464
    %v2504 = vpack.c.b16 %v2471, %v2468
    %v2505 = vpack.c.b16 %v2472, %v2469
    %v2506 = vpack.c.b16 %v2473, %v2470
    %v2507 = vpack.c.b16 %v2477, %v2474
    %v2508 = vpack.c.b16 %v2478, %v2475
    %v2509 = vpack.c.b16 %v2479, %v2476
    %v2510 = vpack.c.b16 %v2483, %v2480
    %v2511 = vpack.c.b16 %v2484, %v2481
    %v2512 = vpack.c.b16 %v2485, %v2482
    %v2513 = vpack.c.b16 %v2489, %v2486
    %v2514 = vpack.c.b16 %v2490, %v2487
    %v2515 = vpack.c.b16 %v2491, %v2488
    %2540 = vmatprep.subr.bf16.mxu0 %v2514
    %2541 = vmatpush1.bf16.msra.mxu0 %v2513
    %2542 = vmatprep.subr.bf16.mxu0 %v2511
    %2543 = vmatpush1.bf16.msra.mxu0 %v2510
    %2544 = vmatprep.subr.bf16.mxu0 %v2508
    %2545 = vmatpush1.bf16.msra.mxu0 %v2507
    %2546 = vmatprep.subr.bf16.mxu0 %v2505
    %2547 = vmatpush1.bf16.msra.mxu0 %v2504
    %2548 = vmatprep.subr.bf16.mxu0 %v2502
    %2549 = vmatpush1.bf16.msra.mxu0 %v2501
    %2550 = vmatprep.subr.bf16.mxu0 %v2499
    %2551 = vmatpush1.bf16.msra.mxu0 %v2498
    %2552 = vmatprep.subr.bf16.mxu0 %v2496
    %2553 = vmatpush1.bf16.msra.mxu0 %v2495
    %2554 = vmatprep.subr.bf16.mxu0 %v2493
    %2555 = vmatpush1.bf16.msra.mxu0 %v2492
    %2556 = vmatprep.subr.bf16.mxu0 0
    %2557 = vmatpush2.bf16.msra.mxu0 0
    %2558 = vmatprep.subr.bf16.mxu0 0
    %2559 = vmatpush2.bf16.msra.mxu0 0
    %2560 = vmatprep.subr.bf16.mxu0 0
    %2561 = vmatpush2.bf16.msra.mxu0 0
    %2562 = vmatprep.subr.bf16.mxu0 0
    %2563 = vmatpush2.bf16.msra.mxu0 0
    %2564 = vmatprep.subr.bf16.mxu0 0
    %2565 = vmatpush2.bf16.msra.mxu0 0
    %2566 = vmatprep.subr.bf16.mxu0 0
    %2567 = vmatpush2.bf16.msra.mxu0 0
    %2568 = vmatprep.subr.bf16.mxu0 0
    %2569 = vmatpush2.bf16.msra.mxu0 0
    %2570 = vmatprep.subr.bf16.mxu0 0
    %2571 = vmatpush2.bf16.msra.mxu0 0
    %2572 = vmatprep.mubr.bf16.mxu0 0
    %2573 = vmatmul.mubr.bf16.gmra.mxu0 %v2360
    %v2574 = vpop.f32.mrf.mxu0
    %v2575 = vadd.f32 %v2400, %v2574
    %v2576 = vpop.f32.mrf.mxu0
    %v2577 = vadd.f32 %v2404, %v2576
    %v2578 = vpop.f32.mrf.mxu0
    %v2579 = vadd.f32 %v2400, %v2578
    %v2580 = vpop.f32.mrf.mxu0
    %v2581 = vadd.f32 %v2404, %v2580
    %2582 = vdwg.mxu0
    %2583 = vmatprep.subr.bf16.mxu0 0
    %2584 = vmatpush1.bf16.msra.mxu0 %v2515
    %2585 = vmatprep.subr.bf16.mxu0 0
    %2586 = vmatpush1.bf16.msra.mxu0 %v2512
    %2587 = vmatprep.subr.bf16.mxu0 0
    %2588 = vmatpush1.bf16.msra.mxu0 %v2509
    %2589 = vmatprep.subr.bf16.mxu0 0
    %2590 = vmatpush1.bf16.msra.mxu0 %v2506
    %2591 = vmatprep.subr.bf16.mxu0 0
    %2592 = vmatpush1.bf16.msra.mxu0 %v2503
    %2593 = vmatprep.subr.bf16.mxu0 0
    %2594 = vmatpush1.bf16.msra.mxu0 %v2500
    %2595 = vmatprep.subr.bf16.mxu0 0
    %2596 = vmatpush1.bf16.msra.mxu0 %v2497
    %2597 = vmatprep.subr.bf16.mxu0 0
    %2598 = vmatpush1.bf16.msra.mxu0 %v2494
    %2599 = vmatprep.subr.bf16.mxu0 0
    %2600 = vmatpush2.bf16.msra.mxu0 0
    %2601 = vmatprep.subr.bf16.mxu0 0
    %2602 = vmatpush2.bf16.msra.mxu0 0
    %2603 = vmatprep.subr.bf16.mxu0 0
    %2604 = vmatpush2.bf16.msra.mxu0 0
    %2605 = vmatprep.subr.bf16.mxu0 0
    %2606 = vmatpush2.bf16.msra.mxu0 0
    %2607 = vmatprep.subr.bf16.mxu0 0
    %2608 = vmatpush2.bf16.msra.mxu0 0
    %2609 = vmatprep.subr.bf16.mxu0 0
    %2610 = vmatpush2.bf16.msra.mxu0 0
    %2611 = vmatprep.subr.bf16.mxu0 0
    %2612 = vmatpush2.bf16.msra.mxu0 0
    %2613 = vmatprep.subr.bf16.mxu0 0
    %2614 = vmatpush2.bf16.msra.mxu0 0
    %2615 = vmatprep.mubr.bf16.mxu0 0
    %2616 = vmatmul.mubr.bf16.gmra.mxu0 %v2360
    %v2617 = vpop.f32.mrf.mxu0
    %v2618 = vadd.f32 %v2408, %v2617
    %v2619 = vpop.f32.mrf.mxu0
    %v2620 = vpop.f32.mrf.mxu0
    %v2621 = vadd.f32 %v2408, %v2620
    %v2622 = vpop.f32.mrf.mxu0
    %2623 = vdwg.mxu0
    %v2624 = vmul.f32 %v2575, 0.25
    %v2625 = vmul.f32 %v2579, 0.25
    %v2626 = vpack.c.bf16 %v2625, %v2624
    %v2627 = vpack.c.bf16 %v2581, %v2577
    %v2628 = vpack.c.bf16 %v2621, %v2618
    %v2629 = vmul.bf16 %v2627, %v618
    %v2630 = vmul.bf16 %v2627, %v619
    %v2631 = vmul.bf16 %v2627, %v620
    %v2632 = vmul.bf16 %v2627, %v621
    %v2633 = vmul.bf16 %v2627, %v622
    %v2634 = vmul.bf16 %v2627, %v623
    %v2635 = vmul.bf16 %v2627, %v624
    %v2636 = vmul.bf16 %v2627, %v625
    %v2637 = vmul.bf16 %v2628, %v618
    %v2638 = vmul.bf16 %v2628, %v619
    %v2639 = vmul.bf16 %v2628, %v620
    %v2640 = vmul.bf16 %v2628, %v621
    %v2641 = vmul.bf16 %v2628, %v622
    %v2642 = vmul.bf16 %v2628, %v623
    %v2643 = vmul.bf16 %v2628, %v624
    %v2644 = vmul.bf16 %v2628, %v625
    %2645 = vmatprep.subr.bf16.mxu0 0
    %2646 = vmatpush1.bf16.xpose.msra.mxu0 %v2636
    %2647 = vmatprep.subr.bf16.mxu0 0
    %2648 = vmatpush1.bf16.xpose.msra.mxu0 %v2635
    %2649 = vmatprep.subr.bf16.mxu0 0
    %2650 = vmatpush1.bf16.xpose.msra.mxu0 %v2634
    %2651 = vmatprep.subr.bf16.mxu0 0
    %2652 = vmatpush1.bf16.xpose.msra.mxu0 %v2633
    %2653 = vmatprep.subr.bf16.mxu0 0
    %2654 = vmatpush1.bf16.xpose.msra.mxu0 %v2632
    %2655 = vmatprep.subr.bf16.mxu0 0
    %2656 = vmatpush1.bf16.xpose.msra.mxu0 %v2631
    %2657 = vmatprep.subr.bf16.mxu0 0
    %2658 = vmatpush1.bf16.xpose.msra.mxu0 %v2630
    %2659 = vmatprep.subr.bf16.mxu0 0
    %2660 = vmatpush1.bf16.xpose.msra.mxu0 %v2629
    %2661 = vmatprep.subr.bf16.mxu0 0
    %2662 = vmatpush2.bf16.xpose.msra.mxu0 0
    %2663 = vmatprep.subr.bf16.mxu0 0
    %2664 = vmatpush2.bf16.xpose.msra.mxu0 0
    %2665 = vmatprep.subr.bf16.mxu0 0
    %2666 = vmatpush2.bf16.xpose.msra.mxu0 0
    %2667 = vmatprep.subr.bf16.mxu0 0
    %2668 = vmatpush2.bf16.xpose.msra.mxu0 0
    %2669 = vmatprep.subr.bf16.mxu0 0
    %2670 = vmatpush2.bf16.xpose.msra.mxu0 0
    %2671 = vmatprep.subr.bf16.mxu0 0
    %2672 = vmatpush2.bf16.xpose.msra.mxu0 0
    %2673 = vmatprep.subr.bf16.mxu0 0
    %2674 = vmatpush2.bf16.xpose.msra.mxu0 0
    %2675 = vmatprep.subr.bf16.mxu0 0
    %2676 = vmatpush2.bf16.xpose.msra.mxu0 0
    %2677 = vmatprep.mubr.bf16.mxu0 0
    %2678 = vmatmul.mubr.bf16.gmra.mxu0 %v2626
    %v2679 = vpop.f32.mrf.mxu0
    %v2680 = vadd.f32 %v301, %v2679
    %v2681 = vpop.f32.mrf.mxu0
    %v2682 = vpop.f32.mrf.mxu0
    %v2683 = vadd.f32 %v302, %v2682
    %v2684 = vpop.f32.mrf.mxu0
    %2685 = vdwg.mxu0
    %2686 = vmax.xlane.f32.xlu0 %v2680
    %v2687 = vpop.xlane.xlu0 %2686
    %2688 = vmax.xlane.f32.xlu0 %v2683
    %v2689 = vpop.xlane.xlu0 %2688
    %v2690 = vsub.f32 %v2680, %v2687
    %v2691 = vsub.f32 %v2683, %v2689
    %v2692 = vmul.f32 %v2690, 1.442695
    %v2693 = vpow.pop %v2692
    %v2694 = vmul.f32 %v2691, 1.442695
    %v2695 = vpow.pop %v2694
    %2696 = vmatprep.subr.mxu0 0.0
    %2697 = vmatpush1.msra.mxu0 %v318
    %2698 = vmatprep.subr.mxu0 0.0
    %2699 = vmatpush1.msra.mxu0 %v317
    %2700 = vmatprep.subr.mxu0 0.0
    %2701 = vmatpush1.msra.mxu0 %v316
    %2702 = vmatprep.subr.mxu0 0.0
    %2703 = vmatpush1.msra.mxu0 %v315
    %2704 = vmatprep.subr.mxu0 0.0
    %2705 = vmatpush1.msra.mxu0 %v314
    %2706 = vmatprep.subr.mxu0 0.0
    %2707 = vmatpush1.msra.mxu0 %v313
    %2708 = vmatprep.subr.mxu0 0.0
    %2709 = vmatpush1.msra.mxu0 %v312
    %2710 = vmatprep.subr.mxu0 0.0
    %2711 = vmatpush1.msra.mxu0 %v311
    %2712 = vmatprep.subr.mxu0 0.0
    %2713 = vmatpush1.msra.mxu0 %v310
    %2714 = vmatprep.subr.mxu0 0.0
    %2715 = vmatpush1.msra.mxu0 %v309
    %2716 = vmatprep.subr.mxu0 0.0
    %2717 = vmatpush1.msra.mxu0 %v308
    %2718 = vmatprep.subr.mxu0 0.0
    %2719 = vmatpush1.msra.mxu0 %v307
    %2720 = vmatprep.subr.mxu0 0.0
    %2721 = vmatpush1.msra.mxu0 %v306
    %2722 = vmatprep.subr.mxu0 0.0
    %2723 = vmatpush1.msra.mxu0 %v305
    %2724 = vmatprep.subr.mxu0 0.0
    %2725 = vmatpush1.msra.mxu0 %v304
    %2726 = vmatprep.subr.mxu0 0.0
    %2727 = vmatpush1.msra.mxu0 %v303
    %2728 = vmatprep.subr.mxu0 0.0
    %2729 = vmatpush2.msra.mxu0 0.0
    %2730 = vmatprep.subr.mxu0 0.0
    %2731 = vmatpush2.msra.mxu0 0.0
    %2732 = vmatprep.subr.mxu0 0.0
    %2733 = vmatpush2.msra.mxu0 0.0
    %2734 = vmatprep.subr.mxu0 0.0
    %2735 = vmatpush2.msra.mxu0 0.0
    %2736 = vmatprep.subr.mxu0 0.0
    %2737 = vmatpush2.msra.mxu0 0.0
    %2738 = vmatprep.subr.mxu0 0.0
    %2739 = vmatpush2.msra.mxu0 0.0
    %2740 = vmatprep.subr.mxu0 0.0
    %2741 = vmatpush2.msra.mxu0 0.0
    %2742 = vmatprep.subr.mxu0 0.0
    %2743 = vmatpush2.msra.mxu0 0.0
    %2744 = vmatprep.subr.mxu0 0.0
    %2745 = vmatpush2.msra.mxu0 0.0
    %2746 = vmatprep.subr.mxu0 0.0
    %2747 = vmatpush2.msra.mxu0 0.0
    %2748 = vmatprep.subr.mxu0 0.0
    %2749 = vmatpush2.msra.mxu0 0.0
    %2750 = vmatprep.subr.mxu0 0.0
    %2751 = vmatpush2.msra.mxu0 0.0
    %2752 = vmatprep.subr.mxu0 0.0
    %2753 = vmatpush2.msra.mxu0 0.0
    %2754 = vmatprep.subr.mxu0 0.0
    %2755 = vmatpush2.msra.mxu0 0.0
    %2756 = vmatprep.subr.mxu0 0.0
    %2757 = vmatpush2.msra.mxu0 0.0
    %2758 = vmatprep.subr.mxu0 0.0
    %2759 = vmatpush2.msra.mxu0 0.0
    %2760 = vmatprep.mubr.f32.mxu0 0.0
    %2761 = vmatmul.mubr.f32.gmra.mxu0 %v2693
    %v2762 = vpop.f32.mrf.mxu0
    %v2763 = vadd.f32 0.0, %v2762
    %v2764 = vpop.f32.mrf.mxu0
    %2765 = vmatprep.mubr.f32.mxu0 0.0
    %2766 = vmatmul.mubr.f32.gmra.mxu0 %v2695
    %v2767 = vpop.f32.mrf.mxu0
    %v2768 = vadd.f32 0.0, %v2767
    %v2769 = vpop.f32.mrf.mxu0
    %2770 = vdwg.mxu0
    %vm2771 = vcmp.gt.f32.partialorder %v2763, 0.0
    %vm2772 = vcmp.gt.f32.partialorder %v2768, 0.0
    %v2773 = vsel %vm2771, %v2763, 1.0
    %v2774 = vsel %vm2772, %v2768, 1.0
    %v2775 = vrcp.pop %v2773
    %v2776 = vrcp.pop %v2774
    %v2777 = vmul.f32 %v2693, %v2775
    %v2778 = vmul.f32 %v2695, %v2776
    %v2779 = vpack.c.bf16 %v2778, %v2777
    %2780 = vmatprep.subr.bf16.mxu0 0
    %2781 = vmatpush1.bf16.msra.mxu0 %v2644
    %2782 = vmatprep.subr.bf16.mxu0 0
    %2783 = vmatpush1.bf16.msra.mxu0 %v2643
    %2784 = vmatprep.subr.bf16.mxu0 0
    %2785 = vmatpush1.bf16.msra.mxu0 %v2642
    %2786 = vmatprep.subr.bf16.mxu0 0
    %2787 = vmatpush1.bf16.msra.mxu0 %v2641
    %2788 = vmatprep.subr.bf16.mxu0 0
    %2789 = vmatpush1.bf16.msra.mxu0 %v2640
    %2790 = vmatprep.subr.bf16.mxu0 0
    %2791 = vmatpush1.bf16.msra.mxu0 %v2639
    %2792 = vmatprep.subr.bf16.mxu0 0
    %2793 = vmatpush1.bf16.msra.mxu0 %v2638
    %2794 = vmatprep.subr.bf16.mxu0 0
    %2795 = vmatpush1.bf16.msra.mxu0 %v2637
    %2796 = vmatprep.subr.bf16.mxu0 0
    %2797 = vmatpush2.bf16.msra.mxu0 0
    %2798 = vmatprep.subr.bf16.mxu0 0
    %2799 = vmatpush2.bf16.msra.mxu0 0
    %2800 = vmatprep.subr.bf16.mxu0 0
    %2801 = vmatpush2.bf16.msra.mxu0 0
    %2802 = vmatprep.subr.bf16.mxu0 0
    %2803 = vmatpush2.bf16.msra.mxu0 0
    %2804 = vmatprep.subr.bf16.mxu0 0
    %2805 = vmatpush2.bf16.msra.mxu0 0
    %2806 = vmatprep.subr.bf16.mxu0 0
    %2807 = vmatpush2.bf16.msra.mxu0 0
    %2808 = vmatprep.subr.bf16.mxu0 0
    %2809 = vmatpush2.bf16.msra.mxu0 0
    %2810 = vmatprep.subr.bf16.mxu0 0
    %2811 = vmatpush2.bf16.msra.mxu0 0
    %2812 = vmatprep.mubr.bf16.mxu0 0
    %2813 = vmatmul.mubr.bf16.gmra.mxu0 %v2779
    %v2814 = vpop.f32.mrf.mxu0
    %v2815 = vadd.f32 0.0, %v2814
    %v2816 = vpop.f32.mrf.mxu0
    %v2817 = vpop.f32.mrf.mxu0
    %v2818 = vadd.f32 0.0, %v2817
    %v2819 = vpop.f32.mrf.mxu0
    %2820 = vdwg.mxu0
    %v2821 = vpack.c.bf16 %v2818, %v2815
    %s2822 = scalar_lea.vmem [#allocation13], 128
    %v2823 = vld [vmem:[%s2822] sm:$0xf]
    %v2824 = vld [vmem:[%s2822 + $0x4] sm:$0xf]
    %v2825 = vld [vmem:[%s2822 + $0x8] sm:$0xf]
    %v2826 = vld [vmem:[%s2822 + $0xc] sm:$0xf]
    %v2827 = vld [vmem:[%s2822 + $0x10] sm:$0xf]
    %v2828 = vld [vmem:[%s2822 + $0x14] sm:$0xf]
    %v2829 = vld [vmem:[%s2822 + $0x18] sm:$0xf]
    %v2830 = vld [vmem:[%s2822 + $0x1c] sm:$0xf]
    %v2831 = vld [vmem:[%s2822 + $0x20] sm:$0xf]
    %v2832 = vld [vmem:[%s2822 + $0x24] sm:$0xf]
    %v2833 = vld [vmem:[%s2822 + $0x28] sm:$0xf]
    %v2834 = vld [vmem:[%s2822 + $0x2c] sm:$0xf]
    %v2835 = vld [vmem:[%s2822 + $0x30] sm:$0xf]
    %v2836 = vld [vmem:[%s2822 + $0x34] sm:$0xf]
    %v2837 = vld [vmem:[%s2822 + $0x38] sm:$0xf]
    %v2838 = vld [vmem:[%s2822 + $0x3c] sm:$0xf]
    %s2839 = scalar_lea.vmem %s10, 2
    %v2840 = vld [vmem:[%s2839] sm:$0x1]
    %v2842 = vlaneseq
    %v2843 = vshrl.u32 %v2842, 7
    %v2844 = vsub.s32 0, %v2843
    %v2845 = vrot.slane %v2840, %v2844
    %v2863 = vunpack.c.l.b16 %v2823
    %v2864 = vunpack.c.l.b16 %v2824
    %v2865 = vunpack.c.l.b16 %v2825
    %v2866 = vunpack.c.l.b16 %v2826
    %v2867 = vunpack.c.l.b16 %v2827
    %v2868 = vunpack.c.l.b16 %v2828
    %v2869 = vunpack.c.l.b16 %v2829
    %v2870 = vunpack.c.l.b16 %v2830
    %v2871 = vunpack.c.l.b16 %v2831
    %v2872 = vunpack.c.l.b16 %v2832
    %v2873 = vunpack.c.l.b16 %v2833
    %v2874 = vunpack.c.l.b16 %v2834
    %v2875 = vunpack.c.l.b16 %v2835
    %v2876 = vunpack.c.l.b16 %v2836
    %v2877 = vunpack.c.l.b16 %v2837
    %v2878 = vunpack.c.l.b16 %v2838
    %v2879 = vpack.c.b16 %v2864, %v2863
    %v2880 = vpack.c.b16 %v2866, %v2865
    %v2881 = vpack.c.b16 %v2868, %v2867
    %v2882 = vpack.c.b16 %v2870, %v2869
    %v2883 = vpack.c.b16 %v2872, %v2871
    %v2884 = vpack.c.b16 %v2874, %v2873
    %v2885 = vpack.c.b16 %v2876, %v2875
    %v2886 = vpack.c.b16 %v2878, %v2877
    %2895 = vmatprep.subr.bf16.mxu0 0
    %2896 = vmatpush1.bf16.msra.mxu0 %v2886
    %2897 = vmatprep.subr.bf16.mxu0 0
    %2898 = vmatpush1.bf16.msra.mxu0 %v2885
    %2899 = vmatprep.subr.bf16.mxu0 0
    %2900 = vmatpush1.bf16.msra.mxu0 %v2884
    %2901 = vmatprep.subr.bf16.mxu0 0
    %2902 = vmatpush1.bf16.msra.mxu0 %v2883
    %2903 = vmatprep.subr.bf16.mxu0 0
    %2904 = vmatpush1.bf16.msra.mxu0 %v2882
    %2905 = vmatprep.subr.bf16.mxu0 0
    %2906 = vmatpush1.bf16.msra.mxu0 %v2881
    %2907 = vmatprep.subr.bf16.mxu0 0
    %2908 = vmatpush1.bf16.msra.mxu0 %v2880
    %2909 = vmatprep.subr.bf16.mxu0 0
    %2910 = vmatpush1.bf16.msra.mxu0 %v2879
    %2911 = vmatprep.subr.bf16.mxu0 0
    %2912 = vmatpush2.bf16.msra.mxu0 0
    %2913 = vmatprep.subr.bf16.mxu0 0
    %2914 = vmatpush2.bf16.msra.mxu0 0
    %2915 = vmatprep.subr.bf16.mxu0 0
    %2916 = vmatpush2.bf16.msra.mxu0 0
    %2917 = vmatprep.subr.bf16.mxu0 0
    %2918 = vmatpush2.bf16.msra.mxu0 0
    %2919 = vmatprep.subr.bf16.mxu0 0
    %2920 = vmatpush2.bf16.msra.mxu0 0
    %2921 = vmatprep.subr.bf16.mxu0 0
    %2922 = vmatpush2.bf16.msra.mxu0 0
    %2923 = vmatprep.subr.bf16.mxu0 0
    %2924 = vmatpush2.bf16.msra.mxu0 0
    %2925 = vmatprep.subr.bf16.mxu0 0
    %2926 = vmatpush2.bf16.msra.mxu0 0
    %2927 = vmatprep.mubr.bf16.mxu0 0
    %2928 = vmatmul.mubr.bf16.gmra.mxu0 %v2821
    %v2929 = vpop.f32.mrf.mxu0
    %v2930 = vadd.f32 %v2845, %v2929
    %v2931 = vpop.f32.mrf.mxu0
    %v2932 = vpop.f32.mrf.mxu0
    %v2933 = vadd.f32 %v2845, %v2932
    %v2934 = vpop.f32.mrf.mxu0
    %2935 = vdwg.mxu0
    %v2936 = vadd.f32 %v2358, %v2930
    %v2937 = vadd.f32 %v2359, %v2933
    %s2938 = scalar_lea.vmem %s11, 2
    %v2939 = vld [vmem:[%s2938] sm:$0x1]
    %s2940 = scalar_lea.vmem %s12, 2
    %v2941 = vld [vmem:[%s2940] sm:$0x1]
    %2942 = vadd.xlane.f32.xlu0 %v2936
    %v2943 = vpop.xlane.xlu0 %2942
    %2944 = vadd.xlane.f32.xlu0 %v2937
    %v2945 = vpop.xlane.xlu0 %2944
    %v2946 = vmul.f32 %v2943, %v947
    %v2947 = vmul.f32 %v2945, %v947
    %v2948 = vsub.f32 %v2936, %v2946
    %v2949 = vsub.f32 %v2937, %v2947
    %v2950 = vmul.f32 %v2948, %v2948
    %v2951 = vmul.f32 %v2949, %v2949
    %2952 = vadd.xlane.f32.xlu0 %v2950
    %v2953 = vpop.xlane.xlu0 %2952
    %2954 = vadd.xlane.f32.xlu0 %v2951
    %v2955 = vpop.xlane.xlu0 %2954
    %v2956 = vmul.f32 %v2953, %v947
    %v2957 = vmul.f32 %v2955, %v947
    %v2958 = vadd.f32 %v2956, 1e-05
    %v2959 = vadd.f32 %v2957, 1e-05
    %v2960 = vrsqrt.pop %v2958
    %v2961 = vrsqrt.pop %v2959
    %v2962 = vmul.f32 %v2948, %v2960
    %v2963 = vmul.f32 %v2949, %v2961
    %v2965 = vlaneseq
    %v2966 = vshrl.u32 %v2965, 7
    %v2967 = vsub.s32 0, %v2966
    %v2968 = vrot.slane %v2939, %v2967
    %v2970 = vmul.f32 %v2962, %v2968
    %v2971 = vmul.f32 %v2963, %v2968
    %v2973 = vlaneseq
    %v2974 = vshrl.u32 %v2973, 7
    %v2975 = vsub.s32 0, %v2974
    %v2976 = vrot.slane %v2941, %v2975
    %v2978 = vadd.f32 %v2970, %v2976
    %v2979 = vadd.f32 %v2971, %v2976
    %v2980 = vpack.c.bf16 %v2979, %v2978
    %s2981 = scalar_lea.vmem [#allocation14], 256
    %v2982 = vld [vmem:[%s2981] sm:$0xff]
    %v2983 = vld [vmem:[%s2981 + $0x8] sm:$0xff]
    %v2984 = vld [vmem:[%s2981 + $0x10] sm:$0xff]
    %v2985 = vld [vmem:[%s2981 + $0x18] sm:$0xff]
    %v2986 = vld [vmem:[%s2981 + $0x20] sm:$0xff]
    %v2987 = vld [vmem:[%s2981 + $0x28] sm:$0xff]
    %v2988 = vld [vmem:[%s2981 + $0x30] sm:$0xff]
    %v2989 = vld [vmem:[%s2981 + $0x38] sm:$0xff]
    %v2990 = vld [vmem:[%s2981 + $0x40] sm:$0xff]
    %v2991 = vld [vmem:[%s2981 + $0x48] sm:$0xff]
    %v2992 = vld [vmem:[%s2981 + $0x50] sm:$0xff]
    %v2993 = vld [vmem:[%s2981 + $0x58] sm:$0xff]
    %v2994 = vld [vmem:[%s2981 + $0x60] sm:$0xff]
    %v2995 = vld [vmem:[%s2981 + $0x68] sm:$0xff]
    %v2996 = vld [vmem:[%s2981 + $0x70] sm:$0xff]
    %v2997 = vld [vmem:[%s2981 + $0x78] sm:$0xff]
    %s2998 = scalar_lea.vmem %s14, 4
    %v2999 = vld [vmem:[%s2998] sm:$0x3]
    %v3001 = vlaneseq
    %v3002 = vshrl.u32 %v3001, 7
    %v3003 = vsub.s32 0, %v3002
    %v3004 = vrot.slane %v2999, %v3003
    %v3005 = vlaneseq
    %v3006 = vshrl.u32 %v3005, 7
    %v3007 = vsub.s32 1, %v3006
    %v3008 = vrot.slane %v2999, %v3007
    %v3027 = vunpack.c.l.b16 %v2982
    %v3028 = vunpack.c.h.b16 %v2982
    %v3029 = vunpack.c.l.b16 %v2983
    %v3030 = vunpack.c.h.b16 %v2983
    %v3031 = vunpack.c.l.b16 %v2984
    %v3032 = vunpack.c.h.b16 %v2984
    %v3033 = vunpack.c.l.b16 %v2985
    %v3034 = vunpack.c.h.b16 %v2985
    %v3035 = vunpack.c.l.b16 %v2986
    %v3036 = vunpack.c.h.b16 %v2986
    %v3037 = vunpack.c.l.b16 %v2987
    %v3038 = vunpack.c.h.b16 %v2987
    %v3039 = vunpack.c.l.b16 %v2988
    %v3040 = vunpack.c.h.b16 %v2988
    %v3041 = vunpack.c.l.b16 %v2989
    %v3042 = vunpack.c.h.b16 %v2989
    %v3043 = vunpack.c.l.b16 %v2990
    %v3044 = vunpack.c.h.b16 %v2990
    %v3045 = vunpack.c.l.b16 %v2991
    %v3046 = vunpack.c.h.b16 %v2991
    %v3047 = vunpack.c.l.b16 %v2992
    %v3048 = vunpack.c.h.b16 %v2992
    %v3049 = vunpack.c.l.b16 %v2993
    %v3050 = vunpack.c.h.b16 %v2993
    %v3051 = vunpack.c.l.b16 %v2994
    %v3052 = vunpack.c.h.b16 %v2994
    %v3053 = vunpack.c.l.b16 %v2995
    %v3054 = vunpack.c.h.b16 %v2995
    %v3055 = vunpack.c.l.b16 %v2996
    %v3056 = vunpack.c.h.b16 %v2996
    %v3057 = vunpack.c.l.b16 %v2997
    %v3058 = vunpack.c.h.b16 %v2997
    %v3059 = vpack.c.b16 %v3029, %v3027
    %v3060 = vpack.c.b16 %v3030, %v3028
    %v3061 = vpack.c.b16 %v3033, %v3031
    %v3062 = vpack.c.b16 %v3034, %v3032
    %v3063 = vpack.c.b16 %v3037, %v3035
    %v3064 = vpack.c.b16 %v3038, %v3036
    %v3065 = vpack.c.b16 %v3041, %v3039
    %v3066 = vpack.c.b16 %v3042, %v3040
    %v3067 = vpack.c.b16 %v3045, %v3043
    %v3068 = vpack.c.b16 %v3046, %v3044
    %v3069 = vpack.c.b16 %v3049, %v3047
    %v3070 = vpack.c.b16 %v3050, %v3048
    %v3071 = vpack.c.b16 %v3053, %v3051
    %v3072 = vpack.c.b16 %v3054, %v3052
    %v3073 = vpack.c.b16 %v3057, %v3055
    %v3074 = vpack.c.b16 %v3058, %v3056
    %3091 = vmatprep.subr.bf16.mxu0 %v3074
    %3092 = vmatpush1.bf16.msra.mxu0 %v3073
    %3093 = vmatprep.subr.bf16.mxu0 %v3072
    %3094 = vmatpush1.bf16.msra.mxu0 %v3071
    %3095 = vmatprep.subr.bf16.mxu0 %v3070
    %3096 = vmatpush1.bf16.msra.mxu0 %v3069
    %3097 = vmatprep.subr.bf16.mxu0 %v3068
    %3098 = vmatpush1.bf16.msra.mxu0 %v3067
    %3099 = vmatprep.subr.bf16.mxu0 %v3066
    %3100 = vmatpush1.bf16.msra.mxu0 %v3065
    %3101 = vmatprep.subr.bf16.mxu0 %v3064
    %3102 = vmatpush1.bf16.msra.mxu0 %v3063
    %3103 = vmatprep.subr.bf16.mxu0 %v3062
    %3104 = vmatpush1.bf16.msra.mxu0 %v3061
    %3105 = vmatprep.subr.bf16.mxu0 %v3060
    %3106 = vmatpush1.bf16.msra.mxu0 %v3059
    %3107 = vmatprep.subr.bf16.mxu0 0
    %3108 = vmatpush2.bf16.msra.mxu0 0
    %3109 = vmatprep.subr.bf16.mxu0 0
    %3110 = vmatpush2.bf16.msra.mxu0 0
    %3111 = vmatprep.subr.bf16.mxu0 0
    %3112 = vmatpush2.bf16.msra.mxu0 0
    %3113 = vmatprep.subr.bf16.mxu0 0
    %3114 = vmatpush2.bf16.msra.mxu0 0
    %3115 = vmatprep.subr.bf16.mxu0 0
    %3116 = vmatpush2.bf16.msra.mxu0 0
    %3117 = vmatprep.subr.bf16.mxu0 0
    %3118 = vmatpush2.bf16.msra.mxu0 0
    %3119 = vmatprep.subr.bf16.mxu0 0
    %3120 = vmatpush2.bf16.msra.mxu0 0
    %3121 = vmatprep.subr.bf16.mxu0 0
    %3122 = vmatpush2.bf16.msra.mxu0 0
    %3123 = vmatprep.mubr.bf16.mxu0 0
    %3124 = vmatmul.mubr.bf16.gmra.mxu0 %v2980
    %v3125 = vpop.f32.mrf.mxu0
    %v3126 = vadd.f32 %v3004, %v3125
    %v3127 = vpop.f32.mrf.mxu0
    %v3128 = vadd.f32 %v3008, %v3127
    %v3129 = vpop.f32.mrf.mxu0
    %v3130 = vadd.f32 %v3004, %v3129
    %v3131 = vpop.f32.mrf.mxu0
    %v3132 = vadd.f32 %v3008, %v3131
    %3133 = vdwg.mxu0
    %v3134 = vmax.f32 %v3126, 0.0
    %v3135 = vmax.f32 %v3128, 0.0
    %v3136 = vmax.f32 %v3130, 0.0
    %v3137 = vmax.f32 %v3132, 0.0
    %v3138 = vpack.c.bf16 %v3136, %v3134
    %v3139 = vpack.c.bf16 %v3137, %v3135
    %s3140 = scalar_lea.vmem [#allocation16], 256
    %v3141 = vld [vmem:[%s3140] sm:$0xf]
    %v3142 = vld [vmem:[%s3140 + $0x4] sm:$0xf]
    %v3143 = vld [vmem:[%s3140 + $0x8] sm:$0xf]
    %v3144 = vld [vmem:[%s3140 + $0xc] sm:$0xf]
    %v3145 = vld [vmem:[%s3140 + $0x10] sm:$0xf]
    %v3146 = vld [vmem:[%s3140 + $0x14] sm:$0xf]
    %v3147 = vld [vmem:[%s3140 + $0x18] sm:$0xf]
    %v3148 = vld [vmem:[%s3140 + $0x1c] sm:$0xf]
    %v3149 = vld [vmem:[%s3140 + $0x20] sm:$0xf]
    %v3150 = vld [vmem:[%s3140 + $0x24] sm:$0xf]
    %v3151 = vld [vmem:[%s3140 + $0x28] sm:$0xf]
    %v3152 = vld [vmem:[%s3140 + $0x2c] sm:$0xf]
    %v3153 = vld [vmem:[%s3140 + $0x30] sm:$0xf]
    %v3154 = vld [vmem:[%s3140 + $0x34] sm:$0xf]
    %v3155 = vld [vmem:[%s3140 + $0x38] sm:$0xf]
    %v3156 = vld [vmem:[%s3140 + $0x3c] sm:$0xf]
    %v3157 = vld [vmem:[%s3140 + $0x40] sm:$0xf]
    %v3158 = vld [vmem:[%s3140 + $0x44] sm:$0xf]
    %v3159 = vld [vmem:[%s3140 + $0x48] sm:$0xf]
    %v3160 = vld [vmem:[%s3140 + $0x4c] sm:$0xf]
    %v3161 = vld [vmem:[%s3140 + $0x50] sm:$0xf]
    %v3162 = vld [vmem:[%s3140 + $0x54] sm:$0xf]
    %v3163 = vld [vmem:[%s3140 + $0x58] sm:$0xf]
    %v3164 = vld [vmem:[%s3140 + $0x5c] sm:$0xf]
    %v3165 = vld [vmem:[%s3140 + $0x60] sm:$0xf]
    %v3166 = vld [vmem:[%s3140 + $0x64] sm:$0xf]
    %v3167 = vld [vmem:[%s3140 + $0x68] sm:$0xf]
    %v3168 = vld [vmem:[%s3140 + $0x6c] sm:$0xf]
    %v3169 = vld [vmem:[%s3140 + $0x70] sm:$0xf]
    %v3170 = vld [vmem:[%s3140 + $0x74] sm:$0xf]
    %v3171 = vld [vmem:[%s3140 + $0x78] sm:$0xf]
    %v3172 = vld [vmem:[%s3140 + $0x7c] sm:$0xf]
    %s3173 = scalar_lea.vmem %s16, 2
    %v3174 = vld [vmem:[%s3173] sm:$0x1]
    %v3176 = vlaneseq
    %v3177 = vshrl.u32 %v3176, 7
    %v3178 = vsub.s32 0, %v3177
    %v3179 = vrot.slane %v3174, %v3178
    %v3213 = vunpack.c.l.b16 %v3141
    %v3214 = vunpack.c.l.b16 %v3142
    %v3215 = vunpack.c.l.b16 %v3143
    %v3216 = vunpack.c.l.b16 %v3144
    %v3217 = vunpack.c.l.b16 %v3145
    %v3218 = vunpack.c.l.b16 %v3146
    %v3219 = vunpack.c.l.b16 %v3147
    %v3220 = vunpack.c.l.b16 %v3148
    %v3221 = vunpack.c.l.b16 %v3149
    %v3222 = vunpack.c.l.b16 %v3150
    %v3223 = vunpack.c.l.b16 %v3151
    %v3224 = vunpack.c.l.b16 %v3152
    %v3225 = vunpack.c.l.b16 %v3153
    %v3226 = vunpack.c.l.b16 %v3154
    %v3227 = vunpack.c.l.b16 %v3155
    %v3228 = vunpack.c.l.b16 %v3156
    %v3229 = vunpack.c.l.b16 %v3157
    %v3230 = vunpack.c.l.b16 %v3158
    %v3231 = vunpack.c.l.b16 %v3159
    %v3232 = vunpack.c.l.b16 %v3160
    %v3233 = vunpack.c.l.b16 %v3161
    %v3234 = vunpack.c.l.b16 %v3162
    %v3235 = vunpack.c.l.b16 %v3163
    %v3236 = vunpack.c.l.b16 %v3164
    %v3237 = vunpack.c.l.b16 %v3165
    %v3238 = vunpack.c.l.b16 %v3166
    %v3239 = vunpack.c.l.b16 %v3167
    %v3240 = vunpack.c.l.b16 %v3168
    %v3241 = vunpack.c.l.b16 %v3169
    %v3242 = vunpack.c.l.b16 %v3170
    %v3243 = vunpack.c.l.b16 %v3171
    %v3244 = vunpack.c.l.b16 %v3172
    %v3245 = vpack.c.b16 %v3214, %v3213
    %v3246 = vpack.c.b16 %v3216, %v3215
    %v3247 = vpack.c.b16 %v3218, %v3217
    %v3248 = vpack.c.b16 %v3220, %v3219
    %v3249 = vpack.c.b16 %v3222, %v3221
    %v3250 = vpack.c.b16 %v3224, %v3223
    %v3251 = vpack.c.b16 %v3226, %v3225
    %v3252 = vpack.c.b16 %v3228, %v3227
    %v3253 = vpack.c.b16 %v3230, %v3229
    %v3254 = vpack.c.b16 %v3232, %v3231
    %v3255 = vpack.c.b16 %v3234, %v3233
    %v3256 = vpack.c.b16 %v3236, %v3235
    %v3257 = vpack.c.b16 %v3238, %v3237
    %v3258 = vpack.c.b16 %v3240, %v3239
    %v3259 = vpack.c.b16 %v3242, %v3241
    %v3260 = vpack.c.b16 %v3244, %v3243
    %3277 = vmatprep.subr.bf16.mxu0 0
    %3278 = vmatpush1.bf16.msra.mxu0 %v3252
    %3279 = vmatprep.subr.bf16.mxu0 0
    %3280 = vmatpush1.bf16.msra.mxu0 %v3251
    %3281 = vmatprep.subr.bf16.mxu0 0
    %3282 = vmatpush1.bf16.msra.mxu0 %v3250
    %3283 = vmatprep.subr.bf16.mxu0 0
    %3284 = vmatpush1.bf16.msra.mxu0 %v3249
    %3285 = vmatprep.subr.bf16.mxu0 0
    %3286 = vmatpush1.bf16.msra.mxu0 %v3248
    %3287 = vmatprep.subr.bf16.mxu0 0
    %3288 = vmatpush1.bf16.msra.mxu0 %v3247
    %3289 = vmatprep.subr.bf16.mxu0 0
    %3290 = vmatpush1.bf16.msra.mxu0 %v3246
    %3291 = vmatprep.subr.bf16.mxu0 0
    %3292 = vmatpush1.bf16.msra.mxu0 %v3245
    %3293 = vmatprep.subr.bf16.mxu0 0
    %3294 = vmatpush2.bf16.msra.mxu0 %v3260
    %3295 = vmatprep.subr.bf16.mxu0 0
    %3296 = vmatpush2.bf16.msra.mxu0 %v3259
    %3297 = vmatprep.subr.bf16.mxu0 0
    %3298 = vmatpush2.bf16.msra.mxu0 %v3258
    %3299 = vmatprep.subr.bf16.mxu0 0
    %3300 = vmatpush2.bf16.msra.mxu0 %v3257
    %3301 = vmatprep.subr.bf16.mxu0 0
    %3302 = vmatpush2.bf16.msra.mxu0 %v3256
    %3303 = vmatprep.subr.bf16.mxu0 0
    %3304 = vmatpush2.bf16.msra.mxu0 %v3255
    %3305 = vmatprep.subr.bf16.mxu0 0
    %3306 = vmatpush2.bf16.msra.mxu0 %v3254
    %3307 = vmatprep.subr.bf16.mxu0 0
    %3308 = vmatpush2.bf16.msra.mxu0 %v3253
    %3309 = vmatprep.mubr.bf16.mxu0 %v3139
    %3310 = vmatmul.mubr.bf16.gmra.mxu0 %v3138
    %v3311 = vpop.f32.mrf.mxu0
    %v3312 = vadd.f32 %v3179, %v3311
    %v3313 = vpop.f32.mrf.mxu0
    %v3314 = vpop.f32.mrf.mxu0
    %v3315 = vadd.f32 %v3179, %v3314
    %v3316 = vpop.f32.mrf.mxu0
    %3317 = vdwg.mxu0
    %v3318 = vadd.f32 %v2978, %v3312
    %v3319 = vadd.f32 %v2979, %v3315
    %s3320 = scalar_lea.vmem %s17, 2
    %v3321 = vld [vmem:[%s3320] sm:$0x1]
    %s3322 = scalar_lea.vmem %s18, 2
    %v3323 = vld [vmem:[%s3322] sm:$0x1]
    %3324 = vadd.xlane.f32.xlu0 %v3318
    %v3325 = vpop.xlane.xlu0 %3324
    %3326 = vadd.xlane.f32.xlu0 %v3319
    %v3327 = vpop.xlane.xlu0 %3326
    %v3328 = vmul.f32 %v3325, %v947
    %v3329 = vmul.f32 %v3327, %v947
    %v3330 = vsub.f32 %v3318, %v3328
    %v3331 = vsub.f32 %v3319, %v3329
    %v3332 = vmul.f32 %v3330, %v3330
    %v3333 = vmul.f32 %v3331, %v3331
    %3334 = vadd.xlane.f32.xlu0 %v3332
    %v3335 = vpop.xlane.xlu0 %3334
    %3336 = vadd.xlane.f32.xlu0 %v3333
    %v3337 = vpop.xlane.xlu0 %3336
    %v3338 = vmul.f32 %v3335, %v947
    %v3339 = vmul.f32 %v3337, %v947
    %v3340 = vadd.f32 %v3338, 1e-05
    %v3341 = vadd.f32 %v3339, 1e-05
    %v3342 = vrsqrt.pop %v3340
    %v3343 = vrsqrt.pop %v3341
    %v3344 = vmul.f32 %v3330, %v3342
    %v3345 = vmul.f32 %v3331, %v3343
    %v3347 = vlaneseq
    %v3348 = vshrl.u32 %v3347, 7
    %v3349 = vsub.s32 0, %v3348
    %v3350 = vrot.slane %v3321, %v3349
    %v3352 = vmul.f32 %v3344, %v3350
    %v3353 = vmul.f32 %v3345, %v3350
    %v3355 = vlaneseq
    %v3356 = vshrl.u32 %v3355, 7
    %v3357 = vsub.s32 0, %v3356
    %v3358 = vrot.slane %v3323, %v3357
    %v3360 = vadd.f32 %v3352, %v3358
    %v3361 = vadd.f32 %v3353, %v3358
    %v3362 = vld [vmem:[%s19] sm:$0x1]
    %v3364 = vlaneseq
    %v3365 = vshrl.u32 %v3364, 7
    %v3366 = vsub.s32 0, %v3365
    %v3367 = vrot.slane %v3362, %v3366
    %v3369 = vmul.f32 %v3360, %v3367
    %v3370 = vmul.f32 %v3361, %v3367
    %v3373 = vrot.slane %v3370, 7
    %vm3376 = vcmask 1047559
    %v3377 = vsel %vm3376, %v3369, 0.0
    %3378 = vadd.xlane.f32.xlu0 %v3377
    %v3379 = vpop.xlane.xlu0 %3378
    %vm3380 = vcmask 1040384
    %v3381 = vsel %vm3380, %v3373, 0.0
    %3382 = vadd.xlane.f32.xlu0 %v3381
    %v3383 = vpop.xlane.xlu0 %3382
    %v3384 = vld [vmem:[#allocation2] sm:$0x1]
    %v3386 = vlaneseq
    %v3387 = vshrl.u32 %v3386, 7
    %v3388 = vsub.s32 0, %v3387
    %v3389 = vrot.slane %v3384, %v3388
    %v3391 = vadd.f32 %v3379, %v3389
    %v3392 = vadd.f32 %v3383, %v3389
    %vm3393 = vcmask 7175
    %3394 = vst.msk [vmem:[%s21 - $0x7] sm:$0x80] %vm3393, %v3391
    %vm3395 = vcmask 0
    %3396 = vst.msk [vmem:[%s21 + $0x1] sm:$0x1] %vm3395, %v3392
    // Predicated region
    $region122: #{tpu_custom_call.1} parent=1 // pred_check
      _
    $region123: #{tpu_custom_call.1} parent=1 // pred_check_branch
      %3398 = sbr.rel (0) target = $region125
    $region124: #{tpu_custom_call.1} parent=1 // pred_region
      _
    $region125: #{tpu_custom_call.1} parent=1 // pred_fallthru
      _
    // Predicated region
    $region126: #{tpu_custom_call.1} parent=1 // pred_check
      _
    $region127: #{tpu_custom_call.1} parent=1 // pred_check_branch
      %3400 = sbr.rel (0) target = $region129
    $region128: #{tpu_custom_call.1} parent=1 // pred_region
      _
    $region129: #{tpu_custom_call.1} parent=1 // pred_fallthru
      _
    %3401 = vsyncpa [#allocation4], 1
    %3402 = vsyncpa [#allocation6], 1
    %3403 = vsyncpa [#allocation9], 1
    %3404 = vsyncpa [#allocation12], 1
    %3405 = vsyncpa [#allocation15], 1

</llo_original>
